<compile_context>
chip_gen: v5e
topology: v5e:2x2
jax: 0.10.0
libtpu: 0.0.40
codegen_flags: <defaults>
</compile_context>

<pallas_src>
import jax
import jax.numpy as jnp
from jax import lax
from jax.experimental import pallas as pl
from jax.experimental.pallas import tpu as pltpu


# ----------------------------------------------------------------------------
# helpers
# ----------------------------------------------------------------------------
def _vmem_spec():
    # whole-array block resident in VMEM (used where no grid is needed)
    return pl.BlockSpec(memory_space=pltpu.MemorySpace.VMEM)


def _rep_spec(arr):
    # whole-array block replicated to every grid step (weights / biases)
    nd = arr.ndim
    return pl.BlockSpec(arr.shape, lambda i, _nd=nd: (0,) * _nd)


def _pick_row_block(n, target=256):
    """Largest row tile <= target that divides n and is a multiple of 8;
    falls back to the full extent (always a legal block)."""
    if n <= target:
        return n
    rb = (target // 8) * 8
    while rb >= 8:
        if n % rb == 0:
            return rb
        rb -= 8
    return n


def _lstm_cell(gates, c_prev, H):
    """PyTorch gate order i, f, g, o.  NOTE: at production sizes H should be a
    multiple of 128 so these slices are lane-aligned slabs (H is tiny here)."""
    i = jax.nn.sigmoid(gates[:, 0 * H:1 * H])
    f = jax.nn.sigmoid(gates[:, 1 * H:2 * H])
    g_gate = jnp.tanh(gates[:, 2 * H:3 * H])
    o = jax.nn.sigmoid(gates[:, 3 * H:4 * H])
    c_new = f * c_prev + i * g_gate
    h_new = o * jnp.tanh(c_new)
    return h_new, c_new


# ----------------------------------------------------------------------------
# Kernel 1: fused char BiLSTM + char linears + gated combine with word embed
# ----------------------------------------------------------------------------
def make_char_combine_kernel(g):
    g = float(g)

    def kernel(chars_ref, we_ref,
               wih_f_ref, whh_f_ref, b_f_ref,
               wih_r_ref, whh_r_ref, b_r_ref,
               wlin_f_ref, wlin_r_ref, blin_ref,
               out_ref):
        rows, T = chars_ref.shape            # rows = row-tile of B*S words
        h = whh_f_ref.shape[0]               # char hidden size
        E = out_ref.shape[1]                 # word embed dim

        chars = chars_ref[...]               # [rows, T]

        def run_direction(wih_ref, whh_ref, b_ref, wlin_ref, reverse):
            whh = whh_ref[...]               # [h, 4h]
            wlin = wlin_ref[...]             # [T*h, E]  (pre-transposed linear)
            # Din == 1 -> input projection is an outer product: hoisted
            # broadcasts + a VPU multiply per step, no MXU involvement.
            wih_b = jnp.broadcast_to(wih_ref[...], (rows, 4 * h))
            b_b = jnp.broadcast_to(b_ref[...], (rows, 4 * h))

            h_t = jnp.zeros((rows, h), jnp.float32)
            c_t = jnp.zeros((rows, h), jnp.float32)
            acc = jnp.zeros((rows, E), jnp.float32)
            order = range(T - 1, -1, -1) if reverse else range(T)
            for t in order:                  # static unroll (T is small/static)
                x_t = chars[:, t:t + 1]      # [rows, 1]
                gates = x_t * wih_b + b_b + jnp.dot(
                    h_t, whh, preferred_element_type=jnp.float32)
                h_t, c_t = _lstm_cell(gates, c_t, h)
                # Fold the char linear into the recurrence: output slot t uses
                # weight rows [t*h, (t+1)*h) -> the [rows, T*h] reshape and its
                # HBM round-trip disappear entirely.
                acc = acc + jnp.dot(h_t, wlin[t * h:(t + 1) * h, :],
                                    preferred_element_type=jnp.float32)
            return acc

        acc_f = run_direction(wih_f_ref, whh_f_ref, b_f_ref, wlin_f_ref, False)
        acc_r = run_direction(wih_r_ref, whh_r_ref, b_r_ref, wlin_r_ref, True)
        charembed = acc_f + acc_r + blin_ref[...]
        out_ref[...] = (1.0 - g) * we_ref[...] + g * charembed

    return kernel


# ----------------------------------------------------------------------------
# Kernel 2: 2-layer word LSTM (hoisted input projection) + dense + softmax
# ----------------------------------------------------------------------------
def make_word_lstm_dense_kernel(seq_len, batch):
    S, B = int(seq_len), int(batch)

    def kernel(x_ref, wih0_ref, whh0_ref, b0_ref,
               wih1_ref, whh1_ref, b1_ref,
               wd_ref, bd_ref, out_ref):
        H = whh0_ref.shape[0]

        # Hoisted layer-0 input projection: one MXU-friendly [S*B, E]x[E, 4H]
        # matmul instead of S tiny per-step matmuls; bias added once.
        xp0 = jnp.dot(x_ref[...], wih0_ref[...],
                      preferred_element_type=jnp.float32) + b0_ref[...]  # [S*B,4H]

        whh0 = whh0_ref[...]
        wih1 = wih1_ref[...]
        whh1 = whh1_ref[...]
        b1 = jnp.broadcast_to(b1_ref[...], (B, 4 * H))   # hoisted broadcast

        h0 = jnp.zeros((B, H), jnp.float32)
        c0 = jnp.zeros((B, H), jnp.float32)
        h1 = jnp.zeros((B, H), jnp.float32)
        c1 = jnp.zeros((B, H), jnp.float32)

        # Both layers advance in one statically-unrolled time loop, so layer-0
        # hidden states never touch HBM and only h@W_hh stays on the critical
        # recurrence path for layer 0.
        for t in range(S):
            g0 = xp0[t * B:(t + 1) * B, :] + jnp.dot(
                h0, whh0, preferred_element_type=jnp.float32)
            h0, c0 = _lstm_cell(g0, c0, H)
            g1 = (jnp.dot(h0, wih1, preferred_element_type=jnp.float32) + b1
                  + jnp.dot(h1, whh1, preferred_element_type=jnp.float32))
            h1, c1 = _lstm_cell(g1, c1, H)

        # Fused dense + softmax epilogue on the last hidden state.
        logits = jnp.dot(h1, wd_ref[...],
                         preferred_element_type=jnp.float32) + bd_ref[...]
        m = jnp.max(logits, axis=-1, keepdims=True)
        e = jnp.exp(logits - m)
        denom = jnp.sum(e, axis=-1, keepdims=True)
        out_ref[...] = e * pl.reciprocal(denom, approx=True)

    return kernel


# ----------------------------------------------------------------------------
# parameters (pre-transposed, kernel-friendly layout) + forward
# ----------------------------------------------------------------------------
def init_params(key, vocab, embed_dim, hidden_dim, max_charlen):
    h_ = embed_dim // 2
    keys = jax.random.split(key, 20)
    k = iter(keys)

    def rnd(shape, scale=0.1):
        return scale * jax.random.normal(next(k), shape, dtype=jnp.float32)

    return {
        "wordembed": rnd((vocab, embed_dim), 1.0),
        # char BiLSTM (input size 1, hidden h_, bidirectional); biases combined
        "wih_f": rnd((1, 4 * h_)), "whh_f": rnd((h_, 4 * h_)),
        "b_f": rnd((1, 4 * h_)),
        "wih_r": rnd((1, 4 * h_)), "whh_r": rnd((h_, 4 * h_)),
        "b_r": rnd((1, 4 * h_)),
        # char linears, stored as [T*h_, E]
        "wlin_f": rnd((max_charlen * h_, embed_dim)),
        "blin_f": rnd((1, embed_dim)),
        "wlin_r": rnd((max_charlen * h_, embed_dim)),
        "blin_r": rnd((1, embed_dim)),
        # 2-layer word LSTM, stored as [in, 4H]
        "wih0": rnd((embed_dim, 4 * hidden_dim)),
        "whh0": rnd((hidden_dim, 4 * hidden_dim)),
        "b0": rnd((1, 4 * hidden_dim)),
        "wih1": rnd((hidden_dim, 4 * hidden_dim)),
        "whh1": rnd((hidden_dim, 4 * hidden_dim)),
        "b1": rnd((1, 4 * hidden_dim)),
        # dense, stored as [H, V]
        "wd": rnd((hidden_dim, vocab)),
        "bd": rnd((1, vocab)),
    }


def forward(params, word_inputs, char_inputs, *, g):
    B, S = word_inputs.shape
    T = char_inputs.shape[2]
    E = params["wordembed"].shape[1]
    V = params["wd"].shape[1]
    Nw = B * S

    # S-major word ordering: row n = t*B + b.  Only tiny integer index tensors
    # get transposed; the char-kernel output is then directly the time-major
    # word-LSTM input (no activation transposes / reverses anywhere).
    we_flat = jnp.take(params["wordembed"],
                       word_inputs.T.reshape(-1), axis=0)          # [S*B, E]
    chars_flat = jnp.transpose(char_inputs, (1, 0, 2)).reshape(Nw, T)
    chars_flat = chars_flat.astype(jnp.float32)                    # [S*B, T]

    blin = params["blin_f"] + params["blin_r"]                     # [1, E]

    rb = _pick_row_block(Nw)
    grid = (Nw // rb,)

    wordchar = pl.pallas_call(
        make_char_combine_kernel(g),
        out_shape=jax.ShapeDtypeStruct((Nw, E), jnp.float32),
        grid=grid,
        in_specs=[
            pl.BlockSpec((rb, T), lambda i: (i, 0)),
            pl.BlockSpec((rb, E), lambda i: (i, 0)),
            _rep_spec(params["wih_f"]), _rep_spec(params["whh_f"]),
            _rep_spec(params["b_f"]),
            _rep_spec(params["wih_r"]), _rep_spec(params["whh_r"]),
            _rep_spec(params["b_r"]),
            _rep_spec(params["wlin_f"]), _rep_spec(params["wlin_r"]),
            _rep_spec(blin),
        ],
        out_specs=pl.BlockSpec((rb, E), lambda i: (i, 0)),
        compiler_params=pltpu.CompilerParams(
            dimension_semantics=("parallel",)),
    )(chars_flat, we_flat,
      params["wih_f"], params["whh_f"], params["b_f"],
      params["wih_r"], params["whh_r"], params["b_r"],
      params["wlin_f"], params["wlin_r"], blin)

    # 2-layer word LSTM + dense + softmax, single kernel.
    # TODO(synk): at production batch/vocab sizes add a batch-block grid axis
    # ("parallel") and tile dense_w over the vocab axis (two-pass softmax) so
    # the weights fit v7x's 64 MiB VMEM; B=2 here cannot be tiled (< 8 rows).
    probs = pl.pallas_call(
        make_word_lstm_dense_kernel(S, B),
        out_shape=jax.ShapeDtypeStruct((B, V), jnp.float32),
        in_specs=[_vmem_spec()] * 9,
        out_specs=_vmem_spec(),
    )(wordchar,
      params["wih0"], params["whh0"], params["b0"],
      params["wih1"], params["whh1"], params["b1"],
      params["wd"], params["bd"])

    return probs


# ----------------------------------------------------------------------------
# pure-JAX reference (same math, same params) for the self-check
# ----------------------------------------------------------------------------
def reference_forward(params, word_inputs, char_inputs, g):
    B, S = word_inputs.shape
    T = char_inputs.shape[2]
    E = params["wordembed"].shape[1]
    h_ = params["whh_f"].shape[0]

    def lstm_seq(xs, wih, whh, b):        # xs: [T, N, Din] -> [T, N, H]
        N = xs.shape[1]
        Hd = whh.shape[0]

        def step(carry, x):
            h, c = carry
            gates = x @ wih + h @ whh + b
            i = jax.nn.sigmoid(gates[:, :Hd])
            f = jax.nn.sigmoid(gates[:, Hd:2 * Hd])
            gg = jnp.tanh(gates[:, 2 * Hd:3 * Hd])
            o = jax.nn.sigmoid(gates[:, 3 * Hd:])
            c = f * c + i * gg
            h = o * jnp.tanh(c)
            return (h, c), h

        init = (jnp.zeros((N, Hd), jnp.float32),
                jnp.zeros((N, Hd), jnp.float32))
        _, hs = lax.scan(step, init, xs)
        return hs

    we = jnp.take(params["wordembed"], word_inputs, axis=0)         # [B, S, E]
    xs = char_inputs.astype(jnp.float32).reshape(B * S, T, 1)
    xs = jnp.transpose(xs, (1, 0, 2))                               # [T, B*S, 1]
    hf = lstm_seq(xs, params["wih_f"], params["whh_f"], params["b_f"])
    hr = lstm_seq(xs[::-1], params["wih_r"], params["whh_r"], params["b_r"])[::-1]
    fwd_flat = jnp.transpose(hf, (1, 0, 2)).reshape(B * S, T * h_)
    rev_flat = jnp.transpose(hr, (1, 0, 2)).reshape(B * S, T * h_)
    charembed = (fwd_flat @ params["wlin_f"] + params["blin_f"]
                 + rev_flat @ params["wlin_r"] + params["blin_r"])
    wordchar = (1.0 - g) * we.reshape(B * S, E) + g * charembed     # [B*S, E]

    x_tm = jnp.transpose(wordchar.reshape(B, S, E), (1, 0, 2))      # [S, B, E]
    h0s = lstm_seq(x_tm, params["wih0"], params["whh0"], params["b0"])
    h1s = lstm_seq(h0s, params["wih1"], params["whh1"], params["b1"])
    logits = h1s[-1] @ params["wd"] + params["bd"]
    return jax.nn.softmax(logits, axis=-1)


if __name__ == "__main__":
    # module hyper-parameters (small)
    WordVocabSize = 16
    WordEmbedDim = 8          # -> char LSTM hidden h_ = 4
    LstmHiddenDim = 16
    SeqLen = 8
    g = 0.3
    max_charlen = 4
    B = 2

    key = jax.random.PRNGKey(0)
    k_param, k_word, k_char = jax.random.split(key, 3)

    params = init_params(k_param, WordVocabSize, WordEmbedDim,
                         LstmHiddenDim, max_charlen)

    Wordinputs = jax.random.randint(k_word, (B, SeqLen), 0, WordVocabSize)
    Charinputs = jax.random.randint(k_char, (B, SeqLen, max_charlen), 0, 26)

    fwd = jax.jit(forward, static_argnames=("g",))
    out = jax.block_until_ready(fwd(params, Wordinputs, Charinputs, g=g))

    assert out.shape == (B, WordVocabSize), out.shape
    # softmax rows sum to ~1 (loose tol: approximate-reciprocal normalization)
    assert jnp.allclose(jnp.sum(out, axis=-1), 1.0, atol=1e-2)
    # numerics vs. pure-JAX reference of the same module
    ref = reference_forward(params, Wordinputs, Charinputs, g)
    assert jnp.allclose(out, ref, rtol=2e-2, atol=2e-3), \
        float(jnp.max(jnp.abs(out - ref)))
    print("KERNEL_OK")
</pallas_src>

<mosaic_0001>
module attributes {stable_mosaic.version = 11 : i64} {
  func.func @kernel(%arg0: memref<16x8xf32, #tpu.memory_space<vmem>>, %arg1: memref<8x64xf32, #tpu.memory_space<vmem>>, %arg2: memref<16x64xf32, #tpu.memory_space<vmem>>, %arg3: memref<1x64xf32, #tpu.memory_space<vmem>>, %arg4: memref<16x64xf32, #tpu.memory_space<vmem>>, %arg5: memref<16x64xf32, #tpu.memory_space<vmem>>, %arg6: memref<1x64xf32, #tpu.memory_space<vmem>>, %arg7: memref<16x16xf32, #tpu.memory_space<vmem>>, %arg8: memref<1x16xf32, #tpu.memory_space<vmem>>, %arg9: memref<2x16xf32, #tpu.memory_space<vmem>>) attributes {dimension_semantics = [], scalar_prefetch = 0 : i64, scratch_operands = 0 : i64, tpu.core_type = #tpu.core_type<tc>} {
    %c0 = arith.constant 0 : index
    %c0_0 = arith.constant 0 : index
    %0 = vector.load %arg0[%c0, %c0_0] : memref<16x8xf32, #tpu.memory_space<vmem>>, vector<16x8xf32>
    %c0_1 = arith.constant 0 : index
    %c0_2 = arith.constant 0 : index
    %1 = vector.load %arg1[%c0_1, %c0_2] : memref<8x64xf32, #tpu.memory_space<vmem>>, vector<8x64xf32>
    %cst = arith.constant dense<0.000000e+00> : vector<16x64xf32>
    %2 = tpu.matmul %0, %1, %cst {dimension_numbers = #tpu.dot_dimension_numbers<[1], [0], [0], [1], [0, 0, 1, 1], [], []>} : vector<16x8xf32>, vector<8x64xf32>, vector<16x64xf32> -> vector<16x64xf32>
    %c0_3 = arith.constant 0 : index
    %c0_4 = arith.constant 0 : index
    %3 = vector.load %arg3[%c0_3, %c0_4] : memref<1x64xf32, #tpu.memory_space<vmem>>, vector<1x64xf32>
    %4 = vector.broadcast %3 : vector<1x64xf32> to vector<16x64xf32>
    %5 = arith.addf %2, %4 : vector<16x64xf32>
    %c0_5 = arith.constant 0 : index
    %c0_6 = arith.constant 0 : index
    %6 = vector.load %arg2[%c0_5, %c0_6] : memref<16x64xf32, #tpu.memory_space<vmem>>, vector<16x64xf32>
    %c0_7 = arith.constant 0 : index
    %c0_8 = arith.constant 0 : index
    %7 = vector.load %arg4[%c0_7, %c0_8] : memref<16x64xf32, #tpu.memory_space<vmem>>, vector<16x64xf32>
    %c0_9 = arith.constant 0 : index
    %c0_10 = arith.constant 0 : index
    %8 = vector.load %arg5[%c0_9, %c0_10] : memref<16x64xf32, #tpu.memory_space<vmem>>, vector<16x64xf32>
    %c0_11 = arith.constant 0 : index
    %c0_12 = arith.constant 0 : index
    %9 = vector.load %arg6[%c0_11, %c0_12] : memref<1x64xf32, #tpu.memory_space<vmem>>, vector<1x64xf32>
    %10 = vector.shape_cast %9 : vector<1x64xf32> to vector<1x64xf32>
    %11 = vector.broadcast %10 : vector<1x64xf32> to vector<2x64xf32>
    %cst_13 = arith.constant 0.000000e+00 : f32
    %12 = vector.broadcast %cst_13 : f32 to vector<2x16xf32>
    %cst_14 = arith.constant 0.000000e+00 : f32
    %13 = vector.broadcast %cst_14 : f32 to vector<2x16xf32>
    %cst_15 = arith.constant 0.000000e+00 : f32
    %14 = vector.broadcast %cst_15 : f32 to vector<2x16xf32>
    %cst_16 = arith.constant 0.000000e+00 : f32
    %15 = vector.broadcast %cst_16 : f32 to vector<2x16xf32>
    %16 = vector.extract_strided_slice %5 {offsets = [0, 0], sizes = [2, 64], strides = [1, 1]} : vector<16x64xf32> to vector<2x64xf32>
    %cst_17 = arith.constant dense<0.000000e+00> : vector<2x64xf32>
    %17 = tpu.matmul %12, %6, %cst_17 {dimension_numbers = #tpu.dot_dimension_numbers<[1], [0], [0], [1], [0, 0, 1, 1], [], []>} : vector<2x16xf32>, vector<16x64xf32>, vector<2x64xf32> -> vector<2x64xf32>
    %18 = arith.addf %16, %17 : vector<2x64xf32>
    %19 = vector.extract_strided_slice %18 {offsets = [0, 0], sizes = [2, 16], strides = [1, 1]} : vector<2x64xf32> to vector<2x16xf32>
    %20 = arith.negf %19 : vector<2x16xf32>
    %21 = math.exp %20 : vector<2x16xf32>
    %cst_18 = arith.constant 1.000000e+00 : f32
    %22 = vector.broadcast %cst_18 : f32 to vector<2x16xf32>
    %23 = arith.addf %22, %21 : vector<2x16xf32>
    %24 = arith.divf %22, %23 : vector<2x16xf32>
    %25 = vector.extract_strided_slice %18 {offsets = [0, 16], sizes = [2, 16], strides = [1, 1]} : vector<2x64xf32> to vector<2x16xf32>
    %26 = arith.negf %25 : vector<2x16xf32>
    %27 = math.exp %26 : vector<2x16xf32>
    %cst_19 = arith.constant 1.000000e+00 : f32
    %28 = vector.broadcast %cst_19 : f32 to vector<2x16xf32>
    %29 = arith.addf %28, %27 : vector<2x16xf32>
    %30 = arith.divf %28, %29 : vector<2x16xf32>
    %31 = vector.extract_strided_slice %18 {offsets = [0, 32], sizes = [2, 16], strides = [1, 1]} : vector<2x64xf32> to vector<2x16xf32>
    %32 = math.tanh %31 : vector<2x16xf32>
    %33 = vector.extract_strided_slice %18 {offsets = [0, 48], sizes = [2, 16], strides = [1, 1]} : vector<2x64xf32> to vector<2x16xf32>
    %34 = arith.negf %33 : vector<2x16xf32>
    %35 = math.exp %34 : vector<2x16xf32>
    %cst_20 = arith.constant 1.000000e+00 : f32
    %36 = vector.broadcast %cst_20 : f32 to vector<2x16xf32>
    %37 = arith.addf %36, %35 : vector<2x16xf32>
    %38 = arith.divf %36, %37 : vector<2x16xf32>
    %39 = arith.mulf %30, %13 : vector<2x16xf32>
    %40 = arith.mulf %24, %32 : vector<2x16xf32>
    %41 = arith.addf %39, %40 : vector<2x16xf32>
    %42 = math.tanh %41 : vector<2x16xf32>
    %43 = arith.mulf %38, %42 : vector<2x16xf32>
    %cst_21 = arith.constant dense<0.000000e+00> : vector<2x64xf32>
    %44 = tpu.matmul %43, %7, %cst_21 {dimension_numbers = #tpu.dot_dimension_numbers<[1], [0], [0], [1], [0, 0, 1, 1], [], []>} : vector<2x16xf32>, vector<16x64xf32>, vector<2x64xf32> -> vector<2x64xf32>
    %45 = arith.addf %44, %11 : vector<2x64xf32>
    %cst_22 = arith.constant dense<0.000000e+00> : vector<2x64xf32>
    %46 = tpu.matmul %14, %8, %cst_22 {dimension_numbers = #tpu.dot_dimension_numbers<[1], [0], [0], [1], [0, 0, 1, 1], [], []>} : vector<2x16xf32>, vector<16x64xf32>, vector<2x64xf32> -> vector<2x64xf32>
    %47 = arith.addf %45, %46 : vector<2x64xf32>
    %48 = vector.extract_strided_slice %47 {offsets = [0, 0], sizes = [2, 16], strides = [1, 1]} : vector<2x64xf32> to vector<2x16xf32>
    %49 = arith.negf %48 : vector<2x16xf32>
    %50 = math.exp %49 : vector<2x16xf32>
    %cst_23 = arith.constant 1.000000e+00 : f32
    %51 = vector.broadcast %cst_23 : f32 to vector<2x16xf32>
    %52 = arith.addf %51, %50 : vector<2x16xf32>
    %53 = arith.divf %51, %52 : vector<2x16xf32>
    %54 = vector.extract_strided_slice %47 {offsets = [0, 16], sizes = [2, 16], strides = [1, 1]} : vector<2x64xf32> to vector<2x16xf32>
    %55 = arith.negf %54 : vector<2x16xf32>
    %56 = math.exp %55 : vector<2x16xf32>
    %cst_24 = arith.constant 1.000000e+00 : f32
    %57 = vector.broadcast %cst_24 : f32 to vector<2x16xf32>
    %58 = arith.addf %57, %56 : vector<2x16xf32>
    %59 = arith.divf %57, %58 : vector<2x16xf32>
    %60 = vector.extract_strided_slice %47 {offsets = [0, 32], sizes = [2, 16], strides = [1, 1]} : vector<2x64xf32> to vector<2x16xf32>
    %61 = math.tanh %60 : vector<2x16xf32>
    %62 = vector.extract_strided_slice %47 {offsets = [0, 48], sizes = [2, 16], strides = [1, 1]} : vector<2x64xf32> to vector<2x16xf32>
    %63 = arith.negf %62 : vector<2x16xf32>
    %64 = math.exp %63 : vector<2x16xf32>
    %cst_25 = arith.constant 1.000000e+00 : f32
    %65 = vector.broadcast %cst_25 : f32 to vector<2x16xf32>
    %66 = arith.addf %65, %64 : vector<2x16xf32>
    %67 = arith.divf %65, %66 : vector<2x16xf32>
    %68 = arith.mulf %59, %15 : vector<2x16xf32>
    %69 = arith.mulf %53, %61 : vector<2x16xf32>
    %70 = arith.addf %68, %69 : vector<2x16xf32>
    %71 = math.tanh %70 : vector<2x16xf32>
    %72 = arith.mulf %67, %71 : vector<2x16xf32>
    %73 = vector.extract_strided_slice %5 {offsets = [2, 0], sizes = [2, 64], strides = [1, 1]} : vector<16x64xf32> to vector<2x64xf32>
    %cst_26 = arith.constant dense<0.000000e+00> : vector<2x64xf32>
    %74 = tpu.matmul %43, %6, %cst_26 {dimension_numbers = #tpu.dot_dimension_numbers<[1], [0], [0], [1], [0, 0, 1, 1], [], []>} : vector<2x16xf32>, vector<16x64xf32>, vector<2x64xf32> -> vector<2x64xf32>
    %75 = arith.addf %73, %74 : vector<2x64xf32>
    %76 = vector.extract_strided_slice %75 {offsets = [0, 0], sizes = [2, 16], strides = [1, 1]} : vector<2x64xf32> to vector<2x16xf32>
    %77 = arith.negf %76 : vector<2x16xf32>
    %78 = math.exp %77 : vector<2x16xf32>
    %cst_27 = arith.constant 1.000000e+00 : f32
    %79 = vector.broadcast %cst_27 : f32 to vector<2x16xf32>
    %80 = arith.addf %79, %78 : vector<2x16xf32>
    %81 = arith.divf %79, %80 : vector<2x16xf32>
    %82 = vector.extract_strided_slice %75 {offsets = [0, 16], sizes = [2, 16], strides = [1, 1]} : vector<2x64xf32> to vector<2x16xf32>
    %83 = arith.negf %82 : vector<2x16xf32>
    %84 = math.exp %83 : vector<2x16xf32>
    %cst_28 = arith.constant 1.000000e+00 : f32
    %85 = vector.broadcast %cst_28 : f32 to vector<2x16xf32>
    %86 = arith.addf %85, %84 : vector<2x16xf32>
    %87 = arith.divf %85, %86 : vector<2x16xf32>
    %88 = vector.extract_strided_slice %75 {offsets = [0, 32], sizes = [2, 16], strides = [1, 1]} : vector<2x64xf32> to vector<2x16xf32>
    %89 = math.tanh %88 : vector<2x16xf32>
    %90 = vector.extract_strided_slice %75 {offsets = [0, 48], sizes = [2, 16], strides = [1, 1]} : vector<2x64xf32> to vector<2x16xf32>
    %91 = arith.negf %90 : vector<2x16xf32>
    %92 = math.exp %91 : vector<2x16xf32>
    %cst_29 = arith.constant 1.000000e+00 : f32
    %93 = vector.broadcast %cst_29 : f32 to vector<2x16xf32>
    %94 = arith.addf %93, %92 : vector<2x16xf32>
    %95 = arith.divf %93, %94 : vector<2x16xf32>
    %96 = arith.mulf %87, %41 : vector<2x16xf32>
    %97 = arith.mulf %81, %89 : vector<2x16xf32>
    %98 = arith.addf %96, %97 : vector<2x16xf32>
    %99 = math.tanh %98 : vector<2x16xf32>
    %100 = arith.mulf %95, %99 : vector<2x16xf32>
    %cst_30 = arith.constant dense<0.000000e+00> : vector<2x64xf32>
    %101 = tpu.matmul %100, %7, %cst_30 {dimension_numbers = #tpu.dot_dimension_numbers<[1], [0], [0], [1], [0, 0, 1, 1], [], []>} : vector<2x16xf32>, vector<16x64xf32>, vector<2x64xf32> -> vector<2x64xf32>
    %102 = arith.addf %101, %11 : vector<2x64xf32>
    %cst_31 = arith.constant dense<0.000000e+00> : vector<2x64xf32>
    %103 = tpu.matmul %72, %8, %cst_31 {dimension_numbers = #tpu.dot_dimension_numbers<[1], [0], [0], [1], [0, 0, 1, 1], [], []>} : vector<2x16xf32>, vector<16x64xf32>, vector<2x64xf32> -> vector<2x64xf32>
    %104 = arith.addf %102, %103 : vector<2x64xf32>
    %105 = vector.extract_strided_slice %104 {offsets = [0, 0], sizes = [2, 16], strides = [1, 1]} : vector<2x64xf32> to vector<2x16xf32>
    %106 = arith.negf %105 : vector<2x16xf32>
    %107 = math.exp %106 : vector<2x16xf32>
    %cst_32 = arith.constant 1.000000e+00 : f32
    %108 = vector.broadcast %cst_32 : f32 to vector<2x16xf32>
    %109 = arith.addf %108, %107 : vector<2x16xf32>
    %110 = arith.divf %108, %109 : vector<2x16xf32>
    %111 = vector.extract_strided_slice %104 {offsets = [0, 16], sizes = [2, 16], strides = [1, 1]} : vector<2x64xf32> to vector<2x16xf32>
    %112 = arith.negf %111 : vector<2x16xf32>
    %113 = math.exp %112 : vector<2x16xf32>
    %cst_33 = arith.constant 1.000000e+00 : f32
    %114 = vector.broadcast %cst_33 : f32 to vector<2x16xf32>
    %115 = arith.addf %114, %113 : vector<2x16xf32>
    %116 = arith.divf %114, %115 : vector<2x16xf32>
    %117 = vector.extract_strided_slice %104 {offsets = [0, 32], sizes = [2, 16], strides = [1, 1]} : vector<2x64xf32> to vector<2x16xf32>
    %118 = math.tanh %117 : vector<2x16xf32>
    %119 = vector.extract_strided_slice %104 {offsets = [0, 48], sizes = [2, 16], strides = [1, 1]} : vector<2x64xf32> to vector<2x16xf32>
    %120 = arith.negf %119 : vector<2x16xf32>
    %121 = math.exp %120 : vector<2x16xf32>
    %cst_34 = arith.constant 1.000000e+00 : f32
    %122 = vector.broadcast %cst_34 : f32 to vector<2x16xf32>
    %123 = arith.addf %122, %121 : vector<2x16xf32>
    %124 = arith.divf %122, %123 : vector<2x16xf32>
    %125 = arith.mulf %116, %70 : vector<2x16xf32>
    %126 = arith.mulf %110, %118 : vector<2x16xf32>
    %127 = arith.addf %125, %126 : vector<2x16xf32>
    %128 = math.tanh %127 : vector<2x16xf32>
    %129 = arith.mulf %124, %128 : vector<2x16xf32>
    %130 = vector.extract_strided_slice %5 {offsets = [4, 0], sizes = [2, 64], strides = [1, 1]} : vector<16x64xf32> to vector<2x64xf32>
    %cst_35 = arith.constant dense<0.000000e+00> : vector<2x64xf32>
    %131 = tpu.matmul %100, %6, %cst_35 {dimension_numbers = #tpu.dot_dimension_numbers<[1], [0], [0], [1], [0, 0, 1, 1], [], []>} : vector<2x16xf32>, vector<16x64xf32>, vector<2x64xf32> -> vector<2x64xf32>
    %132 = arith.addf %130, %131 : vector<2x64xf32>
    %133 = vector.extract_strided_slice %132 {offsets = [0, 0], sizes = [2, 16], strides = [1, 1]} : vector<2x64xf32> to vector<2x16xf32>
    %134 = arith.negf %133 : vector<2x16xf32>
    %135 = math.exp %134 : vector<2x16xf32>
    %cst_36 = arith.constant 1.000000e+00 : f32
    %136 = vector.broadcast %cst_36 : f32 to vector<2x16xf32>
    %137 = arith.addf %136, %135 : vector<2x16xf32>
    %138 = arith.divf %136, %137 : vector<2x16xf32>
    %139 = vector.extract_strided_slice %132 {offsets = [0, 16], sizes = [2, 16], strides = [1, 1]} : vector<2x64xf32> to vector<2x16xf32>
    %140 = arith.negf %139 : vector<2x16xf32>
    %141 = math.exp %140 : vector<2x16xf32>
    %cst_37 = arith.constant 1.000000e+00 : f32
    %142 = vector.broadcast %cst_37 : f32 to vector<2x16xf32>
    %143 = arith.addf %142, %141 : vector<2x16xf32>
    %144 = arith.divf %142, %143 : vector<2x16xf32>
    %145 = vector.extract_strided_slice %132 {offsets = [0, 32], sizes = [2, 16], strides = [1, 1]} : vector<2x64xf32> to vector<2x16xf32>
    %146 = math.tanh %145 : vector<2x16xf32>
    %147 = vector.extract_strided_slice %132 {offsets = [0, 48], sizes = [2, 16], strides = [1, 1]} : vector<2x64xf32> to vector<2x16xf32>
    %148 = arith.negf %147 : vector<2x16xf32>
    %149 = math.exp %148 : vector<2x16xf32>
    %cst_38 = arith.constant 1.000000e+00 : f32
    %150 = vector.broadcast %cst_38 : f32 to vector<2x16xf32>
    %151 = arith.addf %150, %149 : vector<2x16xf32>
    %152 = arith.divf %150, %151 : vector<2x16xf32>
    %153 = arith.mulf %144, %98 : vector<2x16xf32>
    %154 = arith.mulf %138, %146 : vector<2x16xf32>
    %155 = arith.addf %153, %154 : vector<2x16xf32>
    %156 = math.tanh %155 : vector<2x16xf32>
    %157 = arith.mulf %152, %156 : vector<2x16xf32>
    %cst_39 = arith.constant dense<0.000000e+00> : vector<2x64xf32>
    %158 = tpu.matmul %157, %7, %cst_39 {dimension_numbers = #tpu.dot_dimension_numbers<[1], [0], [0], [1], [0, 0, 1, 1], [], []>} : vector<2x16xf32>, vector<16x64xf32>, vector<2x64xf32> -> vector<2x64xf32>
    %159 = arith.addf %158, %11 : vector<2x64xf32>
    %cst_40 = arith.constant dense<0.000000e+00> : vector<2x64xf32>
    %160 = tpu.matmul %129, %8, %cst_40 {dimension_numbers = #tpu.dot_dimension_numbers<[1], [0], [0], [1], [0, 0, 1, 1], [], []>} : vector<2x16xf32>, vector<16x64xf32>, vector<2x64xf32> -> vector<2x64xf32>
    %161 = arith.addf %159, %160 : vector<2x64xf32>
    %162 = vector.extract_strided_slice %161 {offsets = [0, 0], sizes = [2, 16], strides = [1, 1]} : vector<2x64xf32> to vector<2x16xf32>
    %163 = arith.negf %162 : vector<2x16xf32>
    %164 = math.exp %163 : vector<2x16xf32>
    %cst_41 = arith.constant 1.000000e+00 : f32
    %165 = vector.broadcast %cst_41 : f32 to vector<2x16xf32>
    %166 = arith.addf %165, %164 : vector<2x16xf32>
    %167 = arith.divf %165, %166 : vector<2x16xf32>
    %168 = vector.extract_strided_slice %161 {offsets = [0, 16], sizes = [2, 16], strides = [1, 1]} : vector<2x64xf32> to vector<2x16xf32>
    %169 = arith.negf %168 : vector<2x16xf32>
    %170 = math.exp %169 : vector<2x16xf32>
    %cst_42 = arith.constant 1.000000e+00 : f32
    %171 = vector.broadcast %cst_42 : f32 to vector<2x16xf32>
    %172 = arith.addf %171, %170 : vector<2x16xf32>
    %173 = arith.divf %171, %172 : vector<2x16xf32>
    %174 = vector.extract_strided_slice %161 {offsets = [0, 32], sizes = [2, 16], strides = [1, 1]} : vector<2x64xf32> to vector<2x16xf32>
    %175 = math.tanh %174 : vector<2x16xf32>
    %176 = vector.extract_strided_slice %161 {offsets = [0, 48], sizes = [2, 16], strides = [1, 1]} : vector<2x64xf32> to vector<2x16xf32>
    %177 = arith.negf %176 : vector<2x16xf32>
    %178 = math.exp %177 : vector<2x16xf32>
    %cst_43 = arith.constant 1.000000e+00 : f32
    %179 = vector.broadcast %cst_43 : f32 to vector<2x16xf32>
    %180 = arith.addf %179, %178 : vector<2x16xf32>
    %181 = arith.divf %179, %180 : vector<2x16xf32>
    %182 = arith.mulf %173, %127 : vector<2x16xf32>
    %183 = arith.mulf %167, %175 : vector<2x16xf32>
    %184 = arith.addf %182, %183 : vector<2x16xf32>
    %185 = math.tanh %184 : vector<2x16xf32>
    %186 = arith.mulf %181, %185 : vector<2x16xf32>
    %187 = vector.extract_strided_slice %5 {offsets = [6, 0], sizes = [2, 64], strides = [1, 1]} : vector<16x64xf32> to vector<2x64xf32>
    %cst_44 = arith.constant dense<0.000000e+00> : vector<2x64xf32>
    %188 = tpu.matmul %157, %6, %cst_44 {dimension_numbers = #tpu.dot_dimension_numbers<[1], [0], [0], [1], [0, 0, 1, 1], [], []>} : vector<2x16xf32>, vector<16x64xf32>, vector<2x64xf32> -> vector<2x64xf32>
    %189 = arith.addf %187, %188 : vector<2x64xf32>
    %190 = vector.extract_strided_slice %189 {offsets = [0, 0], sizes = [2, 16], strides = [1, 1]} : vector<2x64xf32> to vector<2x16xf32>
    %191 = arith.negf %190 : vector<2x16xf32>
    %192 = math.exp %191 : vector<2x16xf32>
    %cst_45 = arith.constant 1.000000e+00 : f32
    %193 = vector.broadcast %cst_45 : f32 to vector<2x16xf32>
    %194 = arith.addf %193, %192 : vector<2x16xf32>
    %195 = arith.divf %193, %194 : vector<2x16xf32>
    %196 = vector.extract_strided_slice %189 {offsets = [0, 16], sizes = [2, 16], strides = [1, 1]} : vector<2x64xf32> to vector<2x16xf32>
    %197 = arith.negf %196 : vector<2x16xf32>
    %198 = math.exp %197 : vector<2x16xf32>
    %cst_46 = arith.constant 1.000000e+00 : f32
    %199 = vector.broadcast %cst_46 : f32 to vector<2x16xf32>
    %200 = arith.addf %199, %198 : vector<2x16xf32>
    %201 = arith.divf %199, %200 : vector<2x16xf32>
    %202 = vector.extract_strided_slice %189 {offsets = [0, 32], sizes = [2, 16], strides = [1, 1]} : vector<2x64xf32> to vector<2x16xf32>
    %203 = math.tanh %202 : vector<2x16xf32>
    %204 = vector.extract_strided_slice %189 {offsets = [0, 48], sizes = [2, 16], strides = [1, 1]} : vector<2x64xf32> to vector<2x16xf32>
    %205 = arith.negf %204 : vector<2x16xf32>
    %206 = math.exp %205 : vector<2x16xf32>
    %cst_47 = arith.constant 1.000000e+00 : f32
    %207 = vector.broadcast %cst_47 : f32 to vector<2x16xf32>
    %208 = arith.addf %207, %206 : vector<2x16xf32>
    %209 = arith.divf %207, %208 : vector<2x16xf32>
    %210 = arith.mulf %201, %155 : vector<2x16xf32>
    %211 = arith.mulf %195, %203 : vector<2x16xf32>
    %212 = arith.addf %210, %211 : vector<2x16xf32>
    %213 = math.tanh %212 : vector<2x16xf32>
    %214 = arith.mulf %209, %213 : vector<2x16xf32>
    %cst_48 = arith.constant dense<0.000000e+00> : vector<2x64xf32>
    %215 = tpu.matmul %214, %7, %cst_48 {dimension_numbers = #tpu.dot_dimension_numbers<[1], [0], [0], [1], [0, 0, 1, 1], [], []>} : vector<2x16xf32>, vector<16x64xf32>, vector<2x64xf32> -> vector<2x64xf32>
    %216 = arith.addf %215, %11 : vector<2x64xf32>
    %cst_49 = arith.constant dense<0.000000e+00> : vector<2x64xf32>
    %217 = tpu.matmul %186, %8, %cst_49 {dimension_numbers = #tpu.dot_dimension_numbers<[1], [0], [0], [1], [0, 0, 1, 1], [], []>} : vector<2x16xf32>, vector<16x64xf32>, vector<2x64xf32> -> vector<2x64xf32>
    %218 = arith.addf %216, %217 : vector<2x64xf32>
    %219 = vector.extract_strided_slice %218 {offsets = [0, 0], sizes = [2, 16], strides = [1, 1]} : vector<2x64xf32> to vector<2x16xf32>
    %220 = arith.negf %219 : vector<2x16xf32>
    %221 = math.exp %220 : vector<2x16xf32>
    %cst_50 = arith.constant 1.000000e+00 : f32
    %222 = vector.broadcast %cst_50 : f32 to vector<2x16xf32>
    %223 = arith.addf %222, %221 : vector<2x16xf32>
    %224 = arith.divf %222, %223 : vector<2x16xf32>
    %225 = vector.extract_strided_slice %218 {offsets = [0, 16], sizes = [2, 16], strides = [1, 1]} : vector<2x64xf32> to vector<2x16xf32>
    %226 = arith.negf %225 : vector<2x16xf32>
    %227 = math.exp %226 : vector<2x16xf32>
    %cst_51 = arith.constant 1.000000e+00 : f32
    %228 = vector.broadcast %cst_51 : f32 to vector<2x16xf32>
    %229 = arith.addf %228, %227 : vector<2x16xf32>
    %230 = arith.divf %228, %229 : vector<2x16xf32>
    %231 = vector.extract_strided_slice %218 {offsets = [0, 32], sizes = [2, 16], strides = [1, 1]} : vector<2x64xf32> to vector<2x16xf32>
    %232 = math.tanh %231 : vector<2x16xf32>
    %233 = vector.extract_strided_slice %218 {offsets = [0, 48], sizes = [2, 16], strides = [1, 1]} : vector<2x64xf32> to vector<2x16xf32>
    %234 = arith.negf %233 : vector<2x16xf32>
    %235 = math.exp %234 : vector<2x16xf32>
    %cst_52 = arith.constant 1.000000e+00 : f32
    %236 = vector.broadcast %cst_52 : f32 to vector<2x16xf32>
    %237 = arith.addf %236, %235 : vector<2x16xf32>
    %238 = arith.divf %236, %237 : vector<2x16xf32>
    %239 = arith.mulf %230, %184 : vector<2x16xf32>
    %240 = arith.mulf %224, %232 : vector<2x16xf32>
    %241 = arith.addf %239, %240 : vector<2x16xf32>
    %242 = math.tanh %241 : vector<2x16xf32>
    %243 = arith.mulf %238, %242 : vector<2x16xf32>
    %244 = vector.extract_strided_slice %5 {offsets = [8, 0], sizes = [2, 64], strides = [1, 1]} : vector<16x64xf32> to vector<2x64xf32>
    %cst_53 = arith.constant dense<0.000000e+00> : vector<2x64xf32>
    %245 = tpu.matmul %214, %6, %cst_53 {dimension_numbers = #tpu.dot_dimension_numbers<[1], [0], [0], [1], [0, 0, 1, 1], [], []>} : vector<2x16xf32>, vector<16x64xf32>, vector<2x64xf32> -> vector<2x64xf32>
    %246 = arith.addf %244, %245 : vector<2x64xf32>
    %247 = vector.extract_strided_slice %246 {offsets = [0, 0], sizes = [2, 16], strides = [1, 1]} : vector<2x64xf32> to vector<2x16xf32>
    %248 = arith.negf %247 : vector<2x16xf32>
    %249 = math.exp %248 : vector<2x16xf32>
    %cst_54 = arith.constant 1.000000e+00 : f32
    %250 = vector.broadcast %cst_54 : f32 to vector<2x16xf32>
    %251 = arith.addf %250, %249 : vector<2x16xf32>
    %252 = arith.divf %250, %251 : vector<2x16xf32>
    %253 = vector.extract_strided_slice %246 {offsets = [0, 16], sizes = [2, 16], strides = [1, 1]} : vector<2x64xf32> to vector<2x16xf32>
    %254 = arith.negf %253 : vector<2x16xf32>
    %255 = math.exp %254 : vector<2x16xf32>
    %cst_55 = arith.constant 1.000000e+00 : f32
    %256 = vector.broadcast %cst_55 : f32 to vector<2x16xf32>
    %257 = arith.addf %256, %255 : vector<2x16xf32>
    %258 = arith.divf %256, %257 : vector<2x16xf32>
    %259 = vector.extract_strided_slice %246 {offsets = [0, 32], sizes = [2, 16], strides = [1, 1]} : vector<2x64xf32> to vector<2x16xf32>
    %260 = math.tanh %259 : vector<2x16xf32>
    %261 = vector.extract_strided_slice %246 {offsets = [0, 48], sizes = [2, 16], strides = [1, 1]} : vector<2x64xf32> to vector<2x16xf32>
    %262 = arith.negf %261 : vector<2x16xf32>
    %263 = math.exp %262 : vector<2x16xf32>
    %cst_56 = arith.constant 1.000000e+00 : f32
    %264 = vector.broadcast %cst_56 : f32 to vector<2x16xf32>
    %265 = arith.addf %264, %263 : vector<2x16xf32>
    %266 = arith.divf %264, %265 : vector<2x16xf32>
    %267 = arith.mulf %258, %212 : vector<2x16xf32>
    %268 = arith.mulf %252, %260 : vector<2x16xf32>
    %269 = arith.addf %267, %268 : vector<2x16xf32>
    %270 = math.tanh %269 : vector<2x16xf32>
    %271 = arith.mulf %266, %270 : vector<2x16xf32>
    %cst_57 = arith.constant dense<0.000000e+00> : vector<2x64xf32>
    %272 = tpu.matmul %271, %7, %cst_57 {dimension_numbers = #tpu.dot_dimension_numbers<[1], [0], [0], [1], [0, 0, 1, 1], [], []>} : vector<2x16xf32>, vector<16x64xf32>, vector<2x64xf32> -> vector<2x64xf32>
    %273 = arith.addf %272, %11 : vector<2x64xf32>
    %cst_58 = arith.constant dense<0.000000e+00> : vector<2x64xf32>
    %274 = tpu.matmul %243, %8, %cst_58 {dimension_numbers = #tpu.dot_dimension_numbers<[1], [0], [0], [1], [0, 0, 1, 1], [], []>} : vector<2x16xf32>, vector<16x64xf32>, vector<2x64xf32> -> vector<2x64xf32>
    %275 = arith.addf %273, %274 : vector<2x64xf32>
    %276 = vector.extract_strided_slice %275 {offsets = [0, 0], sizes = [2, 16], strides = [1, 1]} : vector<2x64xf32> to vector<2x16xf32>
    %277 = arith.negf %276 : vector<2x16xf32>
    %278 = math.exp %277 : vector<2x16xf32>
    %cst_59 = arith.constant 1.000000e+00 : f32
    %279 = vector.broadcast %cst_59 : f32 to vector<2x16xf32>
    %280 = arith.addf %279, %278 : vector<2x16xf32>
    %281 = arith.divf %279, %280 : vector<2x16xf32>
    %282 = vector.extract_strided_slice %275 {offsets = [0, 16], sizes = [2, 16], strides = [1, 1]} : vector<2x64xf32> to vector<2x16xf32>
    %283 = arith.negf %282 : vector<2x16xf32>
    %284 = math.exp %283 : vector<2x16xf32>
    %cst_60 = arith.constant 1.000000e+00 : f32
    %285 = vector.broadcast %cst_60 : f32 to vector<2x16xf32>
    %286 = arith.addf %285, %284 : vector<2x16xf32>
    %287 = arith.divf %285, %286 : vector<2x16xf32>
    %288 = vector.extract_strided_slice %275 {offsets = [0, 32], sizes = [2, 16], strides = [1, 1]} : vector<2x64xf32> to vector<2x16xf32>
    %289 = math.tanh %288 : vector<2x16xf32>
    %290 = vector.extract_strided_slice %275 {offsets = [0, 48], sizes = [2, 16], strides = [1, 1]} : vector<2x64xf32> to vector<2x16xf32>
    %291 = arith.negf %290 : vector<2x16xf32>
    %292 = math.exp %291 : vector<2x16xf32>
    %cst_61 = arith.constant 1.000000e+00 : f32
    %293 = vector.broadcast %cst_61 : f32 to vector<2x16xf32>
    %294 = arith.addf %293, %292 : vector<2x16xf32>
    %295 = arith.divf %293, %294 : vector<2x16xf32>
    %296 = arith.mulf %287, %241 : vector<2x16xf32>
    %297 = arith.mulf %281, %289 : vector<2x16xf32>
    %298 = arith.addf %296, %297 : vector<2x16xf32>
    %299 = math.tanh %298 : vector<2x16xf32>
    %300 = arith.mulf %295, %299 : vector<2x16xf32>
    %301 = vector.extract_strided_slice %5 {offsets = [10, 0], sizes = [2, 64], strides = [1, 1]} : vector<16x64xf32> to vector<2x64xf32>
    %cst_62 = arith.constant dense<0.000000e+00> : vector<2x64xf32>
    %302 = tpu.matmul %271, %6, %cst_62 {dimension_numbers = #tpu.dot_dimension_numbers<[1], [0], [0], [1], [0, 0, 1, 1], [], []>} : vector<2x16xf32>, vector<16x64xf32>, vector<2x64xf32> -> vector<2x64xf32>
    %303 = arith.addf %301, %302 : vector<2x64xf32>
    %304 = vector.extract_strided_slice %303 {offsets = [0, 0], sizes = [2, 16], strides = [1, 1]} : vector<2x64xf32> to vector<2x16xf32>
    %305 = arith.negf %304 : vector<2x16xf32>
    %306 = math.exp %305 : vector<2x16xf32>
    %cst_63 = arith.constant 1.000000e+00 : f32
    %307 = vector.broadcast %cst_63 : f32 to vector<2x16xf32>
    %308 = arith.addf %307, %306 : vector<2x16xf32>
    %309 = arith.divf %307, %308 : vector<2x16xf32>
    %310 = vector.extract_strided_slice %303 {offsets = [0, 16], sizes = [2, 16], strides = [1, 1]} : vector<2x64xf32> to vector<2x16xf32>
    %311 = arith.negf %310 : vector<2x16xf32>
    %312 = math.exp %311 : vector<2x16xf32>
    %cst_64 = arith.constant 1.000000e+00 : f32
    %313 = vector.broadcast %cst_64 : f32 to vector<2x16xf32>
    %314 = arith.addf %313, %312 : vector<2x16xf32>
    %315 = arith.divf %313, %314 : vector<2x16xf32>
    %316 = vector.extract_strided_slice %303 {offsets = [0, 32], sizes = [2, 16], strides = [1, 1]} : vector<2x64xf32> to vector<2x16xf32>
    %317 = math.tanh %316 : vector<2x16xf32>
    %318 = vector.extract_strided_slice %303 {offsets = [0, 48], sizes = [2, 16], strides = [1, 1]} : vector<2x64xf32> to vector<2x16xf32>
    %319 = arith.negf %318 : vector<2x16xf32>
    %320 = math.exp %319 : vector<2x16xf32>
    %cst_65 = arith.constant 1.000000e+00 : f32
    %321 = vector.broadcast %cst_65 : f32 to vector<2x16xf32>
    %322 = arith.addf %321, %320 : vector<2x16xf32>
    %323 = arith.divf %321, %322 : vector<2x16xf32>
    %324 = arith.mulf %315, %269 : vector<2x16xf32>
    %325 = arith.mulf %309, %317 : vector<2x16xf32>
    %326 = arith.addf %324, %325 : vector<2x16xf32>
    %327 = math.tanh %326 : vector<2x16xf32>
    %328 = arith.mulf %323, %327 : vector<2x16xf32>
    %cst_66 = arith.constant dense<0.000000e+00> : vector<2x64xf32>
    %329 = tpu.matmul %328, %7, %cst_66 {dimension_numbers = #tpu.dot_dimension_numbers<[1], [0], [0], [1], [0, 0, 1, 1], [], []>} : vector<2x16xf32>, vector<16x64xf32>, vector<2x64xf32> -> vector<2x64xf32>
    %330 = arith.addf %329, %11 : vector<2x64xf32>
    %cst_67 = arith.constant dense<0.000000e+00> : vector<2x64xf32>
    %331 = tpu.matmul %300, %8, %cst_67 {dimension_numbers = #tpu.dot_dimension_numbers<[1], [0], [0], [1], [0, 0, 1, 1], [], []>} : vector<2x16xf32>, vector<16x64xf32>, vector<2x64xf32> -> vector<2x64xf32>
    %332 = arith.addf %330, %331 : vector<2x64xf32>
    %333 = vector.extract_strided_slice %332 {offsets = [0, 0], sizes = [2, 16], strides = [1, 1]} : vector<2x64xf32> to vector<2x16xf32>
    %334 = arith.negf %333 : vector<2x16xf32>
    %335 = math.exp %334 : vector<2x16xf32>
    %cst_68 = arith.constant 1.000000e+00 : f32
    %336 = vector.broadcast %cst_68 : f32 to vector<2x16xf32>
    %337 = arith.addf %336, %335 : vector<2x16xf32>
    %338 = arith.divf %336, %337 : vector<2x16xf32>
    %339 = vector.extract_strided_slice %332 {offsets = [0, 16], sizes = [2, 16], strides = [1, 1]} : vector<2x64xf32> to vector<2x16xf32>
    %340 = arith.negf %339 : vector<2x16xf32>
    %341 = math.exp %340 : vector<2x16xf32>
    %cst_69 = arith.constant 1.000000e+00 : f32
    %342 = vector.broadcast %cst_69 : f32 to vector<2x16xf32>
    %343 = arith.addf %342, %341 : vector<2x16xf32>
    %344 = arith.divf %342, %343 : vector<2x16xf32>
    %345 = vector.extract_strided_slice %332 {offsets = [0, 32], sizes = [2, 16], strides = [1, 1]} : vector<2x64xf32> to vector<2x16xf32>
    %346 = math.tanh %345 : vector<2x16xf32>
    %347 = vector.extract_strided_slice %332 {offsets = [0, 48], sizes = [2, 16], strides = [1, 1]} : vector<2x64xf32> to vector<2x16xf32>
    %348 = arith.negf %347 : vector<2x16xf32>
    %349 = math.exp %348 : vector<2x16xf32>
    %cst_70 = arith.constant 1.000000e+00 : f32
    %350 = vector.broadcast %cst_70 : f32 to vector<2x16xf32>
    %351 = arith.addf %350, %349 : vector<2x16xf32>
    %352 = arith.divf %350, %351 : vector<2x16xf32>
    %353 = arith.mulf %344, %298 : vector<2x16xf32>
    %354 = arith.mulf %338, %346 : vector<2x16xf32>
    %355 = arith.addf %353, %354 : vector<2x16xf32>
    %356 = math.tanh %355 : vector<2x16xf32>
    %357 = arith.mulf %352, %356 : vector<2x16xf32>
    %358 = vector.extract_strided_slice %5 {offsets = [12, 0], sizes = [2, 64], strides = [1, 1]} : vector<16x64xf32> to vector<2x64xf32>
    %cst_71 = arith.constant dense<0.000000e+00> : vector<2x64xf32>
    %359 = tpu.matmul %328, %6, %cst_71 {dimension_numbers = #tpu.dot_dimension_numbers<[1], [0], [0], [1], [0, 0, 1, 1], [], []>} : vector<2x16xf32>, vector<16x64xf32>, vector<2x64xf32> -> vector<2x64xf32>
    %360 = arith.addf %358, %359 : vector<2x64xf32>
    %361 = vector.extract_strided_slice %360 {offsets = [0, 0], sizes = [2, 16], strides = [1, 1]} : vector<2x64xf32> to vector<2x16xf32>
    %362 = arith.negf %361 : vector<2x16xf32>
    %363 = math.exp %362 : vector<2x16xf32>
    %cst_72 = arith.constant 1.000000e+00 : f32
    %364 = vector.broadcast %cst_72 : f32 to vector<2x16xf32>
    %365 = arith.addf %364, %363 : vector<2x16xf32>
    %366 = arith.divf %364, %365 : vector<2x16xf32>
    %367 = vector.extract_strided_slice %360 {offsets = [0, 16], sizes = [2, 16], strides = [1, 1]} : vector<2x64xf32> to vector<2x16xf32>
    %368 = arith.negf %367 : vector<2x16xf32>
    %369 = math.exp %368 : vector<2x16xf32>
    %cst_73 = arith.constant 1.000000e+00 : f32
    %370 = vector.broadcast %cst_73 : f32 to vector<2x16xf32>
    %371 = arith.addf %370, %369 : vector<2x16xf32>
    %372 = arith.divf %370, %371 : vector<2x16xf32>
    %373 = vector.extract_strided_slice %360 {offsets = [0, 32], sizes = [2, 16], strides = [1, 1]} : vector<2x64xf32> to vector<2x16xf32>
    %374 = math.tanh %373 : vector<2x16xf32>
    %375 = vector.extract_strided_slice %360 {offsets = [0, 48], sizes = [2, 16], strides = [1, 1]} : vector<2x64xf32> to vector<2x16xf32>
    %376 = arith.negf %375 : vector<2x16xf32>
    %377 = math.exp %376 : vector<2x16xf32>
    %cst_74 = arith.constant 1.000000e+00 : f32
    %378 = vector.broadcast %cst_74 : f32 to vector<2x16xf32>
    %379 = arith.addf %378, %377 : vector<2x16xf32>
    %380 = arith.divf %378, %379 : vector<2x16xf32>
    %381 = arith.mulf %372, %326 : vector<2x16xf32>
    %382 = arith.mulf %366, %374 : vector<2x16xf32>
    %383 = arith.addf %381, %382 : vector<2x16xf32>
    %384 = math.tanh %383 : vector<2x16xf32>
    %385 = arith.mulf %380, %384 : vector<2x16xf32>
    %cst_75 = arith.constant dense<0.000000e+00> : vector<2x64xf32>
    %386 = tpu.matmul %385, %7, %cst_75 {dimension_numbers = #tpu.dot_dimension_numbers<[1], [0], [0], [1], [0, 0, 1, 1], [], []>} : vector<2x16xf32>, vector<16x64xf32>, vector<2x64xf32> -> vector<2x64xf32>
    %387 = arith.addf %386, %11 : vector<2x64xf32>
    %cst_76 = arith.constant dense<0.000000e+00> : vector<2x64xf32>
    %388 = tpu.matmul %357, %8, %cst_76 {dimension_numbers = #tpu.dot_dimension_numbers<[1], [0], [0], [1], [0, 0, 1, 1], [], []>} : vector<2x16xf32>, vector<16x64xf32>, vector<2x64xf32> -> vector<2x64xf32>
    %389 = arith.addf %387, %388 : vector<2x64xf32>
    %390 = vector.extract_strided_slice %389 {offsets = [0, 0], sizes = [2, 16], strides = [1, 1]} : vector<2x64xf32> to vector<2x16xf32>
    %391 = arith.negf %390 : vector<2x16xf32>
    %392 = math.exp %391 : vector<2x16xf32>
    %cst_77 = arith.constant 1.000000e+00 : f32
    %393 = vector.broadcast %cst_77 : f32 to vector<2x16xf32>
    %394 = arith.addf %393, %392 : vector<2x16xf32>
    %395 = arith.divf %393, %394 : vector<2x16xf32>
    %396 = vector.extract_strided_slice %389 {offsets = [0, 16], sizes = [2, 16], strides = [1, 1]} : vector<2x64xf32> to vector<2x16xf32>
    %397 = arith.negf %396 : vector<2x16xf32>
    %398 = math.exp %397 : vector<2x16xf32>
    %cst_78 = arith.constant 1.000000e+00 : f32
    %399 = vector.broadcast %cst_78 : f32 to vector<2x16xf32>
    %400 = arith.addf %399, %398 : vector<2x16xf32>
    %401 = arith.divf %399, %400 : vector<2x16xf32>
    %402 = vector.extract_strided_slice %389 {offsets = [0, 32], sizes = [2, 16], strides = [1, 1]} : vector<2x64xf32> to vector<2x16xf32>
    %403 = math.tanh %402 : vector<2x16xf32>
    %404 = vector.extract_strided_slice %389 {offsets = [0, 48], sizes = [2, 16], strides = [1, 1]} : vector<2x64xf32> to vector<2x16xf32>
    %405 = arith.negf %404 : vector<2x16xf32>
    %406 = math.exp %405 : vector<2x16xf32>
    %cst_79 = arith.constant 1.000000e+00 : f32
    %407 = vector.broadcast %cst_79 : f32 to vector<2x16xf32>
    %408 = arith.addf %407, %406 : vector<2x16xf32>
    %409 = arith.divf %407, %408 : vector<2x16xf32>
    %410 = arith.mulf %401, %355 : vector<2x16xf32>
    %411 = arith.mulf %395, %403 : vector<2x16xf32>
    %412 = arith.addf %410, %411 : vector<2x16xf32>
    %413 = math.tanh %412 : vector<2x16xf32>
    %414 = arith.mulf %409, %413 : vector<2x16xf32>
    %415 = vector.extract_strided_slice %5 {offsets = [14, 0], sizes = [2, 64], strides = [1, 1]} : vector<16x64xf32> to vector<2x64xf32>
    %cst_80 = arith.constant dense<0.000000e+00> : vector<2x64xf32>
    %416 = tpu.matmul %385, %6, %cst_80 {dimension_numbers = #tpu.dot_dimension_numbers<[1], [0], [0], [1], [0, 0, 1, 1], [], []>} : vector<2x16xf32>, vector<16x64xf32>, vector<2x64xf32> -> vector<2x64xf32>
    %417 = arith.addf %415, %416 : vector<2x64xf32>
    %418 = vector.extract_strided_slice %417 {offsets = [0, 0], sizes = [2, 16], strides = [1, 1]} : vector<2x64xf32> to vector<2x16xf32>
    %419 = arith.negf %418 : vector<2x16xf32>
    %420 = math.exp %419 : vector<2x16xf32>
    %cst_81 = arith.constant 1.000000e+00 : f32
    %421 = vector.broadcast %cst_81 : f32 to vector<2x16xf32>
    %422 = arith.addf %421, %420 : vector<2x16xf32>
    %423 = arith.divf %421, %422 : vector<2x16xf32>
    %424 = vector.extract_strided_slice %417 {offsets = [0, 16], sizes = [2, 16], strides = [1, 1]} : vector<2x64xf32> to vector<2x16xf32>
    %425 = arith.negf %424 : vector<2x16xf32>
    %426 = math.exp %425 : vector<2x16xf32>
    %cst_82 = arith.constant 1.000000e+00 : f32
    %427 = vector.broadcast %cst_82 : f32 to vector<2x16xf32>
    %428 = arith.addf %427, %426 : vector<2x16xf32>
    %429 = arith.divf %427, %428 : vector<2x16xf32>
    %430 = vector.extract_strided_slice %417 {offsets = [0, 32], sizes = [2, 16], strides = [1, 1]} : vector<2x64xf32> to vector<2x16xf32>
    %431 = math.tanh %430 : vector<2x16xf32>
    %432 = vector.extract_strided_slice %417 {offsets = [0, 48], sizes = [2, 16], strides = [1, 1]} : vector<2x64xf32> to vector<2x16xf32>
    %433 = arith.negf %432 : vector<2x16xf32>
    %434 = math.exp %433 : vector<2x16xf32>
    %cst_83 = arith.constant 1.000000e+00 : f32
    %435 = vector.broadcast %cst_83 : f32 to vector<2x16xf32>
    %436 = arith.addf %435, %434 : vector<2x16xf32>
    %437 = arith.divf %435, %436 : vector<2x16xf32>
    %438 = arith.mulf %429, %383 : vector<2x16xf32>
    %439 = arith.mulf %423, %431 : vector<2x16xf32>
    %440 = arith.addf %438, %439 : vector<2x16xf32>
    %441 = math.tanh %440 : vector<2x16xf32>
    %442 = arith.mulf %437, %441 : vector<2x16xf32>
    %cst_84 = arith.constant dense<0.000000e+00> : vector<2x64xf32>
    %443 = tpu.matmul %442, %7, %cst_84 {dimension_numbers = #tpu.dot_dimension_numbers<[1], [0], [0], [1], [0, 0, 1, 1], [], []>} : vector<2x16xf32>, vector<16x64xf32>, vector<2x64xf32> -> vector<2x64xf32>
    %444 = arith.addf %443, %11 : vector<2x64xf32>
    %cst_85 = arith.constant dense<0.000000e+00> : vector<2x64xf32>
    %445 = tpu.matmul %414, %8, %cst_85 {dimension_numbers = #tpu.dot_dimension_numbers<[1], [0], [0], [1], [0, 0, 1, 1], [], []>} : vector<2x16xf32>, vector<16x64xf32>, vector<2x64xf32> -> vector<2x64xf32>
    %446 = arith.addf %444, %445 : vector<2x64xf32>
    %447 = vector.extract_strided_slice %446 {offsets = [0, 0], sizes = [2, 16], strides = [1, 1]} : vector<2x64xf32> to vector<2x16xf32>
    %448 = arith.negf %447 : vector<2x16xf32>
    %449 = math.exp %448 : vector<2x16xf32>
    %cst_86 = arith.constant 1.000000e+00 : f32
    %450 = vector.broadcast %cst_86 : f32 to vector<2x16xf32>
    %451 = arith.addf %450, %449 : vector<2x16xf32>
    %452 = arith.divf %450, %451 : vector<2x16xf32>
    %453 = vector.extract_strided_slice %446 {offsets = [0, 16], sizes = [2, 16], strides = [1, 1]} : vector<2x64xf32> to vector<2x16xf32>
    %454 = arith.negf %453 : vector<2x16xf32>
    %455 = math.exp %454 : vector<2x16xf32>
    %cst_87 = arith.constant 1.000000e+00 : f32
    %456 = vector.broadcast %cst_87 : f32 to vector<2x16xf32>
    %457 = arith.addf %456, %455 : vector<2x16xf32>
    %458 = arith.divf %456, %457 : vector<2x16xf32>
    %459 = vector.extract_strided_slice %446 {offsets = [0, 32], sizes = [2, 16], strides = [1, 1]} : vector<2x64xf32> to vector<2x16xf32>
    %460 = math.tanh %459 : vector<2x16xf32>
    %461 = vector.extract_strided_slice %446 {offsets = [0, 48], sizes = [2, 16], strides = [1, 1]} : vector<2x64xf32> to vector<2x16xf32>
    %462 = arith.negf %461 : vector<2x16xf32>
    %463 = math.exp %462 : vector<2x16xf32>
    %cst_88 = arith.constant 1.000000e+00 : f32
    %464 = vector.broadcast %cst_88 : f32 to vector<2x16xf32>
    %465 = arith.addf %464, %463 : vector<2x16xf32>
    %466 = arith.divf %464, %465 : vector<2x16xf32>
    %467 = arith.mulf %458, %412 : vector<2x16xf32>
    %468 = arith.mulf %452, %460 : vector<2x16xf32>
    %469 = arith.addf %467, %468 : vector<2x16xf32>
    %470 = math.tanh %469 : vector<2x16xf32>
    %471 = arith.mulf %466, %470 : vector<2x16xf32>
    %c0_89 = arith.constant 0 : index
    %c0_90 = arith.constant 0 : index
    %472 = vector.load %arg7[%c0_89, %c0_90] : memref<16x16xf32, #tpu.memory_space<vmem>>, vector<16x16xf32>
    %cst_91 = arith.constant dense<0.000000e+00> : vector<2x16xf32>
    %473 = tpu.matmul %471, %472, %cst_91 {dimension_numbers = #tpu.dot_dimension_numbers<[1], [0], [0], [1], [0, 0, 1, 1], [], []>} : vector<2x16xf32>, vector<16x16xf32>, vector<2x16xf32> -> vector<2x16xf32>
    %c0_92 = arith.constant 0 : index
    %c0_93 = arith.constant 0 : index
    %474 = vector.load %arg8[%c0_92, %c0_93] : memref<1x16xf32, #tpu.memory_space<vmem>>, vector<1x16xf32>
    %475 = vector.broadcast %474 : vector<1x16xf32> to vector<2x16xf32>
    %476 = arith.addf %473, %475 : vector<2x16xf32>
    %cst_94 = arith.constant dense<0xFF800000> : vector<2xf32>
    %477 = vector.multi_reduction <maximumf>, %476, %cst_94 [1] : vector<2x16xf32> to vector<2xf32>
    %478 = vector.shape_cast %477 : vector<2xf32> to vector<2x1xf32>
    %479 = vector.broadcast %478 : vector<2x1xf32> to vector<2x16xf32>
    %480 = arith.subf %476, %479 : vector<2x16xf32>
    %481 = math.exp %480 : vector<2x16xf32>
    %cst_95 = arith.constant dense<0.000000e+00> : vector<2xf32>
    %482 = vector.multi_reduction <add>, %481, %cst_95 [1] : vector<2x16xf32> to vector<2xf32>
    %483 = vector.shape_cast %482 : vector<2xf32> to vector<2x1xf32>
    %484 = tpu.reciprocal %483 {approx = true} : vector<2x1xf32> -> vector<2x1xf32>
    %485 = vector.broadcast %484 : vector<2x1xf32> to vector<2x16xf32>
    %486 = arith.mulf %481, %485 : vector<2x16xf32>
    %c0_96 = arith.constant 0 : index
    %c0_97 = arith.constant 0 : index
    %487 = vector.load %arg9[%c0_96, %c0_97] : memref<2x16xf32, #tpu.memory_space<vmem>>, vector<2x16xf32>
    tpu.vector_store %arg9[%c0_96, %c0_97], %486 {strides = array<i32>} : memref<2x16xf32, #tpu.memory_space<vmem>>, vector<2x16xf32>,
    return
  }
}

module attributes {stable_mosaic.version = 11 : i64} {
  func.func @kernel(%arg0: i32, %arg1: memref<16x4xf32, #tpu.memory_space<vmem>>, %arg2: memref<16x8xf32, #tpu.memory_space<vmem>>, %arg3: memref<1x16xf32, #tpu.memory_space<vmem>>, %arg4: memref<4x16xf32, #tpu.memory_space<vmem>>, %arg5: memref<1x16xf32, #tpu.memory_space<vmem>>, %arg6: memref<1x16xf32, #tpu.memory_space<vmem>>, %arg7: memref<4x16xf32, #tpu.memory_space<vmem>>, %arg8: memref<1x16xf32, #tpu.memory_space<vmem>>, %arg9: memref<16x8xf32, #tpu.memory_space<vmem>>, %arg10: memref<16x8xf32, #tpu.memory_space<vmem>>, %arg11: memref<1x8xf32, #tpu.memory_space<vmem>>, %arg12: memref<16x8xf32, #tpu.memory_space<vmem>>) attributes {dimension_semantics = [#tpu.dimension_semantics<parallel>], iteration_bounds = array<i64: 1>, scalar_prefetch = 0 : i64, scratch_operands = 0 : i64, tpu.core_type = #tpu.core_type<tc>, window_params = [{transform_indices = @transform_0, window_bounds = array<i64: 16, 4>}, {transform_indices = @transform_1, window_bounds = array<i64: 16, 8>}, {pipeline_mode = #tpu.pipeline_mode<synchronous>, transform_indices = @transform_2, window_bounds = array<i64: 1, 16>}, {pipeline_mode = #tpu.pipeline_mode<synchronous>, transform_indices = @transform_3, window_bounds = array<i64: 4, 16>}, {pipeline_mode = #tpu.pipeline_mode<synchronous>, transform_indices = @transform_4, window_bounds = array<i64: 1, 16>}, {pipeline_mode = #tpu.pipeline_mode<synchronous>, transform_indices = @transform_5, window_bounds = array<i64: 1, 16>}, {pipeline_mode = #tpu.pipeline_mode<synchronous>, transform_indices = @transform_6, window_bounds = array<i64: 4, 16>}, {pipeline_mode = #tpu.pipeline_mode<synchronous>, transform_indices = @transform_7, window_bounds = array<i64: 1, 16>}, {pipeline_mode = #tpu.pipeline_mode<synchronous>, transform_indices = @transform_8, window_bounds = array<i64: 16, 8>}, {pipeline_mode = #tpu.pipeline_mode<synchronous>, transform_indices = @transform_9, window_bounds = array<i64: 16, 8>}, {pipeline_mode = #tpu.pipeline_mode<synchronous>, transform_indices = @transform_10, window_bounds = array<i64: 1, 8>}, {transform_indices = @transform_11, window_bounds = array<i64: 16, 8>}]} {
    %c0 = arith.constant 0 : index
    %c0_0 = arith.constant 0 : index
    %0 = vector.load %arg1[%c0, %c0_0] : memref<16x4xf32, #tpu.memory_space<vmem>>, vector<16x4xf32>
    %c0_1 = arith.constant 0 : index
    %c0_2 = arith.constant 0 : index
    %1 = vector.load %arg4[%c0_1, %c0_2] : memref<4x16xf32, #tpu.memory_space<vmem>>, vector<4x16xf32>
    %c0_3 = arith.constant 0 : index
    %c0_4 = arith.constant 0 : index
    %2 = vector.load %arg9[%c0_3, %c0_4] : memref<16x8xf32, #tpu.memory_space<vmem>>, vector<16x8xf32>
    %c0_5 = arith.constant 0 : index
    %c0_6 = arith.constant 0 : index
    %3 = vector.load %arg3[%c0_5, %c0_6] : memref<1x16xf32, #tpu.memory_space<vmem>>, vector<1x16xf32>
    %4 = vector.shape_cast %3 : vector<1x16xf32> to vector<1x16xf32>
    %5 = vector.broadcast %4 : vector<1x16xf32> to vector<16x16xf32>
    %c0_7 = arith.constant 0 : index
    %c0_8 = arith.constant 0 : index
    %6 = vector.load %arg5[%c0_7, %c0_8] : memref<1x16xf32, #tpu.memory_space<vmem>>, vector<1x16xf32>
    %7 = vector.shape_cast %6 : vector<1x16xf32> to vector<1x16xf32>
    %8 = vector.broadcast %7 : vector<1x16xf32> to vector<16x16xf32>
    %cst = arith.constant 0.000000e+00 : f32
    %9 = vector.broadcast %cst : f32 to vector<16x4xf32>
    %cst_9 = arith.constant 0.000000e+00 : f32
    %10 = vector.broadcast %cst_9 : f32 to vector<16x4xf32>
    %cst_10 = arith.constant 0.000000e+00 : f32
    %11 = vector.broadcast %cst_10 : f32 to vector<16x8xf32>
    %12 = vector.extract_strided_slice %0 {offsets = [0, 0], sizes = [16, 1], strides = [1, 1]} : vector<16x4xf32> to vector<16x1xf32>
    %13 = vector.broadcast %12 : vector<16x1xf32> to vector<16x16xf32>
    %14 = arith.mulf %13, %5 : vector<16x16xf32>
    %15 = arith.addf %14, %8 : vector<16x16xf32>
    %cst_11 = arith.constant dense<0.000000e+00> : vector<16x16xf32>
    %16 = tpu.matmul %9, %1, %cst_11 {dimension_numbers = #tpu.dot_dimension_numbers<[1], [0], [0], [1], [0, 0, 1, 1], [], []>} : vector<16x4xf32>, vector<4x16xf32>, vector<16x16xf32> -> vector<16x16xf32>
    %17 = arith.addf %15, %16 : vector<16x16xf32>
    %18 = vector.extract_strided_slice %17 {offsets = [0, 0], sizes = [16, 4], strides = [1, 1]} : vector<16x16xf32> to vector<16x4xf32>
    %19 = arith.negf %18 : vector<16x4xf32>
    %20 = math.exp %19 : vector<16x4xf32>
    %cst_12 = arith.constant 1.000000e+00 : f32
    %21 = vector.broadcast %cst_12 : f32 to vector<16x4xf32>
    %22 = arith.addf %21, %20 : vector<16x4xf32>
    %23 = arith.divf %21, %22 : vector<16x4xf32>
    %24 = vector.extract_strided_slice %17 {offsets = [0, 4], sizes = [16, 4], strides = [1, 1]} : vector<16x16xf32> to vector<16x4xf32>
    %25 = arith.negf %24 : vector<16x4xf32>
    %26 = math.exp %25 : vector<16x4xf32>
    %cst_13 = arith.constant 1.000000e+00 : f32
    %27 = vector.broadcast %cst_13 : f32 to vector<16x4xf32>
    %28 = arith.addf %27, %26 : vector<16x4xf32>
    %29 = arith.divf %27, %28 : vector<16x4xf32>
    %30 = vector.extract_strided_slice %17 {offsets = [0, 8], sizes = [16, 4], strides = [1, 1]} : vector<16x16xf32> to vector<16x4xf32>
    %31 = math.tanh %30 : vector<16x4xf32>
    %32 = vector.extract_strided_slice %17 {offsets = [0, 12], sizes = [16, 4], strides = [1, 1]} : vector<16x16xf32> to vector<16x4xf32>
    %33 = arith.negf %32 : vector<16x4xf32>
    %34 = math.exp %33 : vector<16x4xf32>
    %cst_14 = arith.constant 1.000000e+00 : f32
    %35 = vector.broadcast %cst_14 : f32 to vector<16x4xf32>
    %36 = arith.addf %35, %34 : vector<16x4xf32>
    %37 = arith.divf %35, %36 : vector<16x4xf32>
    %38 = arith.mulf %29, %10 : vector<16x4xf32>
    %39 = arith.mulf %23, %31 : vector<16x4xf32>
    %40 = arith.addf %38, %39 : vector<16x4xf32>
    %41 = math.tanh %40 : vector<16x4xf32>
    %42 = arith.mulf %37, %41 : vector<16x4xf32>
    %43 = vector.extract_strided_slice %2 {offsets = [0, 0], sizes = [4, 8], strides = [1, 1]} : vector<16x8xf32> to vector<4x8xf32>
    %cst_15 = arith.constant dense<0.000000e+00> : vector<16x8xf32>
    %44 = tpu.matmul %42, %43, %cst_15 {dimension_numbers = #tpu.dot_dimension_numbers<[1], [0], [0], [1], [0, 0, 1, 1], [], []>} : vector<16x4xf32>, vector<4x8xf32>, vector<16x8xf32> -> vector<16x8xf32>
    %45 = arith.addf %11, %44 : vector<16x8xf32>
    %46 = vector.extract_strided_slice %0 {offsets = [0, 1], sizes = [16, 1], strides = [1, 1]} : vector<16x4xf32> to vector<16x1xf32>
    %47 = vector.broadcast %46 : vector<16x1xf32> to vector<16x16xf32>
    %48 = arith.mulf %47, %5 : vector<16x16xf32>
    %49 = arith.addf %48, %8 : vector<16x16xf32>
    %cst_16 = arith.constant dense<0.000000e+00> : vector<16x16xf32>
    %50 = tpu.matmul %42, %1, %cst_16 {dimension_numbers = #tpu.dot_dimension_numbers<[1], [0], [0], [1], [0, 0, 1, 1], [], []>} : vector<16x4xf32>, vector<4x16xf32>, vector<16x16xf32> -> vector<16x16xf32>
    %51 = arith.addf %49, %50 : vector<16x16xf32>
    %52 = vector.extract_strided_slice %51 {offsets = [0, 0], sizes = [16, 4], strides = [1, 1]} : vector<16x16xf32> to vector<16x4xf32>
    %53 = arith.negf %52 : vector<16x4xf32>
    %54 = math.exp %53 : vector<16x4xf32>
    %cst_17 = arith.constant 1.000000e+00 : f32
    %55 = vector.broadcast %cst_17 : f32 to vector<16x4xf32>
    %56 = arith.addf %55, %54 : vector<16x4xf32>
    %57 = arith.divf %55, %56 : vector<16x4xf32>
    %58 = vector.extract_strided_slice %51 {offsets = [0, 4], sizes = [16, 4], strides = [1, 1]} : vector<16x16xf32> to vector<16x4xf32>
    %59 = arith.negf %58 : vector<16x4xf32>
    %60 = math.exp %59 : vector<16x4xf32>
    %cst_18 = arith.constant 1.000000e+00 : f32
    %61 = vector.broadcast %cst_18 : f32 to vector<16x4xf32>
    %62 = arith.addf %61, %60 : vector<16x4xf32>
    %63 = arith.divf %61, %62 : vector<16x4xf32>
    %64 = vector.extract_strided_slice %51 {offsets = [0, 8], sizes = [16, 4], strides = [1, 1]} : vector<16x16xf32> to vector<16x4xf32>
    %65 = math.tanh %64 : vector<16x4xf32>
    %66 = vector.extract_strided_slice %51 {offsets = [0, 12], sizes = [16, 4], strides = [1, 1]} : vector<16x16xf32> to vector<16x4xf32>
    %67 = arith.negf %66 : vector<16x4xf32>
    %68 = math.exp %67 : vector<16x4xf32>
    %cst_19 = arith.constant 1.000000e+00 : f32
    %69 = vector.broadcast %cst_19 : f32 to vector<16x4xf32>
    %70 = arith.addf %69, %68 : vector<16x4xf32>
    %71 = arith.divf %69, %70 : vector<16x4xf32>
    %72 = arith.mulf %63, %40 : vector<16x4xf32>
    %73 = arith.mulf %57, %65 : vector<16x4xf32>
    %74 = arith.addf %72, %73 : vector<16x4xf32>
    %75 = math.tanh %74 : vector<16x4xf32>
    %76 = arith.mulf %71, %75 : vector<16x4xf32>
    %77 = vector.extract_strided_slice %2 {offsets = [4, 0], sizes = [4, 8], strides = [1, 1]} : vector<16x8xf32> to vector<4x8xf32>
    %cst_20 = arith.constant dense<0.000000e+00> : vector<16x8xf32>
    %78 = tpu.matmul %76, %77, %cst_20 {dimension_numbers = #tpu.dot_dimension_numbers<[1], [0], [0], [1], [0, 0, 1, 1], [], []>} : vector<16x4xf32>, vector<4x8xf32>, vector<16x8xf32> -> vector<16x8xf32>
    %79 = arith.addf %45, %78 : vector<16x8xf32>
    %80 = vector.extract_strided_slice %0 {offsets = [0, 2], sizes = [16, 1], strides = [1, 1]} : vector<16x4xf32> to vector<16x1xf32>
    %81 = vector.broadcast %80 : vector<16x1xf32> to vector<16x16xf32>
    %82 = arith.mulf %81, %5 : vector<16x16xf32>
    %83 = arith.addf %82, %8 : vector<16x16xf32>
    %cst_21 = arith.constant dense<0.000000e+00> : vector<16x16xf32>
    %84 = tpu.matmul %76, %1, %cst_21 {dimension_numbers = #tpu.dot_dimension_numbers<[1], [0], [0], [1], [0, 0, 1, 1], [], []>} : vector<16x4xf32>, vector<4x16xf32>, vector<16x16xf32> -> vector<16x16xf32>
    %85 = arith.addf %83, %84 : vector<16x16xf32>
    %86 = vector.extract_strided_slice %85 {offsets = [0, 0], sizes = [16, 4], strides = [1, 1]} : vector<16x16xf32> to vector<16x4xf32>
    %87 = arith.negf %86 : vector<16x4xf32>
    %88 = math.exp %87 : vector<16x4xf32>
    %cst_22 = arith.constant 1.000000e+00 : f32
    %89 = vector.broadcast %cst_22 : f32 to vector<16x4xf32>
    %90 = arith.addf %89, %88 : vector<16x4xf32>
    %91 = arith.divf %89, %90 : vector<16x4xf32>
    %92 = vector.extract_strided_slice %85 {offsets = [0, 4], sizes = [16, 4], strides = [1, 1]} : vector<16x16xf32> to vector<16x4xf32>
    %93 = arith.negf %92 : vector<16x4xf32>
    %94 = math.exp %93 : vector<16x4xf32>
    %cst_23 = arith.constant 1.000000e+00 : f32
    %95 = vector.broadcast %cst_23 : f32 to vector<16x4xf32>
    %96 = arith.addf %95, %94 : vector<16x4xf32>
    %97 = arith.divf %95, %96 : vector<16x4xf32>
    %98 = vector.extract_strided_slice %85 {offsets = [0, 8], sizes = [16, 4], strides = [1, 1]} : vector<16x16xf32> to vector<16x4xf32>
    %99 = math.tanh %98 : vector<16x4xf32>
    %100 = vector.extract_strided_slice %85 {offsets = [0, 12], sizes = [16, 4], strides = [1, 1]} : vector<16x16xf32> to vector<16x4xf32>
    %101 = arith.negf %100 : vector<16x4xf32>
    %102 = math.exp %101 : vector<16x4xf32>
    %cst_24 = arith.constant 1.000000e+00 : f32
    %103 = vector.broadcast %cst_24 : f32 to vector<16x4xf32>
    %104 = arith.addf %103, %102 : vector<16x4xf32>
    %105 = arith.divf %103, %104 : vector<16x4xf32>
    %106 = arith.mulf %97, %74 : vector<16x4xf32>
    %107 = arith.mulf %91, %99 : vector<16x4xf32>
    %108 = arith.addf %106, %107 : vector<16x4xf32>
    %109 = math.tanh %108 : vector<16x4xf32>
    %110 = arith.mulf %105, %109 : vector<16x4xf32>
    %111 = vector.extract_strided_slice %2 {offsets = [8, 0], sizes = [4, 8], strides = [1, 1]} : vector<16x8xf32> to vector<4x8xf32>
    %cst_25 = arith.constant dense<0.000000e+00> : vector<16x8xf32>
    %112 = tpu.matmul %110, %111, %cst_25 {dimension_numbers = #tpu.dot_dimension_numbers<[1], [0], [0], [1], [0, 0, 1, 1], [], []>} : vector<16x4xf32>, vector<4x8xf32>, vector<16x8xf32> -> vector<16x8xf32>
    %113 = arith.addf %79, %112 : vector<16x8xf32>
    %114 = vector.extract_strided_slice %0 {offsets = [0, 3], sizes = [16, 1], strides = [1, 1]} : vector<16x4xf32> to vector<16x1xf32>
    %115 = vector.broadcast %114 : vector<16x1xf32> to vector<16x16xf32>
    %116 = arith.mulf %115, %5 : vector<16x16xf32>
    %117 = arith.addf %116, %8 : vector<16x16xf32>
    %cst_26 = arith.constant dense<0.000000e+00> : vector<16x16xf32>
    %118 = tpu.matmul %110, %1, %cst_26 {dimension_numbers = #tpu.dot_dimension_numbers<[1], [0], [0], [1], [0, 0, 1, 1], [], []>} : vector<16x4xf32>, vector<4x16xf32>, vector<16x16xf32> -> vector<16x16xf32>
    %119 = arith.addf %117, %118 : vector<16x16xf32>
    %120 = vector.extract_strided_slice %119 {offsets = [0, 0], sizes = [16, 4], strides = [1, 1]} : vector<16x16xf32> to vector<16x4xf32>
    %121 = arith.negf %120 : vector<16x4xf32>
    %122 = math.exp %121 : vector<16x4xf32>
    %cst_27 = arith.constant 1.000000e+00 : f32
    %123 = vector.broadcast %cst_27 : f32 to vector<16x4xf32>
    %124 = arith.addf %123, %122 : vector<16x4xf32>
    %125 = arith.divf %123, %124 : vector<16x4xf32>
    %126 = vector.extract_strided_slice %119 {offsets = [0, 4], sizes = [16, 4], strides = [1, 1]} : vector<16x16xf32> to vector<16x4xf32>
    %127 = arith.negf %126 : vector<16x4xf32>
    %128 = math.exp %127 : vector<16x4xf32>
    %cst_28 = arith.constant 1.000000e+00 : f32
    %129 = vector.broadcast %cst_28 : f32 to vector<16x4xf32>
    %130 = arith.addf %129, %128 : vector<16x4xf32>
    %131 = arith.divf %129, %130 : vector<16x4xf32>
    %132 = vector.extract_strided_slice %119 {offsets = [0, 8], sizes = [16, 4], strides = [1, 1]} : vector<16x16xf32> to vector<16x4xf32>
    %133 = math.tanh %132 : vector<16x4xf32>
    %134 = vector.extract_strided_slice %119 {offsets = [0, 12], sizes = [16, 4], strides = [1, 1]} : vector<16x16xf32> to vector<16x4xf32>
    %135 = arith.negf %134 : vector<16x4xf32>
    %136 = math.exp %135 : vector<16x4xf32>
    %cst_29 = arith.constant 1.000000e+00 : f32
    %137 = vector.broadcast %cst_29 : f32 to vector<16x4xf32>
    %138 = arith.addf %137, %136 : vector<16x4xf32>
    %139 = arith.divf %137, %138 : vector<16x4xf32>
    %140 = arith.mulf %131, %108 : vector<16x4xf32>
    %141 = arith.mulf %125, %133 : vector<16x4xf32>
    %142 = arith.addf %140, %141 : vector<16x4xf32>
    %143 = math.tanh %142 : vector<16x4xf32>
    %144 = arith.mulf %139, %143 : vector<16x4xf32>
    %145 = vector.extract_strided_slice %2 {offsets = [12, 0], sizes = [4, 8], strides = [1, 1]} : vector<16x8xf32> to vector<4x8xf32>
    %cst_30 = arith.constant dense<0.000000e+00> : vector<16x8xf32>
    %146 = tpu.matmul %144, %145, %cst_30 {dimension_numbers = #tpu.dot_dimension_numbers<[1], [0], [0], [1], [0, 0, 1, 1], [], []>} : vector<16x4xf32>, vector<4x8xf32>, vector<16x8xf32> -> vector<16x8xf32>
    %147 = arith.addf %113, %146 : vector<16x8xf32>
    %c0_31 = arith.constant 0 : index
    %c0_32 = arith.constant 0 : index
    %148 = vector.load %arg7[%c0_31, %c0_32] : memref<4x16xf32, #tpu.memory_space<vmem>>, vector<4x16xf32>
    %c0_33 = arith.constant 0 : index
    %c0_34 = arith.constant 0 : index
    %149 = vector.load %arg10[%c0_33, %c0_34] : memref<16x8xf32, #tpu.memory_space<vmem>>, vector<16x8xf32>
    %c0_35 = arith.constant 0 : index
    %c0_36 = arith.constant 0 : index
    %150 = vector.load %arg6[%c0_35, %c0_36] : memref<1x16xf32, #tpu.memory_space<vmem>>, vector<1x16xf32>
    %151 = vector.shape_cast %150 : vector<1x16xf32> to vector<1x16xf32>
    %152 = vector.broadcast %151 : vector<1x16xf32> to vector<16x16xf32>
    %c0_37 = arith.constant 0 : index
    %c0_38 = arith.constant 0 : index
    %153 = vector.load %arg8[%c0_37, %c0_38] : memref<1x16xf32, #tpu.memory_space<vmem>>, vector<1x16xf32>
    %154 = vector.shape_cast %153 : vector<1x16xf32> to vector<1x16xf32>
    %155 = vector.broadcast %154 : vector<1x16xf32> to vector<16x16xf32>
    %cst_39 = arith.constant 0.000000e+00 : f32
    %156 = vector.broadcast %cst_39 : f32 to vector<16x4xf32>
    %cst_40 = arith.constant 0.000000e+00 : f32
    %157 = vector.broadcast %cst_40 : f32 to vector<16x4xf32>
    %cst_41 = arith.constant 0.000000e+00 : f32
    %158 = vector.broadcast %cst_41 : f32 to vector<16x8xf32>
    %159 = vector.extract_strided_slice %0 {offsets = [0, 3], sizes = [16, 1], strides = [1, 1]} : vector<16x4xf32> to vector<16x1xf32>
    %160 = vector.broadcast %159 : vector<16x1xf32> to vector<16x16xf32>
    %161 = arith.mulf %160, %152 : vector<16x16xf32>
    %162 = arith.addf %161, %155 : vector<16x16xf32>
    %cst_42 = arith.constant dense<0.000000e+00> : vector<16x16xf32>
    %163 = tpu.matmul %156, %148, %cst_42 {dimension_numbers = #tpu.dot_dimension_numbers<[1], [0], [0], [1], [0, 0, 1, 1], [], []>} : vector<16x4xf32>, vector<4x16xf32>, vector<16x16xf32> -> vector<16x16xf32>
    %164 = arith.addf %162, %163 : vector<16x16xf32>
    %165 = vector.extract_strided_slice %164 {offsets = [0, 0], sizes = [16, 4], strides = [1, 1]} : vector<16x16xf32> to vector<16x4xf32>
    %166 = arith.negf %165 : vector<16x4xf32>
    %167 = math.exp %166 : vector<16x4xf32>
    %cst_43 = arith.constant 1.000000e+00 : f32
    %168 = vector.broadcast %cst_43 : f32 to vector<16x4xf32>
    %169 = arith.addf %168, %167 : vector<16x4xf32>
    %170 = arith.divf %168, %169 : vector<16x4xf32>
    %171 = vector.extract_strided_slice %164 {offsets = [0, 4], sizes = [16, 4], strides = [1, 1]} : vector<16x16xf32> to vector<16x4xf32>
    %172 = arith.negf %171 : vector<16x4xf32>
    %173 = math.exp %172 : vector<16x4xf32>
    %cst_44 = arith.constant 1.000000e+00 : f32
    %174 = vector.broadcast %cst_44 : f32 to vector<16x4xf32>
    %175 = arith.addf %174, %173 : vector<16x4xf32>
    %176 = arith.divf %174, %175 : vector<16x4xf32>
    %177 = vector.extract_strided_slice %164 {offsets = [0, 8], sizes = [16, 4], strides = [1, 1]} : vector<16x16xf32> to vector<16x4xf32>
    %178 = math.tanh %177 : vector<16x4xf32>
    %179 = vector.extract_strided_slice %164 {offsets = [0, 12], sizes = [16, 4], strides = [1, 1]} : vector<16x16xf32> to vector<16x4xf32>
    %180 = arith.negf %179 : vector<16x4xf32>
    %181 = math.exp %180 : vector<16x4xf32>
    %cst_45 = arith.constant 1.000000e+00 : f32
    %182 = vector.broadcast %cst_45 : f32 to vector<16x4xf32>
    %183 = arith.addf %182, %181 : vector<16x4xf32>
    %184 = arith.divf %182, %183 : vector<16x4xf32>
    %185 = arith.mulf %176, %157 : vector<16x4xf32>
    %186 = arith.mulf %170, %178 : vector<16x4xf32>
    %187 = arith.addf %185, %186 : vector<16x4xf32>
    %188 = math.tanh %187 : vector<16x4xf32>
    %189 = arith.mulf %184, %188 : vector<16x4xf32>
    %190 = vector.extract_strided_slice %149 {offsets = [12, 0], sizes = [4, 8], strides = [1, 1]} : vector<16x8xf32> to vector<4x8xf32>
    %cst_46 = arith.constant dense<0.000000e+00> : vector<16x8xf32>
    %191 = tpu.matmul %189, %190, %cst_46 {dimension_numbers = #tpu.dot_dimension_numbers<[1], [0], [0], [1], [0, 0, 1, 1], [], []>} : vector<16x4xf32>, vector<4x8xf32>, vector<16x8xf32> -> vector<16x8xf32>
    %192 = arith.addf %158, %191 : vector<16x8xf32>
    %193 = vector.extract_strided_slice %0 {offsets = [0, 2], sizes = [16, 1], strides = [1, 1]} : vector<16x4xf32> to vector<16x1xf32>
    %194 = vector.broadcast %193 : vector<16x1xf32> to vector<16x16xf32>
    %195 = arith.mulf %194, %152 : vector<16x16xf32>
    %196 = arith.addf %195, %155 : vector<16x16xf32>
    %cst_47 = arith.constant dense<0.000000e+00> : vector<16x16xf32>
    %197 = tpu.matmul %189, %148, %cst_47 {dimension_numbers = #tpu.dot_dimension_numbers<[1], [0], [0], [1], [0, 0, 1, 1], [], []>} : vector<16x4xf32>, vector<4x16xf32>, vector<16x16xf32> -> vector<16x16xf32>
    %198 = arith.addf %196, %197 : vector<16x16xf32>
    %199 = vector.extract_strided_slice %198 {offsets = [0, 0], sizes = [16, 4], strides = [1, 1]} : vector<16x16xf32> to vector<16x4xf32>
    %200 = arith.negf %199 : vector<16x4xf32>
    %201 = math.exp %200 : vector<16x4xf32>
    %cst_48 = arith.constant 1.000000e+00 : f32
    %202 = vector.broadcast %cst_48 : f32 to vector<16x4xf32>
    %203 = arith.addf %202, %201 : vector<16x4xf32>
    %204 = arith.divf %202, %203 : vector<16x4xf32>
    %205 = vector.extract_strided_slice %198 {offsets = [0, 4], sizes = [16, 4], strides = [1, 1]} : vector<16x16xf32> to vector<16x4xf32>
    %206 = arith.negf %205 : vector<16x4xf32>
    %207 = math.exp %206 : vector<16x4xf32>
    %cst_49 = arith.constant 1.000000e+00 : f32
    %208 = vector.broadcast %cst_49 : f32 to vector<16x4xf32>
    %209 = arith.addf %208, %207 : vector<16x4xf32>
    %210 = arith.divf %208, %209 : vector<16x4xf32>
    %211 = vector.extract_strided_slice %198 {offsets = [0, 8], sizes = [16, 4], strides = [1, 1]} : vector<16x16xf32> to vector<16x4xf32>
    %212 = math.tanh %211 : vector<16x4xf32>
    %213 = vector.extract_strided_slice %198 {offsets = [0, 12], sizes = [16, 4], strides = [1, 1]} : vector<16x16xf32> to vector<16x4xf32>
    %214 = arith.negf %213 : vector<16x4xf32>
    %215 = math.exp %214 : vector<16x4xf32>
    %cst_50 = arith.constant 1.000000e+00 : f32
    %216 = vector.broadcast %cst_50 : f32 to vector<16x4xf32>
    %217 = arith.addf %216, %215 : vector<16x4xf32>
    %218 = arith.divf %216, %217 : vector<16x4xf32>
    %219 = arith.mulf %210, %187 : vector<16x4xf32>
    %220 = arith.mulf %204, %212 : vector<16x4xf32>
    %221 = arith.addf %219, %220 : vector<16x4xf32>
    %222 = math.tanh %221 : vector<16x4xf32>
    %223 = arith.mulf %218, %222 : vector<16x4xf32>
    %224 = vector.extract_strided_slice %149 {offsets = [8, 0], sizes = [4, 8], strides = [1, 1]} : vector<16x8xf32> to vector<4x8xf32>
    %cst_51 = arith.constant dense<0.000000e+00> : vector<16x8xf32>
    %225 = tpu.matmul %223, %224, %cst_51 {dimension_numbers = #tpu.dot_dimension_numbers<[1], [0], [0], [1], [0, 0, 1, 1], [], []>} : vector<16x4xf32>, vector<4x8xf32>, vector<16x8xf32> -> vector<16x8xf32>
    %226 = arith.addf %192, %225 : vector<16x8xf32>
    %227 = vector.extract_strided_slice %0 {offsets = [0, 1], sizes = [16, 1], strides = [1, 1]} : vector<16x4xf32> to vector<16x1xf32>
    %228 = vector.broadcast %227 : vector<16x1xf32> to vector<16x16xf32>
    %229 = arith.mulf %228, %152 : vector<16x16xf32>
    %230 = arith.addf %229, %155 : vector<16x16xf32>
    %cst_52 = arith.constant dense<0.000000e+00> : vector<16x16xf32>
    %231 = tpu.matmul %223, %148, %cst_52 {dimension_numbers = #tpu.dot_dimension_numbers<[1], [0], [0], [1], [0, 0, 1, 1], [], []>} : vector<16x4xf32>, vector<4x16xf32>, vector<16x16xf32> -> vector<16x16xf32>
    %232 = arith.addf %230, %231 : vector<16x16xf32>
    %233 = vector.extract_strided_slice %232 {offsets = [0, 0], sizes = [16, 4], strides = [1, 1]} : vector<16x16xf32> to vector<16x4xf32>
    %234 = arith.negf %233 : vector<16x4xf32>
    %235 = math.exp %234 : vector<16x4xf32>
    %cst_53 = arith.constant 1.000000e+00 : f32
    %236 = vector.broadcast %cst_53 : f32 to vector<16x4xf32>
    %237 = arith.addf %236, %235 : vector<16x4xf32>
    %238 = arith.divf %236, %237 : vector<16x4xf32>
    %239 = vector.extract_strided_slice %232 {offsets = [0, 4], sizes = [16, 4], strides = [1, 1]} : vector<16x16xf32> to vector<16x4xf32>
    %240 = arith.negf %239 : vector<16x4xf32>
    %241 = math.exp %240 : vector<16x4xf32>
    %cst_54 = arith.constant 1.000000e+00 : f32
    %242 = vector.broadcast %cst_54 : f32 to vector<16x4xf32>
    %243 = arith.addf %242, %241 : vector<16x4xf32>
    %244 = arith.divf %242, %243 : vector<16x4xf32>
    %245 = vector.extract_strided_slice %232 {offsets = [0, 8], sizes = [16, 4], strides = [1, 1]} : vector<16x16xf32> to vector<16x4xf32>
    %246 = math.tanh %245 : vector<16x4xf32>
    %247 = vector.extract_strided_slice %232 {offsets = [0, 12], sizes = [16, 4], strides = [1, 1]} : vector<16x16xf32> to vector<16x4xf32>
    %248 = arith.negf %247 : vector<16x4xf32>
    %249 = math.exp %248 : vector<16x4xf32>
    %cst_55 = arith.constant 1.000000e+00 : f32
    %250 = vector.broadcast %cst_55 : f32 to vector<16x4xf32>
    %251 = arith.addf %250, %249 : vector<16x4xf32>
    %252 = arith.divf %250, %251 : vector<16x4xf32>
    %253 = arith.mulf %244, %221 : vector<16x4xf32>
    %254 = arith.mulf %238, %246 : vector<16x4xf32>
    %255 = arith.addf %253, %254 : vector<16x4xf32>
    %256 = math.tanh %255 : vector<16x4xf32>
    %257 = arith.mulf %252, %256 : vector<16x4xf32>
    %258 = vector.extract_strided_slice %149 {offsets = [4, 0], sizes = [4, 8], strides = [1, 1]} : vector<16x8xf32> to vector<4x8xf32>
    %cst_56 = arith.constant dense<0.000000e+00> : vector<16x8xf32>
    %259 = tpu.matmul %257, %258, %cst_56 {dimension_numbers = #tpu.dot_dimension_numbers<[1], [0], [0], [1], [0, 0, 1, 1], [], []>} : vector<16x4xf32>, vector<4x8xf32>, vector<16x8xf32> -> vector<16x8xf32>
    %260 = arith.addf %226, %259 : vector<16x8xf32>
    %261 = vector.extract_strided_slice %0 {offsets = [0, 0], sizes = [16, 1], strides = [1, 1]} : vector<16x4xf32> to vector<16x1xf32>
    %262 = vector.broadcast %261 : vector<16x1xf32> to vector<16x16xf32>
    %263 = arith.mulf %262, %152 : vector<16x16xf32>
    %264 = arith.addf %263, %155 : vector<16x16xf32>
    %cst_57 = arith.constant dense<0.000000e+00> : vector<16x16xf32>
    %265 = tpu.matmul %257, %148, %cst_57 {dimension_numbers = #tpu.dot_dimension_numbers<[1], [0], [0], [1], [0, 0, 1, 1], [], []>} : vector<16x4xf32>, vector<4x16xf32>, vector<16x16xf32> -> vector<16x16xf32>
    %266 = arith.addf %264, %265 : vector<16x16xf32>
    %267 = vector.extract_strided_slice %266 {offsets = [0, 0], sizes = [16, 4], strides = [1, 1]} : vector<16x16xf32> to vector<16x4xf32>
    %268 = arith.negf %267 : vector<16x4xf32>
    %269 = math.exp %268 : vector<16x4xf32>
    %cst_58 = arith.constant 1.000000e+00 : f32
    %270 = vector.broadcast %cst_58 : f32 to vector<16x4xf32>
    %271 = arith.addf %270, %269 : vector<16x4xf32>
    %272 = arith.divf %270, %271 : vector<16x4xf32>
    %273 = vector.extract_strided_slice %266 {offsets = [0, 4], sizes = [16, 4], strides = [1, 1]} : vector<16x16xf32> to vector<16x4xf32>
    %274 = arith.negf %273 : vector<16x4xf32>
    %275 = math.exp %274 : vector<16x4xf32>
    %cst_59 = arith.constant 1.000000e+00 : f32
    %276 = vector.broadcast %cst_59 : f32 to vector<16x4xf32>
    %277 = arith.addf %276, %275 : vector<16x4xf32>
    %278 = arith.divf %276, %277 : vector<16x4xf32>
    %279 = vector.extract_strided_slice %266 {offsets = [0, 8], sizes = [16, 4], strides = [1, 1]} : vector<16x16xf32> to vector<16x4xf32>
    %280 = math.tanh %279 : vector<16x4xf32>
    %281 = vector.extract_strided_slice %266 {offsets = [0, 12], sizes = [16, 4], strides = [1, 1]} : vector<16x16xf32> to vector<16x4xf32>
    %282 = arith.negf %281 : vector<16x4xf32>
    %283 = math.exp %282 : vector<16x4xf32>
    %cst_60 = arith.constant 1.000000e+00 : f32
    %284 = vector.broadcast %cst_60 : f32 to vector<16x4xf32>
    %285 = arith.addf %284, %283 : vector<16x4xf32>
    %286 = arith.divf %284, %285 : vector<16x4xf32>
    %287 = arith.mulf %278, %255 : vector<16x4xf32>
    %288 = arith.mulf %272, %280 : vector<16x4xf32>
    %289 = arith.addf %287, %288 : vector<16x4xf32>
    %290 = math.tanh %289 : vector<16x4xf32>
    %291 = arith.mulf %286, %290 : vector<16x4xf32>
    %292 = vector.extract_strided_slice %149 {offsets = [0, 0], sizes = [4, 8], strides = [1, 1]} : vector<16x8xf32> to vector<4x8xf32>
    %cst_61 = arith.constant dense<0.000000e+00> : vector<16x8xf32>
    %293 = tpu.matmul %291, %292, %cst_61 {dimension_numbers = #tpu.dot_dimension_numbers<[1], [0], [0], [1], [0, 0, 1, 1], [], []>} : vector<16x4xf32>, vector<4x8xf32>, vector<16x8xf32> -> vector<16x8xf32>
    %294 = arith.addf %260, %293 : vector<16x8xf32>
    %295 = arith.addf %147, %294 : vector<16x8xf32>
    %c0_62 = arith.constant 0 : index
    %c0_63 = arith.constant 0 : index
    %296 = vector.load %arg11[%c0_62, %c0_63] : memref<1x8xf32, #tpu.memory_space<vmem>>, vector<1x8xf32>
    %297 = vector.broadcast %296 : vector<1x8xf32> to vector<16x8xf32>
    %298 = arith.addf %295, %297 : vector<16x8xf32>
    %c0_64 = arith.constant 0 : index
    %c0_65 = arith.constant 0 : index
    %299 = vector.load %arg2[%c0_64, %c0_65] : memref<16x8xf32, #tpu.memory_space<vmem>>, vector<16x8xf32>
    %cst_66 = arith.constant 0.699999988 : f32
    %300 = vector.broadcast %cst_66 : f32 to vector<16x8xf32>
    %301 = arith.mulf %300, %299 : vector<16x8xf32>
    %cst_67 = arith.constant 3.000000e-01 : f32
    %302 = vector.broadcast %cst_67 : f32 to vector<16x8xf32>
    %303 = arith.mulf %302, %298 : vector<16x8xf32>
    %304 = arith.addf %301, %303 : vector<16x8xf32>
    %c0_68 = arith.constant 0 : index
    %c0_69 = arith.constant 0 : index
    %305 = vector.load %arg12[%c0_68, %c0_69] : memref<16x8xf32, #tpu.memory_space<vmem>>, vector<16x8xf32>
    tpu.vector_store %arg12[%c0_68, %c0_69], %304 {strides = array<i32>} : memref<16x8xf32, #tpu.memory_space<vmem>>, vector<16x8xf32>,
    return
  }
  func.func @transform_0(%arg0: i32) -> (i32, i32) {
    %c0_i32 = arith.constant 0 : i32
    %c0_i32_0 = arith.constant 0 : i32
    return %arg0, %c0_i32 : i32, i32
  }
  func.func @transform_1(%arg0: i32) -> (i32, i32) {
    %c0_i32 = arith.constant 0 : i32
    %c0_i32_0 = arith.constant 0 : i32
    return %arg0, %c0_i32 : i32, i32
  }
  func.func @transform_2(%arg0: i32) -> (i32, i32) {
    %c0_i32 = arith.constant 0 : i32
    %c0_i32_0 = arith.constant 0 : i32
    %c0_i32_1 = arith.constant 0 : i32
    return %c0_i32, %c0_i32_0 : i32, i32
  }
  func.func @transform_3(%arg0: i32) -> (i32, i32) {
    %c0_i32 = arith.constant 0 : i32
    %c0_i32_0 = arith.constant 0 : i32
    %c0_i32_1 = arith.constant 0 : i32
    return %c0_i32, %c0_i32_0 : i32, i32
  }
  func.func @transform_4(%arg0: i32) -> (i32, i32) {
    %c0_i32 = arith.constant 0 : i32
    %c0_i32_0 = arith.constant 0 : i32
    %c0_i32_1 = arith.constant 0 : i32
    return %c0_i32, %c0_i32_0 : i32, i32
  }
  func.func @transform_5(%arg0: i32) -> (i32, i32) {
    %c0_i32 = arith.constant 0 : i32
    %c0_i32_0 = arith.constant 0 : i32
    %c0_i32_1 = arith.constant 0 : i32
    return %c0_i32, %c0_i32_0 : i32, i32
  }
  func.func @transform_6(%arg0: i32) -> (i32, i32) {
    %c0_i32 = arith.constant 0 : i32
    %c0_i32_0 = arith.constant 0 : i32
    %c0_i32_1 = arith.constant 0 : i32
    return %c0_i32, %c0_i32_0 : i32, i32
  }
  func.func @transform_7(%arg0: i32) -> (i32, i32) {
    %c0_i32 = arith.constant 0 : i32
    %c0_i32_0 = arith.constant 0 : i32
    %c0_i32_1 = arith.constant 0 : i32
    return %c0_i32, %c0_i32_0 : i32, i32
  }
  func.func @transform_8(%arg0: i32) -> (i32, i32) {
    %c0_i32 = arith.constant 0 : i32
    %c0_i32_0 = arith.constant 0 : i32
    %c0_i32_1 = arith.constant 0 : i32
    return %c0_i32, %c0_i32_0 : i32, i32
  }
  func.func @transform_9(%arg0: i32) -> (i32, i32) {
    %c0_i32 = arith.constant 0 : i32
    %c0_i32_0 = arith.constant 0 : i32
    %c0_i32_1 = arith.constant 0 : i32
    return %c0_i32, %c0_i32_0 : i32, i32
  }
  func.func @transform_10(%arg0: i32) -> (i32, i32) {
    %c0_i32 = arith.constant 0 : i32
    %c0_i32_0 = arith.constant 0 : i32
    %c0_i32_1 = arith.constant 0 : i32
    return %c0_i32, %c0_i32_0 : i32, i32
  }
  func.func @transform_11(%arg0: i32) -> (i32, i32) {
    %c0_i32 = arith.constant 0 : i32
    %c0_i32_0 = arith.constant 0 : i32
    return %arg0, %c0_i32 : i32, i32
  }
}

</mosaic_0001>

<llo_original>
// kernel: forward.3
$region0: #{forward.3}
  #allocation0 [shape = 'u32[]', space=smem, size = 0x4, offset = 0x4, fixed_abs, tag = 'smem constant byte address 0x4 - core index']
  #allocation1 [shape = 'u32[72,128]{1,0:T(1,128)}', space=vmem, size = 0x9000, scoped, tag = 'internal scratch']
  %s0 = inlined_call_operand.vmem [shape: f32[16,8], index: 0, kind: input, shape index: {}]
  %s1 = inlined_call_operand.vmem [shape: f32[8,64], index: 1, kind: input, shape index: {}]
  %s2 = inlined_call_operand.vmem [shape: f32[16,64], index: 2, kind: input, shape index: {}]
  %s3 = inlined_call_operand.vmem [shape: f32[1,64], index: 3, kind: input, shape index: {}]
  %s4 = inlined_call_operand.vmem [shape: f32[16,64], index: 4, kind: input, shape index: {}]
  %s5 = inlined_call_operand.vmem [shape: f32[16,64], index: 5, kind: input, shape index: {}]
  %s6 = inlined_call_operand.vmem [shape: f32[1,64], index: 6, kind: input, shape index: {}]
  %s7 = inlined_call_operand.vmem [shape: f32[16,16], index: 7, kind: input, shape index: {}]
  %s8 = inlined_call_operand.vmem [shape: f32[1,16], index: 8, kind: input, shape index: {}]
  %s9 = inlined_call_operand.hbm [shape: f32[2,16], index: 9, kind: output, shape index: {}]
  %s10 = sld [smem:[#allocation0]]
  $region46: #{forward.3} parent=0
    _
  %s12 = ssub.s32 1, %s10
  %s13 = scalar_select 0, %s12, %s10
  $region1: #{forward.3} parent=0
    #allocation2 [shape = 'u8[1024]{0}', space=vmem, size = 0x400, scoped, tag = 'output window, operand 0, single buffered']
    #allocation3 [shape = 's32[1]{0}', space=sflag, size = 0x4, scoped, tag = 'scoped memory for forward.3']
    %14 = vsyncpa [#allocation3], 0
    // Predicated region
    $region2: #{forward.3} parent=1 // pred_check
      _
    $region3: #{forward.3} parent=1 // pred_check_branch
      %16 = sbr.rel (0) target = $region5
    $region4: #{forward.3} parent=1 // pred_region
      _
    $region5: #{forward.3} parent=1 // pred_fallthru
      _
    // Predicated region
    $region6: #{forward.3} parent=1 // pred_check
      _
    $region7: #{forward.3} parent=1 // pred_check_branch
      %18 = sbr.rel (0) target = $region9
    $region8: #{forward.3} parent=1 // pred_region
      _
    $region9: #{forward.3} parent=1 // pred_fallthru
      _
    // Predicated region
    $region10: #{forward.3} parent=1 // pred_check
      _
    $region11: #{forward.3} parent=1 // pred_check_branch
      %20 = sbr.rel (0) target = $region13
    $region12: #{forward.3} parent=1 // pred_region
      _
    $region13: #{forward.3} parent=1 // pred_fallthru
      _
    // Predicated region
    $region14: #{forward.3} parent=1 // pred_check
      _
    $region15: #{forward.3} parent=1 // pred_check_branch
      %22 = sbr.rel (0) target = $region17
    $region16: #{forward.3} parent=1 // pred_region
      _
    $region17: #{forward.3} parent=1 // pred_fallthru
      _
    // Predicated region
    $region18: #{forward.3} parent=1 // pred_check
      _
    $region19: #{forward.3} parent=1 // pred_check_branch
      %24 = sbr.rel (0) target = $region21
    $region20: #{forward.3} parent=1 // pred_region
      _
    $region21: #{forward.3} parent=1 // pred_fallthru
      _
    // Predicated region
    $region22: #{forward.3} parent=1 // pred_check
      _
    $region23: #{forward.3} parent=1 // pred_check_branch
      %26 = sbr.rel (0) target = $region25
    $region24: #{forward.3} parent=1 // pred_region
      _
    $region25: #{forward.3} parent=1 // pred_fallthru
      _
    // Predicated region
    $region26: #{forward.3} parent=1 // pred_check
      _
    $region27: #{forward.3} parent=1 // pred_check_branch
      %28 = sbr.rel (0) target = $region29
    $region28: #{forward.3} parent=1 // pred_region
      _
    $region29: #{forward.3} parent=1 // pred_fallthru
      _
    // Predicated region
    $region30: #{forward.3} parent=1 // pred_check
      _
    $region31: #{forward.3} parent=1 // pred_check_branch
      %30 = sbr.rel (0) target = $region33
    $region32: #{forward.3} parent=1 // pred_region
      _
    $region33: #{forward.3} parent=1 // pred_fallthru
      _
    // Predicated region
    $region34: #{forward.3} parent=1 // pred_check
      _
    $region35: #{forward.3} parent=1 // pred_check_branch
      %32 = sbr.rel (0) target = $region37
    $region36: #{forward.3} parent=1 // pred_region
      _
    $region37: #{forward.3} parent=1 // pred_fallthru
      _
    %v33 = vld [vmem:[%s0] sm:$0xff]
    %v34 = vld [vmem:[%s0 + $0x8] sm:$0xff]
    %v35 = vld [vmem:[%s1] sm:$0xff]
    %v36 = vld [vmem:[%s3] sm:$0x1]
    %v38 = vperm.slane %v36, 0
    %vm40 = vcmask 64512
    %v42 = vsel %vm40, %v33, 0
    %v45 = vsel %vm40, %v34, 0
    %47 = vmatpush.msra.mxu0 0.0
    %48 = vmatpush.msra.mxu0 0.0
    %49 = vmatpush.msra.mxu0 0.0
    %50 = vmatpush.msra.mxu0 0.0
    %51 = vmatpush.msra.mxu0 0.0
    %52 = vmatpush.msra.mxu0 0.0
    %53 = vmatpush.msra.mxu0 0.0
    %54 = vmatpush.msra.mxu0 0.0
    %55 = vmatpush.msra.mxu0 0.0
    %56 = vmatpush.msra.mxu0 0.0
    %57 = vmatpush.msra.mxu0 0.0
    %58 = vmatpush.msra.mxu0 0.0
    %59 = vmatpush.msra.mxu0 0.0
    %60 = vmatpush.msra.mxu0 0.0
    %61 = vmatpush.msra.mxu0 0.0
    %62 = vmatpush.msra.mxu0 %v35
    %63 = vmatmul.f32.gmra.mxu0 %v42
    %v64 = vpop.f32.mrf.mxu0
    %v65 = vadd.f32 %v38, %v64
    %66 = vmatmul.f32.gmra.mxu0 %v45
    %v67 = vpop.f32.mrf.mxu0
    %v68 = vadd.f32 %v38, %v67
    %69 = vdwg.mxu0
    %v70 = vld [vmem:[%s2] sm:$0xff]
    %v71 = vld [vmem:[%s2 + $0x8] sm:$0xff]
    %v72 = vld [vmem:[%s4] sm:$0xff]
    %v73 = vld [vmem:[%s4 + $0x8] sm:$0xff]
    %v74 = vld [vmem:[%s5] sm:$0xff]
    %v75 = vld [vmem:[%s5 + $0x8] sm:$0xff]
    %v76 = vld [vmem:[%s6] sm:$0x1]
    %v78 = vperm.slane %v76, 0
    %vm80 = vcmask 130048
    %v82 = vsel %vm80, 0.0, 0
    %84 = vmatpush.msra.mxu0 0.0
    %85 = vmatpush.msra.mxu0 0.0
    %86 = vmatpush.msra.mxu0 0.0
    %87 = vmatpush.msra.mxu0 0.0
    %88 = vmatpush.msra.mxu0 0.0
    %89 = vmatpush.msra.mxu0 0.0
    %90 = vmatpush.msra.mxu0 0.0
    %91 = vmatpush.msra.mxu0 0.0
    %92 = vmatpush.msra.mxu0 0.0
    %93 = vmatpush.msra.mxu0 0.0
    %94 = vmatpush.msra.mxu0 0.0
    %95 = vmatpush.msra.mxu0 0.0
    %96 = vmatpush.msra.mxu0 0.0
    %97 = vmatpush.msra.mxu0 0.0
    %98 = vmatpush.msra.mxu0 %v71
    %99 = vmatpush.msra.mxu0 %v70
    %100 = vmatmul.f32.gmra.mxu0 %v82
    %v101 = vpop.f32.mrf.mxu0
    %v102 = vadd.f32 0.0, %v101
    %103 = vdwg.mxu0
    %v104 = vadd.f32 %v65, %v102
    %v105 = vxor.u32 %v104, 2147483648
    %v106 = vmul.f32 %v105, 1.442695
    %v107 = vpow.pop %v106
    %v108 = vadd.f32 %v107, 1.0
    %v109 = vrcp.pop %v108
    %v110 = vmul.f32 %v108, %v109
    %v111 = vsub.f32 1.0, %v110
    %v112 = vmul.f32 %v109, %v111
    %v113 = vadd.f32 %v109, %v112
    %vm114 = vweird.f32 %v108
    %vm115 = vweird.f32 %v109
    %vm116 = vmor %vm114, %vm115
    %v117 = vsel %vm116, %v109, %v113
    %v118 = vand.u32 2147483647, %v108
    %vm119 = vcmp.eq.f32.partialorder %v118, 8.507059e+37
    %v120 = vand.u32 %v108, 2147483648
    %v121 = vor.u32 1.1754944e-38, %v120
    %v122 = vsel %vm119, %v121, %v117
    %v123 = vmul.f32 1.0, %v122
    %v124 = vtanh.pop %v104
    %v125 = vmul.f32 %v123, 0.0
    %127 = vrot.lane.b32.xlu0 %v124, 96
    %v128 = vpop.permute.xlu0 %127
    %v130 = vmul.f32 %v123, %v128
    %132 = vrot.lane.b32.xlu0 %v130, 16
    %v133 = vpop.permute.xlu0 %132
    %v135 = vadd.f32 %v125, %v133
    %v136 = vtanh.pop %v135
    %138 = vrot.lane.b32.xlu0 %v136, 32
    %v139 = vpop.permute.xlu0 %138
    %v141 = vmul.f32 %v123, %v139
    %143 = vrot.lane.b32.xlu0 %v141, 80
    %v144 = vpop.permute.xlu0 %143
    %v145 = vsel %vm80, %v144, 0
    %147 = vmatpush.msra.mxu0 0.0
    %148 = vmatpush.msra.mxu0 0.0
    %149 = vmatpush.msra.mxu0 0.0
    %150 = vmatpush.msra.mxu0 0.0
    %151 = vmatpush.msra.mxu0 0.0
    %152 = vmatpush.msra.mxu0 0.0
    %153 = vmatpush.msra.mxu0 0.0
    %154 = vmatpush.msra.mxu0 0.0
    %155 = vmatpush.msra.mxu0 0.0
    %156 = vmatpush.msra.mxu0 0.0
    %157 = vmatpush.msra.mxu0 0.0
    %158 = vmatpush.msra.mxu0 0.0
    %159 = vmatpush.msra.mxu0 0.0
    %160 = vmatpush.msra.mxu0 0.0
    %161 = vmatpush.msra.mxu0 %v73
    %162 = vmatpush.msra.mxu0 %v72
    %163 = vmatmul.f32.gmra.mxu0 %v145
    %v164 = vpop.f32.mrf.mxu0
    %v165 = vadd.f32 %v78, %v164
    %166 = vdwg.mxu0
    %167 = vmatpush.msra.mxu0 0.0
    %168 = vmatpush.msra.mxu0 0.0
    %169 = vmatpush.msra.mxu0 0.0
    %170 = vmatpush.msra.mxu0 0.0
    %171 = vmatpush.msra.mxu0 0.0
    %172 = vmatpush.msra.mxu0 0.0
    %173 = vmatpush.msra.mxu0 0.0
    %174 = vmatpush.msra.mxu0 0.0
    %175 = vmatpush.msra.mxu0 0.0
    %176 = vmatpush.msra.mxu0 0.0
    %177 = vmatpush.msra.mxu0 0.0
    %178 = vmatpush.msra.mxu0 0.0
    %179 = vmatpush.msra.mxu0 0.0
    %180 = vmatpush.msra.mxu0 0.0
    %181 = vmatpush.msra.mxu0 %v75
    %182 = vmatpush.msra.mxu0 %v74
    %183 = vmatmul.f32.gmra.mxu0 %v82
    %v184 = vpop.f32.mrf.mxu0
    %v185 = vadd.f32 0.0, %v184
    %186 = vdwg.mxu0
    %v187 = vadd.f32 %v165, %v185
    %v188 = vxor.u32 %v187, 2147483648
    %v189 = vmul.f32 %v188, 1.442695
    %v190 = vpow.pop %v189
    %v191 = vadd.f32 %v190, 1.0
    %v192 = vrcp.pop %v191
    %v193 = vmul.f32 %v191, %v192
    %v194 = vsub.f32 1.0, %v193
    %v195 = vmul.f32 %v192, %v194
    %v196 = vadd.f32 %v192, %v195
    %vm197 = vweird.f32 %v191
    %vm198 = vweird.f32 %v192
    %vm199 = vmor %vm197, %vm198
    %v200 = vsel %vm199, %v192, %v196
    %v201 = vand.u32 2147483647, %v191
    %vm202 = vcmp.eq.f32.partialorder %v201, 8.507059e+37
    %v203 = vand.u32 %v191, 2147483648
    %v204 = vor.u32 1.1754944e-38, %v203
    %v205 = vsel %vm202, %v204, %v200
    %v206 = vmul.f32 1.0, %v205
    %v207 = vtanh.pop %v187
    %v208 = vmul.f32 %v206, 0.0
    %210 = vrot.lane.b32.xlu0 %v207, 96
    %v211 = vpop.permute.xlu0 %210
    %v213 = vmul.f32 %v206, %v211
    %215 = vrot.lane.b32.xlu0 %v213, 16
    %v216 = vpop.permute.xlu0 %215
    %v218 = vadd.f32 %v208, %v216
    %v219 = vtanh.pop %v218
    %221 = vrot.lane.b32.xlu0 %v219, 32
    %v222 = vpop.permute.xlu0 %221
    %v224 = vmul.f32 %v206, %v222
    %225 = vmatpush.msra.mxu0 0.0
    %226 = vmatpush.msra.mxu0 0.0
    %227 = vmatpush.msra.mxu0 0.0
    %228 = vmatpush.msra.mxu0 0.0
    %229 = vmatpush.msra.mxu0 0.0
    %230 = vmatpush.msra.mxu0 0.0
    %231 = vmatpush.msra.mxu0 0.0
    %232 = vmatpush.msra.mxu0 0.0
    %233 = vmatpush.msra.mxu0 0.0
    %234 = vmatpush.msra.mxu0 0.0
    %235 = vmatpush.msra.mxu0 0.0
    %236 = vmatpush.msra.mxu0 0.0
    %237 = vmatpush.msra.mxu0 0.0
    %238 = vmatpush.msra.mxu0 0.0
    %239 = vmatpush.msra.mxu0 %v71
    %240 = vmatpush.msra.mxu0 %v70
    %241 = vmatmul.f32.gmra.mxu0 %v145
    %v242 = vpop.f32.mrf.mxu0
    %v243 = vadd.f32 0.0, %v242
    %244 = vdwg.mxu0
    %v246 = vrot.slane %v243, 6
    %v248 = vadd.f32 %v65, %v246
    %v249 = vxor.u32 %v248, 2147483648
    %v250 = vmul.f32 %v249, 1.442695
    %v251 = vpow.pop %v250
    %v252 = vadd.f32 %v251, 1.0
    %v253 = vrcp.pop %v252
    %v254 = vmul.f32 %v252, %v253
    %v255 = vsub.f32 1.0, %v254
    %v256 = vmul.f32 %v253, %v255
    %v257 = vadd.f32 %v253, %v256
    %vm258 = vweird.f32 %v252
    %vm259 = vweird.f32 %v253
    %vm260 = vmor %vm258, %vm259
    %v261 = vsel %vm260, %v253, %v257
    %v262 = vand.u32 2147483647, %v252
    %vm263 = vcmp.eq.f32.partialorder %v262, 8.507059e+37
    %v264 = vand.u32 %v252, 2147483648
    %v265 = vor.u32 1.1754944e-38, %v264
    %v266 = vsel %vm263, %v265, %v261
    %v267 = vmul.f32 1.0, %v266
    %v268 = vtanh.pop %v248
    %v270 = vrot.slane %v135, 6
    %v272 = vmul.f32 %v267, %v270
    %274 = vrot.lane.b32.xlu0 %v268, 96
    %v275 = vpop.permute.xlu0 %274
    %v277 = vmul.f32 %v267, %v275
    %279 = vrot.lane.b32.xlu0 %v277, 16
    %v280 = vpop.permute.xlu0 %279
    %v282 = vadd.f32 %v272, %v280
    %v283 = vtanh.pop %v282
    %285 = vrot.lane.b32.xlu0 %v283, 32
    %v286 = vpop.permute.xlu0 %285
    %v288 = vmul.f32 %v267, %v286
    %v290 = vrot.slane %v288, 2
    %291 = vrot.lane.b32.xlu0 %v290, 80
    %v292 = vpop.permute.xlu0 %291
    %v293 = vsel %vm80, %v292, 0
    %295 = vmatpush.msra.mxu0 0.0
    %296 = vmatpush.msra.mxu0 0.0
    %297 = vmatpush.msra.mxu0 0.0
    %298 = vmatpush.msra.mxu0 0.0
    %299 = vmatpush.msra.mxu0 0.0
    %300 = vmatpush.msra.mxu0 0.0
    %301 = vmatpush.msra.mxu0 0.0
    %302 = vmatpush.msra.mxu0 0.0
    %303 = vmatpush.msra.mxu0 0.0
    %304 = vmatpush.msra.mxu0 0.0
    %305 = vmatpush.msra.mxu0 0.0
    %306 = vmatpush.msra.mxu0 0.0
    %307 = vmatpush.msra.mxu0 0.0
    %308 = vmatpush.msra.mxu0 0.0
    %309 = vmatpush.msra.mxu0 %v73
    %310 = vmatpush.msra.mxu0 %v72
    %311 = vmatmul.f32.gmra.mxu0 %v293
    %v312 = vpop.f32.mrf.mxu0
    %v313 = vadd.f32 %v78, %v312
    %314 = vdwg.mxu0
    %316 = vrot.lane.b32.xlu0 %v224, 80
    %v317 = vpop.permute.xlu0 %316
    %v318 = vsel %vm80, %v317, 0
    %320 = vmatpush.msra.mxu0 0.0
    %321 = vmatpush.msra.mxu0 0.0
    %322 = vmatpush.msra.mxu0 0.0
    %323 = vmatpush.msra.mxu0 0.0
    %324 = vmatpush.msra.mxu0 0.0
    %325 = vmatpush.msra.mxu0 0.0
    %326 = vmatpush.msra.mxu0 0.0
    %327 = vmatpush.msra.mxu0 0.0
    %328 = vmatpush.msra.mxu0 0.0
    %329 = vmatpush.msra.mxu0 0.0
    %330 = vmatpush.msra.mxu0 0.0
    %331 = vmatpush.msra.mxu0 0.0
    %332 = vmatpush.msra.mxu0 0.0
    %333 = vmatpush.msra.mxu0 0.0
    %334 = vmatpush.msra.mxu0 %v75
    %335 = vmatpush.msra.mxu0 %v74
    %336 = vmatmul.f32.gmra.mxu0 %v318
    %v337 = vpop.f32.mrf.mxu0
    %v338 = vadd.f32 0.0, %v337
    %339 = vdwg.mxu0
    %v340 = vadd.f32 %v313, %v338
    %v341 = vxor.u32 %v340, 2147483648
    %v342 = vmul.f32 %v341, 1.442695
    %v343 = vpow.pop %v342
    %v344 = vadd.f32 %v343, 1.0
    %v345 = vrcp.pop %v344
    %v346 = vmul.f32 %v344, %v345
    %v347 = vsub.f32 1.0, %v346
    %v348 = vmul.f32 %v345, %v347
    %v349 = vadd.f32 %v345, %v348
    %vm350 = vweird.f32 %v344
    %vm351 = vweird.f32 %v345
    %vm352 = vmor %vm350, %vm351
    %v353 = vsel %vm352, %v345, %v349
    %v354 = vand.u32 2147483647, %v344
    %vm355 = vcmp.eq.f32.partialorder %v354, 8.507059e+37
    %v356 = vand.u32 %v344, 2147483648
    %v357 = vor.u32 1.1754944e-38, %v356
    %v358 = vsel %vm355, %v357, %v353
    %v359 = vmul.f32 1.0, %v358
    %v360 = vtanh.pop %v340
    %v361 = vmul.f32 %v359, %v218
    %363 = vrot.lane.b32.xlu0 %v360, 96
    %v364 = vpop.permute.xlu0 %363
    %v366 = vmul.f32 %v359, %v364
    %368 = vrot.lane.b32.xlu0 %v366, 16
    %v369 = vpop.permute.xlu0 %368
    %v371 = vadd.f32 %v361, %v369
    %v372 = vtanh.pop %v371
    %374 = vrot.lane.b32.xlu0 %v372, 32
    %v375 = vpop.permute.xlu0 %374
    %v377 = vmul.f32 %v359, %v375
    %378 = vmatpush.msra.mxu0 0.0
    %379 = vmatpush.msra.mxu0 0.0
    %380 = vmatpush.msra.mxu0 0.0
    %381 = vmatpush.msra.mxu0 0.0
    %382 = vmatpush.msra.mxu0 0.0
    %383 = vmatpush.msra.mxu0 0.0
    %384 = vmatpush.msra.mxu0 0.0
    %385 = vmatpush.msra.mxu0 0.0
    %386 = vmatpush.msra.mxu0 0.0
    %387 = vmatpush.msra.mxu0 0.0
    %388 = vmatpush.msra.mxu0 0.0
    %389 = vmatpush.msra.mxu0 0.0
    %390 = vmatpush.msra.mxu0 0.0
    %391 = vmatpush.msra.mxu0 0.0
    %392 = vmatpush.msra.mxu0 %v71
    %393 = vmatpush.msra.mxu0 %v70
    %394 = vmatmul.f32.gmra.mxu0 %v293
    %v395 = vpop.f32.mrf.mxu0
    %v396 = vadd.f32 0.0, %v395
    %397 = vdwg.mxu0
    %v399 = vrot.slane %v396, 4
    %v401 = vadd.f32 %v65, %v399
    %v402 = vxor.u32 %v401, 2147483648
    %v403 = vmul.f32 %v402, 1.442695
    %v404 = vpow.pop %v403
    %v405 = vadd.f32 %v404, 1.0
    %v406 = vrcp.pop %v405
    %v407 = vmul.f32 %v405, %v406
    %v408 = vsub.f32 1.0, %v407
    %v409 = vmul.f32 %v406, %v408
    %v410 = vadd.f32 %v406, %v409
    %vm411 = vweird.f32 %v405
    %vm412 = vweird.f32 %v406
    %vm413 = vmor %vm411, %vm412
    %v414 = vsel %vm413, %v406, %v410
    %v415 = vand.u32 2147483647, %v405
    %vm416 = vcmp.eq.f32.partialorder %v415, 8.507059e+37
    %v417 = vand.u32 %v405, 2147483648
    %v418 = vor.u32 1.1754944e-38, %v417
    %v419 = vsel %vm416, %v418, %v414
    %v420 = vmul.f32 1.0, %v419
    %v421 = vtanh.pop %v401
    %v423 = vrot.slane %v282, 6
    %v425 = vmul.f32 %v420, %v423
    %427 = vrot.lane.b32.xlu0 %v421, 96
    %v428 = vpop.permute.xlu0 %427
    %v430 = vmul.f32 %v420, %v428
    %432 = vrot.lane.b32.xlu0 %v430, 16
    %v433 = vpop.permute.xlu0 %432
    %v435 = vadd.f32 %v425, %v433
    %v436 = vtanh.pop %v435
    %438 = vrot.lane.b32.xlu0 %v436, 32
    %v439 = vpop.permute.xlu0 %438
    %v441 = vmul.f32 %v420, %v439
    %v443 = vrot.slane %v441, 4
    %444 = vrot.lane.b32.xlu0 %v443, 80
    %v445 = vpop.permute.xlu0 %444
    %v446 = vsel %vm80, %v445, 0
    %448 = vmatpush.msra.mxu0 0.0
    %449 = vmatpush.msra.mxu0 0.0
    %450 = vmatpush.msra.mxu0 0.0
    %451 = vmatpush.msra.mxu0 0.0
    %452 = vmatpush.msra.mxu0 0.0
    %453 = vmatpush.msra.mxu0 0.0
    %454 = vmatpush.msra.mxu0 0.0
    %455 = vmatpush.msra.mxu0 0.0
    %456 = vmatpush.msra.mxu0 0.0
    %457 = vmatpush.msra.mxu0 0.0
    %458 = vmatpush.msra.mxu0 0.0
    %459 = vmatpush.msra.mxu0 0.0
    %460 = vmatpush.msra.mxu0 0.0
    %461 = vmatpush.msra.mxu0 0.0
    %462 = vmatpush.msra.mxu0 %v73
    %463 = vmatpush.msra.mxu0 %v72
    %464 = vmatmul.f32.gmra.mxu0 %v446
    %v465 = vpop.f32.mrf.mxu0
    %v466 = vadd.f32 %v78, %v465
    %467 = vdwg.mxu0
    %469 = vrot.lane.b32.xlu0 %v377, 80
    %v470 = vpop.permute.xlu0 %469
    %v471 = vsel %vm80, %v470, 0
    %473 = vmatpush.msra.mxu0 0.0
    %474 = vmatpush.msra.mxu0 0.0
    %475 = vmatpush.msra.mxu0 0.0
    %476 = vmatpush.msra.mxu0 0.0
    %477 = vmatpush.msra.mxu0 0.0
    %478 = vmatpush.msra.mxu0 0.0
    %479 = vmatpush.msra.mxu0 0.0
    %480 = vmatpush.msra.mxu0 0.0
    %481 = vmatpush.msra.mxu0 0.0
    %482 = vmatpush.msra.mxu0 0.0
    %483 = vmatpush.msra.mxu0 0.0
    %484 = vmatpush.msra.mxu0 0.0
    %485 = vmatpush.msra.mxu0 0.0
    %486 = vmatpush.msra.mxu0 0.0
    %487 = vmatpush.msra.mxu0 %v75
    %488 = vmatpush.msra.mxu0 %v74
    %489 = vmatmul.f32.gmra.mxu0 %v471
    %v490 = vpop.f32.mrf.mxu0
    %v491 = vadd.f32 0.0, %v490
    %492 = vdwg.mxu0
    %v493 = vadd.f32 %v466, %v491
    %v494 = vxor.u32 %v493, 2147483648
    %v495 = vmul.f32 %v494, 1.442695
    %v496 = vpow.pop %v495
    %v497 = vadd.f32 %v496, 1.0
    %v498 = vrcp.pop %v497
    %v499 = vmul.f32 %v497, %v498
    %v500 = vsub.f32 1.0, %v499
    %v501 = vmul.f32 %v498, %v500
    %v502 = vadd.f32 %v498, %v501
    %vm503 = vweird.f32 %v497
    %vm504 = vweird.f32 %v498
    %vm505 = vmor %vm503, %vm504
    %v506 = vsel %vm505, %v498, %v502
    %v507 = vand.u32 2147483647, %v497
    %vm508 = vcmp.eq.f32.partialorder %v507, 8.507059e+37
    %v509 = vand.u32 %v497, 2147483648
    %v510 = vor.u32 1.1754944e-38, %v509
    %v511 = vsel %vm508, %v510, %v506
    %v512 = vmul.f32 1.0, %v511
    %v513 = vtanh.pop %v493
    %v514 = vmul.f32 %v512, %v371
    %516 = vrot.lane.b32.xlu0 %v513, 96
    %v517 = vpop.permute.xlu0 %516
    %v519 = vmul.f32 %v512, %v517
    %521 = vrot.lane.b32.xlu0 %v519, 16
    %v522 = vpop.permute.xlu0 %521
    %v524 = vadd.f32 %v514, %v522
    %v525 = vtanh.pop %v524
    %527 = vrot.lane.b32.xlu0 %v525, 32
    %v528 = vpop.permute.xlu0 %527
    %v530 = vmul.f32 %v512, %v528
    %531 = vmatpush.msra.mxu0 0.0
    %532 = vmatpush.msra.mxu0 0.0
    %533 = vmatpush.msra.mxu0 0.0
    %534 = vmatpush.msra.mxu0 0.0
    %535 = vmatpush.msra.mxu0 0.0
    %536 = vmatpush.msra.mxu0 0.0
    %537 = vmatpush.msra.mxu0 0.0
    %538 = vmatpush.msra.mxu0 0.0
    %539 = vmatpush.msra.mxu0 0.0
    %540 = vmatpush.msra.mxu0 0.0
    %541 = vmatpush.msra.mxu0 0.0
    %542 = vmatpush.msra.mxu0 0.0
    %543 = vmatpush.msra.mxu0 0.0
    %544 = vmatpush.msra.mxu0 0.0
    %545 = vmatpush.msra.mxu0 %v71
    %546 = vmatpush.msra.mxu0 %v70
    %547 = vmatmul.f32.gmra.mxu0 %v446
    %v548 = vpop.f32.mrf.mxu0
    %v549 = vadd.f32 0.0, %v548
    %550 = vdwg.mxu0
    %v552 = vrot.slane %v549, 2
    %v554 = vadd.f32 %v65, %v552
    %v555 = vxor.u32 %v554, 2147483648
    %v556 = vmul.f32 %v555, 1.442695
    %v557 = vpow.pop %v556
    %v558 = vadd.f32 %v557, 1.0
    %v559 = vrcp.pop %v558
    %v560 = vmul.f32 %v558, %v559
    %v561 = vsub.f32 1.0, %v560
    %v562 = vmul.f32 %v559, %v561
    %v563 = vadd.f32 %v559, %v562
    %vm564 = vweird.f32 %v558
    %vm565 = vweird.f32 %v559
    %vm566 = vmor %vm564, %vm565
    %v567 = vsel %vm566, %v559, %v563
    %v568 = vand.u32 2147483647, %v558
    %vm569 = vcmp.eq.f32.partialorder %v568, 8.507059e+37
    %v570 = vand.u32 %v558, 2147483648
    %v571 = vor.u32 1.1754944e-38, %v570
    %v572 = vsel %vm569, %v571, %v567
    %v573 = vmul.f32 1.0, %v572
    %v574 = vtanh.pop %v554
    %v576 = vrot.slane %v435, 6
    %v578 = vmul.f32 %v573, %v576
    %580 = vrot.lane.b32.xlu0 %v574, 96
    %v581 = vpop.permute.xlu0 %580
    %v583 = vmul.f32 %v573, %v581
    %585 = vrot.lane.b32.xlu0 %v583, 16
    %v586 = vpop.permute.xlu0 %585
    %v588 = vadd.f32 %v578, %v586
    %v589 = vtanh.pop %v588
    %591 = vrot.lane.b32.xlu0 %v589, 32
    %v592 = vpop.permute.xlu0 %591
    %v594 = vmul.f32 %v573, %v592
    %v596 = vrot.slane %v594, 6
    %597 = vrot.lane.b32.xlu0 %v596, 80
    %v598 = vpop.permute.xlu0 %597
    %v599 = vsel %vm80, %v598, 0
    %601 = vmatpush.msra.mxu0 0.0
    %602 = vmatpush.msra.mxu0 0.0
    %603 = vmatpush.msra.mxu0 0.0
    %604 = vmatpush.msra.mxu0 0.0
    %605 = vmatpush.msra.mxu0 0.0
    %606 = vmatpush.msra.mxu0 0.0
    %607 = vmatpush.msra.mxu0 0.0
    %608 = vmatpush.msra.mxu0 0.0
    %609 = vmatpush.msra.mxu0 0.0
    %610 = vmatpush.msra.mxu0 0.0
    %611 = vmatpush.msra.mxu0 0.0
    %612 = vmatpush.msra.mxu0 0.0
    %613 = vmatpush.msra.mxu0 0.0
    %614 = vmatpush.msra.mxu0 0.0
    %615 = vmatpush.msra.mxu0 %v73
    %616 = vmatpush.msra.mxu0 %v72
    %617 = vmatmul.f32.gmra.mxu0 %v599
    %v618 = vpop.f32.mrf.mxu0
    %v619 = vadd.f32 %v78, %v618
    %620 = vdwg.mxu0
    %622 = vrot.lane.b32.xlu0 %v530, 80
    %v623 = vpop.permute.xlu0 %622
    %v624 = vsel %vm80, %v623, 0
    %626 = vmatpush.msra.mxu0 0.0
    %627 = vmatpush.msra.mxu0 0.0
    %628 = vmatpush.msra.mxu0 0.0
    %629 = vmatpush.msra.mxu0 0.0
    %630 = vmatpush.msra.mxu0 0.0
    %631 = vmatpush.msra.mxu0 0.0
    %632 = vmatpush.msra.mxu0 0.0
    %633 = vmatpush.msra.mxu0 0.0
    %634 = vmatpush.msra.mxu0 0.0
    %635 = vmatpush.msra.mxu0 0.0
    %636 = vmatpush.msra.mxu0 0.0
    %637 = vmatpush.msra.mxu0 0.0
    %638 = vmatpush.msra.mxu0 0.0
    %639 = vmatpush.msra.mxu0 0.0
    %640 = vmatpush.msra.mxu0 %v75
    %641 = vmatpush.msra.mxu0 %v74
    %642 = vmatmul.f32.gmra.mxu0 %v624
    %v643 = vpop.f32.mrf.mxu0
    %v644 = vadd.f32 0.0, %v643
    %645 = vdwg.mxu0
    %v646 = vadd.f32 %v619, %v644
    %v647 = vxor.u32 %v646, 2147483648
    %v648 = vmul.f32 %v647, 1.442695
    %v649 = vpow.pop %v648
    %v650 = vadd.f32 %v649, 1.0
    %v651 = vrcp.pop %v650
    %v652 = vmul.f32 %v650, %v651
    %v653 = vsub.f32 1.0, %v652
    %v654 = vmul.f32 %v651, %v653
    %v655 = vadd.f32 %v651, %v654
    %vm656 = vweird.f32 %v650
    %vm657 = vweird.f32 %v651
    %vm658 = vmor %vm656, %vm657
    %v659 = vsel %vm658, %v651, %v655
    %v660 = vand.u32 2147483647, %v650
    %vm661 = vcmp.eq.f32.partialorder %v660, 8.507059e+37
    %v662 = vand.u32 %v650, 2147483648
    %v663 = vor.u32 1.1754944e-38, %v662
    %v664 = vsel %vm661, %v663, %v659
    %v665 = vmul.f32 1.0, %v664
    %v666 = vtanh.pop %v646
    %v667 = vmul.f32 %v665, %v524
    %669 = vrot.lane.b32.xlu0 %v666, 96
    %v670 = vpop.permute.xlu0 %669
    %v672 = vmul.f32 %v665, %v670
    %674 = vrot.lane.b32.xlu0 %v672, 16
    %v675 = vpop.permute.xlu0 %674
    %v677 = vadd.f32 %v667, %v675
    %v678 = vtanh.pop %v677
    %680 = vrot.lane.b32.xlu0 %v678, 32
    %v681 = vpop.permute.xlu0 %680
    %v683 = vmul.f32 %v665, %v681
    %684 = vmatpush.msra.mxu0 0.0
    %685 = vmatpush.msra.mxu0 0.0
    %686 = vmatpush.msra.mxu0 0.0
    %687 = vmatpush.msra.mxu0 0.0
    %688 = vmatpush.msra.mxu0 0.0
    %689 = vmatpush.msra.mxu0 0.0
    %690 = vmatpush.msra.mxu0 0.0
    %691 = vmatpush.msra.mxu0 0.0
    %692 = vmatpush.msra.mxu0 0.0
    %693 = vmatpush.msra.mxu0 0.0
    %694 = vmatpush.msra.mxu0 0.0
    %695 = vmatpush.msra.mxu0 0.0
    %696 = vmatpush.msra.mxu0 0.0
    %697 = vmatpush.msra.mxu0 0.0
    %698 = vmatpush.msra.mxu0 %v71
    %699 = vmatpush.msra.mxu0 %v70
    %700 = vmatmul.f32.gmra.mxu0 %v599
    %v701 = vpop.f32.mrf.mxu0
    %v702 = vadd.f32 0.0, %v701
    %703 = vdwg.mxu0
    %v704 = vadd.f32 %v68, %v702
    %v705 = vxor.u32 %v704, 2147483648
    %v706 = vmul.f32 %v705, 1.442695
    %v707 = vpow.pop %v706
    %v708 = vadd.f32 %v707, 1.0
    %v709 = vrcp.pop %v708
    %v710 = vmul.f32 %v708, %v709
    %v711 = vsub.f32 1.0, %v710
    %v712 = vmul.f32 %v709, %v711
    %v713 = vadd.f32 %v709, %v712
    %vm714 = vweird.f32 %v708
    %vm715 = vweird.f32 %v709
    %vm716 = vmor %vm714, %vm715
    %v717 = vsel %vm716, %v709, %v713
    %v718 = vand.u32 2147483647, %v708
    %vm719 = vcmp.eq.f32.partialorder %v718, 8.507059e+37
    %v720 = vand.u32 %v708, 2147483648
    %v721 = vor.u32 1.1754944e-38, %v720
    %v722 = vsel %vm719, %v721, %v717
    %v723 = vmul.f32 1.0, %v722
    %v724 = vtanh.pop %v704
    %v726 = vrot.slane %v588, 6
    %v728 = vmul.f32 %v723, %v726
    %730 = vrot.lane.b32.xlu0 %v724, 96
    %v731 = vpop.permute.xlu0 %730
    %v733 = vmul.f32 %v723, %v731
    %735 = vrot.lane.b32.xlu0 %v733, 16
    %v736 = vpop.permute.xlu0 %735
    %v738 = vadd.f32 %v728, %v736
    %v739 = vtanh.pop %v738
    %741 = vrot.lane.b32.xlu0 %v739, 32
    %v742 = vpop.permute.xlu0 %741
    %v744 = vmul.f32 %v723, %v742
    %746 = vrot.lane.b32.xlu0 %v744, 80
    %v747 = vpop.permute.xlu0 %746
    %v748 = vsel %vm80, %v747, 0
    %750 = vmatpush.msra.mxu0 0.0
    %751 = vmatpush.msra.mxu0 0.0
    %752 = vmatpush.msra.mxu0 0.0
    %753 = vmatpush.msra.mxu0 0.0
    %754 = vmatpush.msra.mxu0 0.0
    %755 = vmatpush.msra.mxu0 0.0
    %756 = vmatpush.msra.mxu0 0.0
    %757 = vmatpush.msra.mxu0 0.0
    %758 = vmatpush.msra.mxu0 0.0
    %759 = vmatpush.msra.mxu0 0.0
    %760 = vmatpush.msra.mxu0 0.0
    %761 = vmatpush.msra.mxu0 0.0
    %762 = vmatpush.msra.mxu0 0.0
    %763 = vmatpush.msra.mxu0 0.0
    %764 = vmatpush.msra.mxu0 %v73
    %765 = vmatpush.msra.mxu0 %v72
    %766 = vmatmul.f32.gmra.mxu0 %v748
    %v767 = vpop.f32.mrf.mxu0
    %v768 = vadd.f32 %v78, %v767
    %769 = vdwg.mxu0
    %771 = vrot.lane.b32.xlu0 %v683, 80
    %v772 = vpop.permute.xlu0 %771
    %v773 = vsel %vm80, %v772, 0
    %775 = vmatpush.msra.mxu0 0.0
    %776 = vmatpush.msra.mxu0 0.0
    %777 = vmatpush.msra.mxu0 0.0
    %778 = vmatpush.msra.mxu0 0.0
    %779 = vmatpush.msra.mxu0 0.0
    %780 = vmatpush.msra.mxu0 0.0
    %781 = vmatpush.msra.mxu0 0.0
    %782 = vmatpush.msra.mxu0 0.0
    %783 = vmatpush.msra.mxu0 0.0
    %784 = vmatpush.msra.mxu0 0.0
    %785 = vmatpush.msra.mxu0 0.0
    %786 = vmatpush.msra.mxu0 0.0
    %787 = vmatpush.msra.mxu0 0.0
    %788 = vmatpush.msra.mxu0 0.0
    %789 = vmatpush.msra.mxu0 %v75
    %790 = vmatpush.msra.mxu0 %v74
    %791 = vmatmul.f32.gmra.mxu0 %v773
    %v792 = vpop.f32.mrf.mxu0
    %v793 = vadd.f32 0.0, %v792
    %794 = vdwg.mxu0
    %v795 = vadd.f32 %v768, %v793
    %v796 = vxor.u32 %v795, 2147483648
    %v797 = vmul.f32 %v796, 1.442695
    %v798 = vpow.pop %v797
    %v799 = vadd.f32 %v798, 1.0
    %v800 = vrcp.pop %v799
    %v801 = vmul.f32 %v799, %v800
    %v802 = vsub.f32 1.0, %v801
    %v803 = vmul.f32 %v800, %v802
    %v804 = vadd.f32 %v800, %v803
    %vm805 = vweird.f32 %v799
    %vm806 = vweird.f32 %v800
    %vm807 = vmor %vm805, %vm806
    %v808 = vsel %vm807, %v800, %v804
    %v809 = vand.u32 2147483647, %v799
    %vm810 = vcmp.eq.f32.partialorder %v809, 8.507059e+37
    %v811 = vand.u32 %v799, 2147483648
    %v812 = vor.u32 1.1754944e-38, %v811
    %v813 = vsel %vm810, %v812, %v808
    %v814 = vmul.f32 1.0, %v813
    %v815 = vtanh.pop %v795
    %v816 = vmul.f32 %v814, %v677
    %818 = vrot.lane.b32.xlu0 %v815, 96
    %v819 = vpop.permute.xlu0 %818
    %v821 = vmul.f32 %v814, %v819
    %823 = vrot.lane.b32.xlu0 %v821, 16
    %v824 = vpop.permute.xlu0 %823
    %v826 = vadd.f32 %v816, %v824
    %v827 = vtanh.pop %v826
    %829 = vrot.lane.b32.xlu0 %v827, 32
    %v830 = vpop.permute.xlu0 %829
    %v832 = vmul.f32 %v814, %v830
    %833 = vmatpush.msra.mxu0 0.0
    %834 = vmatpush.msra.mxu0 0.0
    %835 = vmatpush.msra.mxu0 0.0
    %836 = vmatpush.msra.mxu0 0.0
    %837 = vmatpush.msra.mxu0 0.0
    %838 = vmatpush.msra.mxu0 0.0
    %839 = vmatpush.msra.mxu0 0.0
    %840 = vmatpush.msra.mxu0 0.0
    %841 = vmatpush.msra.mxu0 0.0
    %842 = vmatpush.msra.mxu0 0.0
    %843 = vmatpush.msra.mxu0 0.0
    %844 = vmatpush.msra.mxu0 0.0
    %845 = vmatpush.msra.mxu0 0.0
    %846 = vmatpush.msra.mxu0 0.0
    %847 = vmatpush.msra.mxu0 %v71
    %848 = vmatpush.msra.mxu0 %v70
    %849 = vmatmul.f32.gmra.mxu0 %v748
    %v850 = vpop.f32.mrf.mxu0
    %v851 = vadd.f32 0.0, %v850
    %852 = vdwg.mxu0
    %v854 = vrot.slane %v851, 6
    %v856 = vadd.f32 %v68, %v854
    %v857 = vxor.u32 %v856, 2147483648
    %v858 = vmul.f32 %v857, 1.442695
    %v859 = vpow.pop %v858
    %v860 = vadd.f32 %v859, 1.0
    %v861 = vrcp.pop %v860
    %v862 = vmul.f32 %v860, %v861
    %v863 = vsub.f32 1.0, %v862
    %v864 = vmul.f32 %v861, %v863
    %v865 = vadd.f32 %v861, %v864
    %vm866 = vweird.f32 %v860
    %vm867 = vweird.f32 %v861
    %vm868 = vmor %vm866, %vm867
    %v869 = vsel %vm868, %v861, %v865
    %v870 = vand.u32 2147483647, %v860
    %vm871 = vcmp.eq.f32.partialorder %v870, 8.507059e+37
    %v872 = vand.u32 %v860, 2147483648
    %v873 = vor.u32 1.1754944e-38, %v872
    %v874 = vsel %vm871, %v873, %v869
    %v875 = vmul.f32 1.0, %v874
    %v876 = vtanh.pop %v856
    %v878 = vrot.slane %v738, 6
    %v880 = vmul.f32 %v875, %v878
    %882 = vrot.lane.b32.xlu0 %v876, 96
    %v883 = vpop.permute.xlu0 %882
    %v885 = vmul.f32 %v875, %v883
    %887 = vrot.lane.b32.xlu0 %v885, 16
    %v888 = vpop.permute.xlu0 %887
    %v890 = vadd.f32 %v880, %v888
    %v891 = vtanh.pop %v890
    %893 = vrot.lane.b32.xlu0 %v891, 32
    %v894 = vpop.permute.xlu0 %893
    %v896 = vmul.f32 %v875, %v894
    %v898 = vrot.slane %v896, 2
    %899 = vrot.lane.b32.xlu0 %v898, 80
    %v900 = vpop.permute.xlu0 %899
    %v901 = vsel %vm80, %v900, 0
    %903 = vmatpush.msra.mxu0 0.0
    %904 = vmatpush.msra.mxu0 0.0
    %905 = vmatpush.msra.mxu0 0.0
    %906 = vmatpush.msra.mxu0 0.0
    %907 = vmatpush.msra.mxu0 0.0
    %908 = vmatpush.msra.mxu0 0.0
    %909 = vmatpush.msra.mxu0 0.0
    %910 = vmatpush.msra.mxu0 0.0
    %911 = vmatpush.msra.mxu0 0.0
    %912 = vmatpush.msra.mxu0 0.0
    %913 = vmatpush.msra.mxu0 0.0
    %914 = vmatpush.msra.mxu0 0.0
    %915 = vmatpush.msra.mxu0 0.0
    %916 = vmatpush.msra.mxu0 0.0
    %917 = vmatpush.msra.mxu0 %v73
    %918 = vmatpush.msra.mxu0 %v72
    %919 = vmatmul.f32.gmra.mxu0 %v901
    %v920 = vpop.f32.mrf.mxu0
    %v921 = vadd.f32 %v78, %v920
    %922 = vdwg.mxu0
    %924 = vrot.lane.b32.xlu0 %v832, 80
    %v925 = vpop.permute.xlu0 %924
    %v926 = vsel %vm80, %v925, 0
    %928 = vmatpush.msra.mxu0 0.0
    %929 = vmatpush.msra.mxu0 0.0
    %930 = vmatpush.msra.mxu0 0.0
    %931 = vmatpush.msra.mxu0 0.0
    %932 = vmatpush.msra.mxu0 0.0
    %933 = vmatpush.msra.mxu0 0.0
    %934 = vmatpush.msra.mxu0 0.0
    %935 = vmatpush.msra.mxu0 0.0
    %936 = vmatpush.msra.mxu0 0.0
    %937 = vmatpush.msra.mxu0 0.0
    %938 = vmatpush.msra.mxu0 0.0
    %939 = vmatpush.msra.mxu0 0.0
    %940 = vmatpush.msra.mxu0 0.0
    %941 = vmatpush.msra.mxu0 0.0
    %942 = vmatpush.msra.mxu0 %v75
    %943 = vmatpush.msra.mxu0 %v74
    %944 = vmatmul.f32.gmra.mxu0 %v926
    %v945 = vpop.f32.mrf.mxu0
    %v946 = vadd.f32 0.0, %v945
    %947 = vdwg.mxu0
    %v948 = vadd.f32 %v921, %v946
    %v949 = vxor.u32 %v948, 2147483648
    %v950 = vmul.f32 %v949, 1.442695
    %v951 = vpow.pop %v950
    %v952 = vadd.f32 %v951, 1.0
    %v953 = vrcp.pop %v952
    %v954 = vmul.f32 %v952, %v953
    %v955 = vsub.f32 1.0, %v954
    %v956 = vmul.f32 %v953, %v955
    %v957 = vadd.f32 %v953, %v956
    %vm958 = vweird.f32 %v952
    %vm959 = vweird.f32 %v953
    %vm960 = vmor %vm958, %vm959
    %v961 = vsel %vm960, %v953, %v957
    %v962 = vand.u32 2147483647, %v952
    %vm963 = vcmp.eq.f32.partialorder %v962, 8.507059e+37
    %v964 = vand.u32 %v952, 2147483648
    %v965 = vor.u32 1.1754944e-38, %v964
    %v966 = vsel %vm963, %v965, %v961
    %v967 = vmul.f32 1.0, %v966
    %v968 = vtanh.pop %v948
    %v969 = vmul.f32 %v967, %v826
    %971 = vrot.lane.b32.xlu0 %v968, 96
    %v972 = vpop.permute.xlu0 %971
    %v974 = vmul.f32 %v967, %v972
    %976 = vrot.lane.b32.xlu0 %v974, 16
    %v977 = vpop.permute.xlu0 %976
    %v979 = vadd.f32 %v969, %v977
    %v980 = vtanh.pop %v979
    %982 = vrot.lane.b32.xlu0 %v980, 32
    %v983 = vpop.permute.xlu0 %982
    %v985 = vmul.f32 %v967, %v983
    %986 = vmatpush.msra.mxu0 0.0
    %987 = vmatpush.msra.mxu0 0.0
    %988 = vmatpush.msra.mxu0 0.0
    %989 = vmatpush.msra.mxu0 0.0
    %990 = vmatpush.msra.mxu0 0.0
    %991 = vmatpush.msra.mxu0 0.0
    %992 = vmatpush.msra.mxu0 0.0
    %993 = vmatpush.msra.mxu0 0.0
    %994 = vmatpush.msra.mxu0 0.0
    %995 = vmatpush.msra.mxu0 0.0
    %996 = vmatpush.msra.mxu0 0.0
    %997 = vmatpush.msra.mxu0 0.0
    %998 = vmatpush.msra.mxu0 0.0
    %999 = vmatpush.msra.mxu0 0.0
    %1000 = vmatpush.msra.mxu0 %v71
    %1001 = vmatpush.msra.mxu0 %v70
    %1002 = vmatmul.f32.gmra.mxu0 %v901
    %v1003 = vpop.f32.mrf.mxu0
    %v1004 = vadd.f32 0.0, %v1003
    %1005 = vdwg.mxu0
    %v1007 = vrot.slane %v1004, 4
    %v1009 = vadd.f32 %v68, %v1007
    %v1010 = vxor.u32 %v1009, 2147483648
    %v1011 = vmul.f32 %v1010, 1.442695
    %v1012 = vpow.pop %v1011
    %v1013 = vadd.f32 %v1012, 1.0
    %v1014 = vrcp.pop %v1013
    %v1015 = vmul.f32 %v1013, %v1014
    %v1016 = vsub.f32 1.0, %v1015
    %v1017 = vmul.f32 %v1014, %v1016
    %v1018 = vadd.f32 %v1014, %v1017
    %vm1019 = vweird.f32 %v1013
    %vm1020 = vweird.f32 %v1014
    %vm1021 = vmor %vm1019, %vm1020
    %v1022 = vsel %vm1021, %v1014, %v1018
    %v1023 = vand.u32 2147483647, %v1013
    %vm1024 = vcmp.eq.f32.partialorder %v1023, 8.507059e+37
    %v1025 = vand.u32 %v1013, 2147483648
    %v1026 = vor.u32 1.1754944e-38, %v1025
    %v1027 = vsel %vm1024, %v1026, %v1022
    %v1028 = vmul.f32 1.0, %v1027
    %v1029 = vtanh.pop %v1009
    %v1031 = vrot.slane %v890, 6
    %v1033 = vmul.f32 %v1028, %v1031
    %1035 = vrot.lane.b32.xlu0 %v1029, 96
    %v1036 = vpop.permute.xlu0 %1035
    %v1038 = vmul.f32 %v1028, %v1036
    %1040 = vrot.lane.b32.xlu0 %v1038, 16
    %v1041 = vpop.permute.xlu0 %1040
    %v1043 = vadd.f32 %v1033, %v1041
    %v1044 = vtanh.pop %v1043
    %1046 = vrot.lane.b32.xlu0 %v1044, 32
    %v1047 = vpop.permute.xlu0 %1046
    %v1049 = vmul.f32 %v1028, %v1047
    %v1051 = vrot.slane %v1049, 4
    %1052 = vrot.lane.b32.xlu0 %v1051, 80
    %v1053 = vpop.permute.xlu0 %1052
    %v1054 = vsel %vm80, %v1053, 0
    %1056 = vmatpush.msra.mxu0 0.0
    %1057 = vmatpush.msra.mxu0 0.0
    %1058 = vmatpush.msra.mxu0 0.0
    %1059 = vmatpush.msra.mxu0 0.0
    %1060 = vmatpush.msra.mxu0 0.0
    %1061 = vmatpush.msra.mxu0 0.0
    %1062 = vmatpush.msra.mxu0 0.0
    %1063 = vmatpush.msra.mxu0 0.0
    %1064 = vmatpush.msra.mxu0 0.0
    %1065 = vmatpush.msra.mxu0 0.0
    %1066 = vmatpush.msra.mxu0 0.0
    %1067 = vmatpush.msra.mxu0 0.0
    %1068 = vmatpush.msra.mxu0 0.0
    %1069 = vmatpush.msra.mxu0 0.0
    %1070 = vmatpush.msra.mxu0 %v73
    %1071 = vmatpush.msra.mxu0 %v72
    %1072 = vmatmul.f32.gmra.mxu0 %v1054
    %v1073 = vpop.f32.mrf.mxu0
    %v1074 = vadd.f32 %v78, %v1073
    %1075 = vdwg.mxu0
    %1077 = vrot.lane.b32.xlu0 %v985, 80
    %v1078 = vpop.permute.xlu0 %1077
    %v1079 = vsel %vm80, %v1078, 0
    %1081 = vmatpush.msra.mxu0 0.0
    %1082 = vmatpush.msra.mxu0 0.0
    %1083 = vmatpush.msra.mxu0 0.0
    %1084 = vmatpush.msra.mxu0 0.0
    %1085 = vmatpush.msra.mxu0 0.0
    %1086 = vmatpush.msra.mxu0 0.0
    %1087 = vmatpush.msra.mxu0 0.0
    %1088 = vmatpush.msra.mxu0 0.0
    %1089 = vmatpush.msra.mxu0 0.0
    %1090 = vmatpush.msra.mxu0 0.0
    %1091 = vmatpush.msra.mxu0 0.0
    %1092 = vmatpush.msra.mxu0 0.0
    %1093 = vmatpush.msra.mxu0 0.0
    %1094 = vmatpush.msra.mxu0 0.0
    %1095 = vmatpush.msra.mxu0 %v75
    %1096 = vmatpush.msra.mxu0 %v74
    %1097 = vmatmul.f32.gmra.mxu0 %v1079
    %v1098 = vpop.f32.mrf.mxu0
    %v1099 = vadd.f32 0.0, %v1098
    %1100 = vdwg.mxu0
    %v1101 = vadd.f32 %v1074, %v1099
    %v1102 = vxor.u32 %v1101, 2147483648
    %v1103 = vmul.f32 %v1102, 1.442695
    %v1104 = vpow.pop %v1103
    %v1105 = vadd.f32 %v1104, 1.0
    %v1106 = vrcp.pop %v1105
    %v1107 = vmul.f32 %v1105, %v1106
    %v1108 = vsub.f32 1.0, %v1107
    %v1109 = vmul.f32 %v1106, %v1108
    %v1110 = vadd.f32 %v1106, %v1109
    %vm1111 = vweird.f32 %v1105
    %vm1112 = vweird.f32 %v1106
    %vm1113 = vmor %vm1111, %vm1112
    %v1114 = vsel %vm1113, %v1106, %v1110
    %v1115 = vand.u32 2147483647, %v1105
    %vm1116 = vcmp.eq.f32.partialorder %v1115, 8.507059e+37
    %v1117 = vand.u32 %v1105, 2147483648
    %v1118 = vor.u32 1.1754944e-38, %v1117
    %v1119 = vsel %vm1116, %v1118, %v1114
    %v1120 = vmul.f32 1.0, %v1119
    %v1121 = vtanh.pop %v1101
    %v1122 = vmul.f32 %v1120, %v979
    %1124 = vrot.lane.b32.xlu0 %v1121, 96
    %v1125 = vpop.permute.xlu0 %1124
    %v1127 = vmul.f32 %v1120, %v1125
    %1129 = vrot.lane.b32.xlu0 %v1127, 16
    %v1130 = vpop.permute.xlu0 %1129
    %v1132 = vadd.f32 %v1122, %v1130
    %v1133 = vtanh.pop %v1132
    %1135 = vrot.lane.b32.xlu0 %v1133, 32
    %v1136 = vpop.permute.xlu0 %1135
    %v1138 = vmul.f32 %v1120, %v1136
    %1139 = vmatpush.msra.mxu0 0.0
    %1140 = vmatpush.msra.mxu0 0.0
    %1141 = vmatpush.msra.mxu0 0.0
    %1142 = vmatpush.msra.mxu0 0.0
    %1143 = vmatpush.msra.mxu0 0.0
    %1144 = vmatpush.msra.mxu0 0.0
    %1145 = vmatpush.msra.mxu0 0.0
    %1146 = vmatpush.msra.mxu0 0.0
    %1147 = vmatpush.msra.mxu0 0.0
    %1148 = vmatpush.msra.mxu0 0.0
    %1149 = vmatpush.msra.mxu0 0.0
    %1150 = vmatpush.msra.mxu0 0.0
    %1151 = vmatpush.msra.mxu0 0.0
    %1152 = vmatpush.msra.mxu0 0.0
    %1153 = vmatpush.msra.mxu0 %v71
    %1154 = vmatpush.msra.mxu0 %v70
    %1155 = vmatmul.f32.gmra.mxu0 %v1054
    %v1156 = vpop.f32.mrf.mxu0
    %v1157 = vadd.f32 0.0, %v1156
    %1158 = vdwg.mxu0
    %v1160 = vrot.slane %v1157, 2
    %v1162 = vadd.f32 %v68, %v1160
    %v1163 = vxor.u32 %v1162, 2147483648
    %v1164 = vmul.f32 %v1163, 1.442695
    %v1165 = vpow.pop %v1164
    %v1166 = vadd.f32 %v1165, 1.0
    %v1167 = vrcp.pop %v1166
    %v1168 = vmul.f32 %v1166, %v1167
    %v1169 = vsub.f32 1.0, %v1168
    %v1170 = vmul.f32 %v1167, %v1169
    %v1171 = vadd.f32 %v1167, %v1170
    %vm1172 = vweird.f32 %v1166
    %vm1173 = vweird.f32 %v1167
    %vm1174 = vmor %vm1172, %vm1173
    %v1175 = vsel %vm1174, %v1167, %v1171
    %v1176 = vand.u32 2147483647, %v1166
    %vm1177 = vcmp.eq.f32.partialorder %v1176, 8.507059e+37
    %v1178 = vand.u32 %v1166, 2147483648
    %v1179 = vor.u32 1.1754944e-38, %v1178
    %v1180 = vsel %vm1177, %v1179, %v1175
    %v1181 = vmul.f32 1.0, %v1180
    %v1182 = vtanh.pop %v1162
    %v1184 = vrot.slane %v1043, 6
    %v1186 = vmul.f32 %v1181, %v1184
    %1188 = vrot.lane.b32.xlu0 %v1182, 96
    %v1189 = vpop.permute.xlu0 %1188
    %v1191 = vmul.f32 %v1181, %v1189
    %1193 = vrot.lane.b32.xlu0 %v1191, 16
    %v1194 = vpop.permute.xlu0 %1193
    %v1196 = vadd.f32 %v1186, %v1194
    %v1197 = vtanh.pop %v1196
    %1199 = vrot.lane.b32.xlu0 %v1197, 32
    %v1200 = vpop.permute.xlu0 %1199
    %v1202 = vmul.f32 %v1181, %v1200
    %v1204 = vrot.slane %v1202, 6
    %1205 = vrot.lane.b32.xlu0 %v1204, 80
    %v1206 = vpop.permute.xlu0 %1205
    %v1207 = vsel %vm80, %v1206, 0
    %1209 = vmatpush.msra.mxu0 0.0
    %1210 = vmatpush.msra.mxu0 0.0
    %1211 = vmatpush.msra.mxu0 0.0
    %1212 = vmatpush.msra.mxu0 0.0
    %1213 = vmatpush.msra.mxu0 0.0
    %1214 = vmatpush.msra.mxu0 0.0
    %1215 = vmatpush.msra.mxu0 0.0
    %1216 = vmatpush.msra.mxu0 0.0
    %1217 = vmatpush.msra.mxu0 0.0
    %1218 = vmatpush.msra.mxu0 0.0
    %1219 = vmatpush.msra.mxu0 0.0
    %1220 = vmatpush.msra.mxu0 0.0
    %1221 = vmatpush.msra.mxu0 0.0
    %1222 = vmatpush.msra.mxu0 0.0
    %1223 = vmatpush.msra.mxu0 %v73
    %1224 = vmatpush.msra.mxu0 %v72
    %1225 = vmatmul.f32.gmra.mxu0 %v1207
    %v1226 = vpop.f32.mrf.mxu0
    %v1227 = vadd.f32 %v78, %v1226
    %1228 = vdwg.mxu0
    %1230 = vrot.lane.b32.xlu0 %v1138, 80
    %v1231 = vpop.permute.xlu0 %1230
    %v1232 = vsel %vm80, %v1231, 0
    %1234 = vmatpush.msra.mxu0 0.0
    %1235 = vmatpush.msra.mxu0 0.0
    %1236 = vmatpush.msra.mxu0 0.0
    %1237 = vmatpush.msra.mxu0 0.0
    %1238 = vmatpush.msra.mxu0 0.0
    %1239 = vmatpush.msra.mxu0 0.0
    %1240 = vmatpush.msra.mxu0 0.0
    %1241 = vmatpush.msra.mxu0 0.0
    %1242 = vmatpush.msra.mxu0 0.0
    %1243 = vmatpush.msra.mxu0 0.0
    %1244 = vmatpush.msra.mxu0 0.0
    %1245 = vmatpush.msra.mxu0 0.0
    %1246 = vmatpush.msra.mxu0 0.0
    %1247 = vmatpush.msra.mxu0 0.0
    %1248 = vmatpush.msra.mxu0 %v75
    %1249 = vmatpush.msra.mxu0 %v74
    %1250 = vmatmul.f32.gmra.mxu0 %v1232
    %v1251 = vpop.f32.mrf.mxu0
    %v1252 = vadd.f32 0.0, %v1251
    %1253 = vdwg.mxu0
    %v1254 = vadd.f32 %v1227, %v1252
    %v1255 = vxor.u32 %v1254, 2147483648
    %v1256 = vmul.f32 %v1255, 1.442695
    %v1257 = vpow.pop %v1256
    %v1258 = vadd.f32 %v1257, 1.0
    %v1259 = vrcp.pop %v1258
    %v1260 = vmul.f32 %v1258, %v1259
    %v1261 = vsub.f32 1.0, %v1260
    %v1262 = vmul.f32 %v1259, %v1261
    %v1263 = vadd.f32 %v1259, %v1262
    %vm1264 = vweird.f32 %v1258
    %vm1265 = vweird.f32 %v1259
    %vm1266 = vmor %vm1264, %vm1265
    %v1267 = vsel %vm1266, %v1259, %v1263
    %v1268 = vand.u32 2147483647, %v1258
    %vm1269 = vcmp.eq.f32.partialorder %v1268, 8.507059e+37
    %v1270 = vand.u32 %v1258, 2147483648
    %v1271 = vor.u32 1.1754944e-38, %v1270
    %v1272 = vsel %vm1269, %v1271, %v1267
    %v1273 = vmul.f32 1.0, %v1272
    %v1274 = vtanh.pop %v1254
    %v1275 = vmul.f32 %v1273, %v1132
    %1277 = vrot.lane.b32.xlu0 %v1274, 96
    %v1278 = vpop.permute.xlu0 %1277
    %v1280 = vmul.f32 %v1273, %v1278
    %1282 = vrot.lane.b32.xlu0 %v1280, 16
    %v1283 = vpop.permute.xlu0 %1282
    %v1285 = vadd.f32 %v1275, %v1283
    %v1286 = vtanh.pop %v1285
    %1288 = vrot.lane.b32.xlu0 %v1286, 32
    %v1289 = vpop.permute.xlu0 %1288
    %v1291 = vmul.f32 %v1273, %v1289
    %v1292 = vld [vmem:[%s7] sm:$0xff]
    %v1293 = vld [vmem:[%s7 + $0x8] sm:$0xff]
    %v1294 = vld [vmem:[%s8] sm:$0x1]
    %v1296 = vperm.slane %v1294, 0
    %1299 = vrot.lane.b32.xlu0 %v1291, 80
    %v1300 = vpop.permute.xlu0 %1299
    %v1301 = vsel %vm80, %v1300, 0
    %1303 = vmatpush.msra.mxu0 0.0
    %1304 = vmatpush.msra.mxu0 0.0
    %1305 = vmatpush.msra.mxu0 0.0
    %1306 = vmatpush.msra.mxu0 0.0
    %1307 = vmatpush.msra.mxu0 0.0
    %1308 = vmatpush.msra.mxu0 0.0
    %1309 = vmatpush.msra.mxu0 0.0
    %1310 = vmatpush.msra.mxu0 0.0
    %1311 = vmatpush.msra.mxu0 0.0
    %1312 = vmatpush.msra.mxu0 0.0
    %1313 = vmatpush.msra.mxu0 0.0
    %1314 = vmatpush.msra.mxu0 0.0
    %1315 = vmatpush.msra.mxu0 0.0
    %1316 = vmatpush.msra.mxu0 0.0
    %1317 = vmatpush.msra.mxu0 %v1293
    %1318 = vmatpush.msra.mxu0 %v1292
    %1319 = vmatmul.f32.gmra.mxu0 %v1301
    %v1320 = vpop.f32.mrf.mxu0
    %v1321 = vadd.f32 %v1296, %v1320
    %1322 = vdwg.mxu0
    %vm1323 = vcmask 123904
    %v1324 = vsel %vm1323, %v1321, -inf
    %1325 = vmax.xlane.f32.xlu0 %v1324
    %v1326 = vpop.xlane.xlu0 %1325
    %v1327 = vsub.f32 %v1321, %v1326
    %v1328 = vmul.f32 %v1327, 1.442695
    %v1329 = vpow.pop %v1328
    %v1330 = vsel %vm1323, %v1329, 0.0
    %1331 = vadd.xlane.f32.xlu0 %v1330
    %v1332 = vpop.xlane.xlu0 %1331
    %v1333 = vrcp.pop %v1332
    %v1334 = vmul.f32 %v1329, %v1333
    %1335 = vst.msk [vmem:[#allocation2] sm:$0x3] %vm1323, %v1334
    // Predicated region
    $region38: #{forward.3} parent=1 // pred_check
      _
    $region39: #{forward.3} parent=1 // pred_check_branch
      %1337 = sbr.rel (0) target = $region41
    $region40: #{forward.3} parent=1 // pred_region
      %1339 = vsyncadd [#allocation3], 0
      %s1341 = sshll.u32 [#allocation2], 4
      %s1342 = int_to_ptr.vmem [resolvable:$true] %s1341
      %s1343 = sshll.u32 %s9, 4
      %s1344 = int_to_ptr.hbm [resolvable:$true] %s1343
      %1346 = dma.vmem_to_hbm [thread:$0]  %s1342, 32, %s1344, [#allocation3]
    $region41: #{forward.3} parent=1 // pred_fallthru
      _
    // Predicated region
    $region42: #{forward.3} parent=1 // pred_check
      _
    $region43: #{forward.3} parent=1 // pred_check_branch
      %1348 = sbr.rel (0) target = $region45
    $region44: #{forward.3} parent=1 // pred_region
      %1350 = dma.done [#allocation3], 32
    $region45: #{forward.3} parent=1 // pred_fallthru
      _
    %1351 = vsyncpa [#allocation3], 1

// kernel: forward.2
$region0: #{forward.2}
  #allocation0 [shape = 'u32[]', space=smem, size = 0x4, offset = 0x4, fixed_abs, tag = 'smem constant byte address 0x4 - core index']
  #allocation1 [shape = 'u32[72,128]{1,0:T(1,128)}', space=vmem, size = 0x9000, scoped, tag = 'internal scratch']
  %s0 = inlined_call_operand.vmem [shape: f32[16,4], index: 0, kind: input, shape index: {}]
  %s1 = inlined_call_operand.vmem [shape: f32[16,8], index: 1, kind: input, shape index: {}]
  %s2 = inlined_call_operand.vmem [shape: f32[1,16], index: 2, kind: input, shape index: {}]
  %s3 = inlined_call_operand.vmem [shape: f32[4,16], index: 3, kind: input, shape index: {}]
  %s4 = inlined_call_operand.vmem [shape: f32[1,16], index: 4, kind: input, shape index: {}]
  %s5 = inlined_call_operand.vmem [shape: f32[1,16], index: 5, kind: input, shape index: {}]
  %s6 = inlined_call_operand.vmem [shape: f32[4,16], index: 6, kind: input, shape index: {}]
  %s7 = inlined_call_operand.vmem [shape: f32[1,16], index: 7, kind: input, shape index: {}]
  %s8 = inlined_call_operand.vmem [shape: f32[16,8], index: 8, kind: input, shape index: {}]
  %s9 = inlined_call_operand.vmem [shape: f32[16,8], index: 9, kind: input, shape index: {}]
  %s10 = inlined_call_operand.vmem [shape: f32[1,8], index: 10, kind: input, shape index: {}]
  %s11 = inlined_call_operand.vmem [shape: f32[16,8], index: 11, kind: output, shape index: {}]
  %s12 = sld [smem:[#allocation0]]
  $region54: #{forward.2} parent=0
    _
  %s14 = ssub.s32 1, %s12
  %s15 = scalar_select 0, %s14, %s12
  // Predicated region
  $region2: #{forward.2} parent=0 // pred_check
    _
  $region3: #{forward.2} parent=0 // pred_check_branch
    %17 = sbr.rel (0) target = $region5
  $region4: #{forward.2} parent=0 // pred_region
    _
  $region5: #{forward.2} parent=0 // pred_fallthru
    _
  // Predicated region
  $region6: #{forward.2} parent=0 // pred_check
    _
  $region7: #{forward.2} parent=0 // pred_check_branch
    %19 = sbr.rel (0) target = $region9
  $region8: #{forward.2} parent=0 // pred_region
    _
  $region9: #{forward.2} parent=0 // pred_fallthru
    _
  // Predicated region
  $region10: #{forward.2} parent=0 // pred_check
    _
  $region11: #{forward.2} parent=0 // pred_check_branch
    %21 = sbr.rel (0) target = $region13
  $region12: #{forward.2} parent=0 // pred_region
    _
  $region13: #{forward.2} parent=0 // pred_fallthru
    _
  // Predicated region
  $region14: #{forward.2} parent=0 // pred_check
    _
  $region15: #{forward.2} parent=0 // pred_check_branch
    %23 = sbr.rel (0) target = $region17
  $region16: #{forward.2} parent=0 // pred_region
    _
  $region17: #{forward.2} parent=0 // pred_fallthru
    _
  // Predicated region
  $region18: #{forward.2} parent=0 // pred_check
    _
  $region19: #{forward.2} parent=0 // pred_check_branch
    %25 = sbr.rel (0) target = $region21
  $region20: #{forward.2} parent=0 // pred_region
    _
  $region21: #{forward.2} parent=0 // pred_fallthru
    _
  // Predicated region
  $region22: #{forward.2} parent=0 // pred_check
    _
  $region23: #{forward.2} parent=0 // pred_check_branch
    %27 = sbr.rel (0) target = $region25
  $region24: #{forward.2} parent=0 // pred_region
    _
  $region25: #{forward.2} parent=0 // pred_fallthru
    _
  // Predicated region
  $region26: #{forward.2} parent=0 // pred_check
    _
  $region27: #{forward.2} parent=0 // pred_check_branch
    %29 = sbr.rel (0) target = $region29
  $region28: #{forward.2} parent=0 // pred_region
    _
  $region29: #{forward.2} parent=0 // pred_fallthru
    _
  // Predicated region
  $region30: #{forward.2} parent=0 // pred_check
    _
  $region31: #{forward.2} parent=0 // pred_check_branch
    %31 = sbr.rel (0) target = $region33
  $region32: #{forward.2} parent=0 // pred_region
    _
  $region33: #{forward.2} parent=0 // pred_fallthru
    _
  // Predicated region
  $region34: #{forward.2} parent=0 // pred_check
    _
  $region35: #{forward.2} parent=0 // pred_check_branch
    %33 = sbr.rel (0) target = $region37
  $region36: #{forward.2} parent=0 // pred_region
    _
  $region37: #{forward.2} parent=0 // pred_fallthru
    _
  // Predicated region
  $region38: #{forward.2} parent=0 // pred_check
    _
  $region39: #{forward.2} parent=0 // pred_check_branch
    %35 = sbr.rel (0) target = $region41
  $region40: #{forward.2} parent=0 // pred_region
    _
  $region41: #{forward.2} parent=0 // pred_fallthru
    _
  // Predicated region
  $region42: #{forward.2} parent=0 // pred_check
    _
  $region43: #{forward.2} parent=0 // pred_check_branch
    %37 = sbr.rel (0) target = $region45
  $region44: #{forward.2} parent=0 // pred_region
    _
  $region45: #{forward.2} parent=0 // pred_fallthru
    _
  %v38 = vld [vmem:[%s0] sm:$0xff]
  %v39 = vld [vmem:[%s0 + $0x8] sm:$0xff]
  %v40 = vld [vmem:[%s3] sm:$0xf]
  %v41 = vld [vmem:[%s8] sm:$0xff]
  %v42 = vld [vmem:[%s8 + $0x8] sm:$0xff]
  %v43 = vld [vmem:[%s2] sm:$0x1]
  %v45 = vperm.slane %v43, 0
  %v47 = vld [vmem:[%s4] sm:$0x1]
  %v49 = vperm.slane %v47, 0
  %52 = vset.pattern.permute.xlu0 0
  %53 = vperm.xlu0 %52, %v38
  %v54 = vpop.permute.xlu0 %53
  %57 = vset.pattern.permute.xlu0 0
  %58 = vperm.xlu0 %57, %v39
  %v59 = vpop.permute.xlu0 %58
  %v61 = vmul.f32 %v54, %v45
  %v62 = vmul.f32 %v59, %v45
  %v63 = vadd.f32 %v61, %v49
  %v64 = vadd.f32 %v62, %v49
  %vm65 = vcmask 31744
  %v67 = vsel %vm65, 0.0, 0
  %vm69 = vcmask 1043456
  %v71 = vsel %vm69, %v40, 0
  %73 = vmatpush.msra.mxu0 0.0
  %74 = vmatpush.msra.mxu0 0.0
  %75 = vmatpush.msra.mxu0 0.0
  %76 = vmatpush.msra.mxu0 0.0
  %77 = vmatpush.msra.mxu0 0.0
  %78 = vmatpush.msra.mxu0 0.0
  %79 = vmatpush.msra.mxu0 0.0
  %80 = vmatpush.msra.mxu0 0.0
  %81 = vmatpush.msra.mxu0 0.0
  %82 = vmatpush.msra.mxu0 0.0
  %83 = vmatpush.msra.mxu0 0.0
  %84 = vmatpush.msra.mxu0 0.0
  %85 = vmatpush.msra.mxu0 0.0
  %86 = vmatpush.msra.mxu0 0.0
  %87 = vmatpush.msra.mxu0 0.0
  %88 = vmatpush.msra.mxu0 %v71
  %89 = vmatmul.f32.gmra.mxu0 %v67
  %v90 = vpop.f32.mrf.mxu0
  %v91 = vadd.f32 0.0, %v90
  %92 = vmatmul.f32.gmra.mxu0 %v67
  %v93 = vpop.f32.mrf.mxu0
  %v94 = vadd.f32 0.0, %v93
  %95 = vdwg.mxu0
  %v96 = vadd.f32 %v63, %v91
  %v97 = vadd.f32 %v64, %v94
  %v98 = vxor.u32 %v96, 2147483648
  %v99 = vxor.u32 %v97, 2147483648
  %v100 = vmul.f32 %v98, 1.442695
  %v101 = vpow.pop %v100
  %v102 = vmul.f32 %v99, 1.442695
  %v103 = vpow.pop %v102
  %v104 = vadd.f32 %v101, 1.0
  %v105 = vadd.f32 %v103, 1.0
  %v106 = vrcp.pop %v104
  %v107 = vmul.f32 %v104, %v106
  %v108 = vsub.f32 1.0, %v107
  %v109 = vmul.f32 %v106, %v108
  %v110 = vadd.f32 %v106, %v109
  %vm111 = vweird.f32 %v104
  %vm112 = vweird.f32 %v106
  %vm113 = vmor %vm111, %vm112
  %v114 = vsel %vm113, %v106, %v110
  %v115 = vand.u32 2147483647, %v104
  %vm116 = vcmp.eq.f32.partialorder %v115, 8.507059e+37
  %v117 = vand.u32 %v104, 2147483648
  %v118 = vor.u32 1.1754944e-38, %v117
  %v119 = vsel %vm116, %v118, %v114
  %v120 = vmul.f32 1.0, %v119
  %v121 = vrcp.pop %v105
  %v122 = vmul.f32 %v105, %v121
  %v123 = vsub.f32 1.0, %v122
  %v124 = vmul.f32 %v121, %v123
  %v125 = vadd.f32 %v121, %v124
  %vm126 = vweird.f32 %v105
  %vm127 = vweird.f32 %v121
  %vm128 = vmor %vm126, %vm127
  %v129 = vsel %vm128, %v121, %v125
  %v130 = vand.u32 2147483647, %v105
  %vm131 = vcmp.eq.f32.partialorder %v130, 8.507059e+37
  %v132 = vand.u32 %v105, 2147483648
  %v133 = vor.u32 1.1754944e-38, %v132
  %v134 = vsel %vm131, %v133, %v129
  %v135 = vmul.f32 1.0, %v134
  %v136 = vtanh.pop %v96
  %v137 = vtanh.pop %v97
  %v138 = vmul.f32 %v120, 0.0
  %v139 = vmul.f32 %v135, 0.0
  %142 = vrot.lane.b32.xlu0 %v136, 120
  %v143 = vpop.permute.xlu0 %142
  %144 = vrot.lane.b32.xlu0 %v137, 120
  %v145 = vpop.permute.xlu0 %144
  %v148 = vmul.f32 %v120, %v143
  %v149 = vmul.f32 %v135, %v145
  %152 = vrot.lane.b32.xlu0 %v148, 4
  %v153 = vpop.permute.xlu0 %152
  %154 = vrot.lane.b32.xlu0 %v149, 4
  %v155 = vpop.permute.xlu0 %154
  %v158 = vadd.f32 %v138, %v153
  %v159 = vadd.f32 %v139, %v155
  %v160 = vtanh.pop %v158
  %v161 = vtanh.pop %v159
  %164 = vrot.lane.b32.xlu0 %v160, 8
  %v165 = vpop.permute.xlu0 %164
  %166 = vrot.lane.b32.xlu0 %v161, 8
  %v167 = vpop.permute.xlu0 %166
  %v170 = vmul.f32 %v120, %v165
  %v171 = vmul.f32 %v135, %v167
  %172 = vset.pattern.permute.xlu0 1
  %173 = vperm.xlu0 %172, %v38
  %v174 = vpop.permute.xlu0 %173
  %176 = vset.pattern.permute.xlu0 1
  %177 = vperm.xlu0 %176, %v39
  %v178 = vpop.permute.xlu0 %177
  %v180 = vmul.f32 %v174, %v45
  %v181 = vmul.f32 %v178, %v45
  %v182 = vadd.f32 %v180, %v49
  %v183 = vadd.f32 %v181, %v49
  %186 = vrot.lane.b32.xlu0 %v170, 116
  %v187 = vpop.permute.xlu0 %186
  %188 = vrot.lane.b32.xlu0 %v171, 116
  %v189 = vpop.permute.xlu0 %188
  %v190 = vsel %vm65, %v187, 0
  %v192 = vsel %vm65, %v189, 0
  %194 = vmatpush.msra.mxu0 0.0
  %195 = vmatpush.msra.mxu0 0.0
  %196 = vmatpush.msra.mxu0 0.0
  %197 = vmatpush.msra.mxu0 0.0
  %198 = vmatpush.msra.mxu0 0.0
  %199 = vmatpush.msra.mxu0 0.0
  %200 = vmatpush.msra.mxu0 0.0
  %201 = vmatpush.msra.mxu0 0.0
  %202 = vmatpush.msra.mxu0 0.0
  %203 = vmatpush.msra.mxu0 0.0
  %204 = vmatpush.msra.mxu0 0.0
  %205 = vmatpush.msra.mxu0 0.0
  %206 = vmatpush.msra.mxu0 0.0
  %207 = vmatpush.msra.mxu0 0.0
  %208 = vmatpush.msra.mxu0 0.0
  %209 = vmatpush.msra.mxu0 %v71
  %210 = vmatmul.f32.gmra.mxu0 %v190
  %v211 = vpop.f32.mrf.mxu0
  %v212 = vadd.f32 0.0, %v211
  %213 = vmatmul.f32.gmra.mxu0 %v192
  %v214 = vpop.f32.mrf.mxu0
  %v215 = vadd.f32 0.0, %v214
  %216 = vdwg.mxu0
  %v217 = vadd.f32 %v182, %v212
  %v218 = vadd.f32 %v183, %v215
  %v219 = vxor.u32 %v217, 2147483648
  %v220 = vxor.u32 %v218, 2147483648
  %v221 = vmul.f32 %v219, 1.442695
  %v222 = vpow.pop %v221
  %v223 = vmul.f32 %v220, 1.442695
  %v224 = vpow.pop %v223
  %v225 = vadd.f32 %v222, 1.0
  %v226 = vadd.f32 %v224, 1.0
  %v227 = vrcp.pop %v225
  %v228 = vmul.f32 %v225, %v227
  %v229 = vsub.f32 1.0, %v228
  %v230 = vmul.f32 %v227, %v229
  %v231 = vadd.f32 %v227, %v230
  %vm232 = vweird.f32 %v225
  %vm233 = vweird.f32 %v227
  %vm234 = vmor %vm232, %vm233
  %v235 = vsel %vm234, %v227, %v231
  %v236 = vand.u32 2147483647, %v225
  %vm237 = vcmp.eq.f32.partialorder %v236, 8.507059e+37
  %v238 = vand.u32 %v225, 2147483648
  %v239 = vor.u32 1.1754944e-38, %v238
  %v240 = vsel %vm237, %v239, %v235
  %v241 = vmul.f32 1.0, %v240
  %v242 = vrcp.pop %v226
  %v243 = vmul.f32 %v226, %v242
  %v244 = vsub.f32 1.0, %v243
  %v245 = vmul.f32 %v242, %v244
  %v246 = vadd.f32 %v242, %v245
  %vm247 = vweird.f32 %v226
  %vm248 = vweird.f32 %v242
  %vm249 = vmor %vm247, %vm248
  %v250 = vsel %vm249, %v242, %v246
  %v251 = vand.u32 2147483647, %v226
  %vm252 = vcmp.eq.f32.partialorder %v251, 8.507059e+37
  %v253 = vand.u32 %v226, 2147483648
  %v254 = vor.u32 1.1754944e-38, %v253
  %v255 = vsel %vm252, %v254, %v250
  %v256 = vmul.f32 1.0, %v255
  %v257 = vtanh.pop %v217
  %v258 = vtanh.pop %v218
  %v259 = vmul.f32 %v241, %v158
  %v260 = vmul.f32 %v256, %v159
  %263 = vrot.lane.b32.xlu0 %v257, 120
  %v264 = vpop.permute.xlu0 %263
  %265 = vrot.lane.b32.xlu0 %v258, 120
  %v266 = vpop.permute.xlu0 %265
  %v269 = vmul.f32 %v241, %v264
  %v270 = vmul.f32 %v256, %v266
  %273 = vrot.lane.b32.xlu0 %v269, 4
  %v274 = vpop.permute.xlu0 %273
  %275 = vrot.lane.b32.xlu0 %v270, 4
  %v276 = vpop.permute.xlu0 %275
  %v279 = vadd.f32 %v259, %v274
  %v280 = vadd.f32 %v260, %v276
  %v281 = vtanh.pop %v279
  %v282 = vtanh.pop %v280
  %285 = vrot.lane.b32.xlu0 %v281, 8
  %v286 = vpop.permute.xlu0 %285
  %287 = vrot.lane.b32.xlu0 %v282, 8
  %v288 = vpop.permute.xlu0 %287
  %v291 = vmul.f32 %v241, %v286
  %v292 = vmul.f32 %v256, %v288
  %295 = vrot.lane.b32.xlu0 %v291, 116
  %v296 = vpop.permute.xlu0 %295
  %297 = vrot.lane.b32.xlu0 %v292, 116
  %v298 = vpop.permute.xlu0 %297
  %v300 = vrot.slane %v41, 4
  %v301 = vsel %vm65, %v296, 0
  %v303 = vsel %vm65, %v298, 0
  %v305 = vsel %vm69, %v300, 0
  %307 = vmatpush.msra.mxu0 0.0
  %308 = vmatpush.msra.mxu0 0.0
  %309 = vmatpush.msra.mxu0 0.0
  %310 = vmatpush.msra.mxu0 0.0
  %311 = vmatpush.msra.mxu0 0.0
  %312 = vmatpush.msra.mxu0 0.0
  %313 = vmatpush.msra.mxu0 0.0
  %314 = vmatpush.msra.mxu0 0.0
  %315 = vmatpush.msra.mxu0 0.0
  %316 = vmatpush.msra.mxu0 0.0
  %317 = vmatpush.msra.mxu0 0.0
  %318 = vmatpush.msra.mxu0 0.0
  %319 = vmatpush.msra.mxu0 0.0
  %320 = vmatpush.msra.mxu0 0.0
  %321 = vmatpush.msra.mxu0 0.0
  %322 = vmatpush.msra.mxu0 %v305
  %323 = vmatmul.f32.gmra.mxu0 %v301
  %v324 = vpop.f32.mrf.mxu0
  %v325 = vadd.f32 0.0, %v324
  %326 = vmatmul.f32.gmra.mxu0 %v303
  %v327 = vpop.f32.mrf.mxu0
  %v328 = vadd.f32 0.0, %v327
  %329 = vdwg.mxu0
  %v330 = vsel %vm69, %v41, 0
  %332 = vmatpush.msra.mxu0 0.0
  %333 = vmatpush.msra.mxu0 0.0
  %334 = vmatpush.msra.mxu0 0.0
  %335 = vmatpush.msra.mxu0 0.0
  %336 = vmatpush.msra.mxu0 0.0
  %337 = vmatpush.msra.mxu0 0.0
  %338 = vmatpush.msra.mxu0 0.0
  %339 = vmatpush.msra.mxu0 0.0
  %340 = vmatpush.msra.mxu0 0.0
  %341 = vmatpush.msra.mxu0 0.0
  %342 = vmatpush.msra.mxu0 0.0
  %343 = vmatpush.msra.mxu0 0.0
  %344 = vmatpush.msra.mxu0 0.0
  %345 = vmatpush.msra.mxu0 0.0
  %346 = vmatpush.msra.mxu0 0.0
  %347 = vmatpush.msra.mxu0 %v330
  %348 = vmatmul.f32.gmra.mxu0 %v190
  %v349 = vpop.f32.mrf.mxu0
  %v350 = vadd.f32 %v325, %v349
  %351 = vmatmul.f32.gmra.mxu0 %v192
  %v352 = vpop.f32.mrf.mxu0
  %v353 = vadd.f32 %v328, %v352
  %354 = vdwg.mxu0
  %355 = vset.pattern.permute.xlu0 2
  %356 = vperm.xlu0 %355, %v38
  %v357 = vpop.permute.xlu0 %356
  %359 = vset.pattern.permute.xlu0 2
  %360 = vperm.xlu0 %359, %v39
  %v361 = vpop.permute.xlu0 %360
  %v363 = vmul.f32 %v357, %v45
  %v364 = vmul.f32 %v361, %v45
  %v365 = vadd.f32 %v363, %v49
  %v366 = vadd.f32 %v364, %v49
  %367 = vmatpush.msra.mxu0 0.0
  %368 = vmatpush.msra.mxu0 0.0
  %369 = vmatpush.msra.mxu0 0.0
  %370 = vmatpush.msra.mxu0 0.0
  %371 = vmatpush.msra.mxu0 0.0
  %372 = vmatpush.msra.mxu0 0.0
  %373 = vmatpush.msra.mxu0 0.0
  %374 = vmatpush.msra.mxu0 0.0
  %375 = vmatpush.msra.mxu0 0.0
  %376 = vmatpush.msra.mxu0 0.0
  %377 = vmatpush.msra.mxu0 0.0
  %378 = vmatpush.msra.mxu0 0.0
  %379 = vmatpush.msra.mxu0 0.0
  %380 = vmatpush.msra.mxu0 0.0
  %381 = vmatpush.msra.mxu0 0.0
  %382 = vmatpush.msra.mxu0 %v71
  %383 = vmatmul.f32.gmra.mxu0 %v301
  %v384 = vpop.f32.mrf.mxu0
  %v385 = vadd.f32 0.0, %v384
  %386 = vmatmul.f32.gmra.mxu0 %v303
  %v387 = vpop.f32.mrf.mxu0
  %v388 = vadd.f32 0.0, %v387
  %389 = vdwg.mxu0
  %v390 = vadd.f32 %v365, %v385
  %v391 = vadd.f32 %v366, %v388
  %v392 = vxor.u32 %v390, 2147483648
  %v393 = vxor.u32 %v391, 2147483648
  %v394 = vmul.f32 %v392, 1.442695
  %v395 = vpow.pop %v394
  %v396 = vmul.f32 %v393, 1.442695
  %v397 = vpow.pop %v396
  %v398 = vadd.f32 %v395, 1.0
  %v399 = vadd.f32 %v397, 1.0
  %v400 = vrcp.pop %v398
  %v401 = vmul.f32 %v398, %v400
  %v402 = vsub.f32 1.0, %v401
  %v403 = vmul.f32 %v400, %v402
  %v404 = vadd.f32 %v400, %v403
  %vm405 = vweird.f32 %v398
  %vm406 = vweird.f32 %v400
  %vm407 = vmor %vm405, %vm406
  %v408 = vsel %vm407, %v400, %v404
  %v409 = vand.u32 2147483647, %v398
  %vm410 = vcmp.eq.f32.partialorder %v409, 8.507059e+37
  %v411 = vand.u32 %v398, 2147483648
  %v412 = vor.u32 1.1754944e-38, %v411
  %v413 = vsel %vm410, %v412, %v408
  %v414 = vmul.f32 1.0, %v413
  %v415 = vrcp.pop %v399
  %v416 = vmul.f32 %v399, %v415
  %v417 = vsub.f32 1.0, %v416
  %v418 = vmul.f32 %v415, %v417
  %v419 = vadd.f32 %v415, %v418
  %vm420 = vweird.f32 %v399
  %vm421 = vweird.f32 %v415
  %vm422 = vmor %vm420, %vm421
  %v423 = vsel %vm422, %v415, %v419
  %v424 = vand.u32 2147483647, %v399
  %vm425 = vcmp.eq.f32.partialorder %v424, 8.507059e+37
  %v426 = vand.u32 %v399, 2147483648
  %v427 = vor.u32 1.1754944e-38, %v426
  %v428 = vsel %vm425, %v427, %v423
  %v429 = vmul.f32 1.0, %v428
  %v430 = vtanh.pop %v390
  %v431 = vtanh.pop %v391
  %v432 = vmul.f32 %v414, %v279
  %v433 = vmul.f32 %v429, %v280
  %436 = vrot.lane.b32.xlu0 %v430, 120
  %v437 = vpop.permute.xlu0 %436
  %438 = vrot.lane.b32.xlu0 %v431, 120
  %v439 = vpop.permute.xlu0 %438
  %v442 = vmul.f32 %v414, %v437
  %v443 = vmul.f32 %v429, %v439
  %446 = vrot.lane.b32.xlu0 %v442, 4
  %v447 = vpop.permute.xlu0 %446
  %448 = vrot.lane.b32.xlu0 %v443, 4
  %v449 = vpop.permute.xlu0 %448
  %v452 = vadd.f32 %v432, %v447
  %v453 = vadd.f32 %v433, %v449
  %v454 = vtanh.pop %v452
  %v455 = vtanh.pop %v453
  %458 = vrot.lane.b32.xlu0 %v454, 8
  %v459 = vpop.permute.xlu0 %458
  %460 = vrot.lane.b32.xlu0 %v455, 8
  %v461 = vpop.permute.xlu0 %460
  %v464 = vmul.f32 %v414, %v459
  %v465 = vmul.f32 %v429, %v461
  %468 = vrot.lane.b32.xlu0 %v464, 116
  %v469 = vpop.permute.xlu0 %468
  %470 = vrot.lane.b32.xlu0 %v465, 116
  %v471 = vpop.permute.xlu0 %470
  %v472 = vsel %vm65, %v469, 0
  %v474 = vsel %vm65, %v471, 0
  %v477 = vsel %vm69, %v42, 0
  %479 = vmatpush.msra.mxu0 0.0
  %480 = vmatpush.msra.mxu0 0.0
  %481 = vmatpush.msra.mxu0 0.0
  %482 = vmatpush.msra.mxu0 0.0
  %483 = vmatpush.msra.mxu0 0.0
  %484 = vmatpush.msra.mxu0 0.0
  %485 = vmatpush.msra.mxu0 0.0
  %486 = vmatpush.msra.mxu0 0.0
  %487 = vmatpush.msra.mxu0 0.0
  %488 = vmatpush.msra.mxu0 0.0
  %489 = vmatpush.msra.mxu0 0.0
  %490 = vmatpush.msra.mxu0 0.0
  %491 = vmatpush.msra.mxu0 0.0
  %492 = vmatpush.msra.mxu0 0.0
  %493 = vmatpush.msra.mxu0 0.0
  %494 = vmatpush.msra.mxu0 %v477
  %495 = vmatmul.f32.gmra.mxu0 %v472
  %v496 = vpop.f32.mrf.mxu0
  %v497 = vadd.f32 0.0, %v496
  %498 = vmatmul.f32.gmra.mxu0 %v474
  %v499 = vpop.f32.mrf.mxu0
  %v500 = vadd.f32 0.0, %v499
  %501 = vdwg.mxu0
  %v502 = vadd.f32 %v350, %v497
  %v503 = vadd.f32 %v353, %v500
  %504 = vset.pattern.permute.xlu0 3
  %505 = vperm.xlu0 %504, %v38
  %v506 = vpop.permute.xlu0 %505
  %508 = vset.pattern.permute.xlu0 3
  %509 = vperm.xlu0 %508, %v39
  %v510 = vpop.permute.xlu0 %509
  %v512 = vmul.f32 %v506, %v45
  %v513 = vmul.f32 %v510, %v45
  %v514 = vadd.f32 %v512, %v49
  %v515 = vadd.f32 %v513, %v49
  %516 = vmatpush.msra.mxu0 0.0
  %517 = vmatpush.msra.mxu0 0.0
  %518 = vmatpush.msra.mxu0 0.0
  %519 = vmatpush.msra.mxu0 0.0
  %520 = vmatpush.msra.mxu0 0.0
  %521 = vmatpush.msra.mxu0 0.0
  %522 = vmatpush.msra.mxu0 0.0
  %523 = vmatpush.msra.mxu0 0.0
  %524 = vmatpush.msra.mxu0 0.0
  %525 = vmatpush.msra.mxu0 0.0
  %526 = vmatpush.msra.mxu0 0.0
  %527 = vmatpush.msra.mxu0 0.0
  %528 = vmatpush.msra.mxu0 0.0
  %529 = vmatpush.msra.mxu0 0.0
  %530 = vmatpush.msra.mxu0 0.0
  %531 = vmatpush.msra.mxu0 %v71
  %532 = vmatmul.f32.gmra.mxu0 %v472
  %v533 = vpop.f32.mrf.mxu0
  %v534 = vadd.f32 0.0, %v533
  %535 = vmatmul.f32.gmra.mxu0 %v474
  %v536 = vpop.f32.mrf.mxu0
  %v537 = vadd.f32 0.0, %v536
  %538 = vdwg.mxu0
  %v539 = vadd.f32 %v514, %v534
  %v540 = vadd.f32 %v515, %v537
  %v541 = vxor.u32 %v539, 2147483648
  %v542 = vxor.u32 %v540, 2147483648
  %v543 = vmul.f32 %v541, 1.442695
  %v544 = vpow.pop %v543
  %v545 = vmul.f32 %v542, 1.442695
  %v546 = vpow.pop %v545
  %v547 = vadd.f32 %v544, 1.0
  %v548 = vadd.f32 %v546, 1.0
  %v549 = vrcp.pop %v547
  %v550 = vmul.f32 %v547, %v549
  %v551 = vsub.f32 1.0, %v550
  %v552 = vmul.f32 %v549, %v551
  %v553 = vadd.f32 %v549, %v552
  %vm554 = vweird.f32 %v547
  %vm555 = vweird.f32 %v549
  %vm556 = vmor %vm554, %vm555
  %v557 = vsel %vm556, %v549, %v553
  %v558 = vand.u32 2147483647, %v547
  %vm559 = vcmp.eq.f32.partialorder %v558, 8.507059e+37
  %v560 = vand.u32 %v547, 2147483648
  %v561 = vor.u32 1.1754944e-38, %v560
  %v562 = vsel %vm559, %v561, %v557
  %v563 = vmul.f32 1.0, %v562
  %v564 = vrcp.pop %v548
  %v565 = vmul.f32 %v548, %v564
  %v566 = vsub.f32 1.0, %v565
  %v567 = vmul.f32 %v564, %v566
  %v568 = vadd.f32 %v564, %v567
  %vm569 = vweird.f32 %v548
  %vm570 = vweird.f32 %v564
  %vm571 = vmor %vm569, %vm570
  %v572 = vsel %vm571, %v564, %v568
  %v573 = vand.u32 2147483647, %v548
  %vm574 = vcmp.eq.f32.partialorder %v573, 8.507059e+37
  %v575 = vand.u32 %v548, 2147483648
  %v576 = vor.u32 1.1754944e-38, %v575
  %v577 = vsel %vm574, %v576, %v572
  %v578 = vmul.f32 1.0, %v577
  %v579 = vtanh.pop %v539
  %v580 = vtanh.pop %v540
  %v581 = vmul.f32 %v563, %v452
  %v582 = vmul.f32 %v578, %v453
  %585 = vrot.lane.b32.xlu0 %v579, 120
  %v586 = vpop.permute.xlu0 %585
  %587 = vrot.lane.b32.xlu0 %v580, 120
  %v588 = vpop.permute.xlu0 %587
  %v591 = vmul.f32 %v563, %v586
  %v592 = vmul.f32 %v578, %v588
  %595 = vrot.lane.b32.xlu0 %v591, 4
  %v596 = vpop.permute.xlu0 %595
  %597 = vrot.lane.b32.xlu0 %v592, 4
  %v598 = vpop.permute.xlu0 %597
  %v601 = vadd.f32 %v581, %v596
  %v602 = vadd.f32 %v582, %v598
  %v603 = vtanh.pop %v601
  %v604 = vtanh.pop %v602
  %607 = vrot.lane.b32.xlu0 %v603, 8
  %v608 = vpop.permute.xlu0 %607
  %609 = vrot.lane.b32.xlu0 %v604, 8
  %v610 = vpop.permute.xlu0 %609
  %v613 = vmul.f32 %v563, %v608
  %v614 = vmul.f32 %v578, %v610
  %617 = vrot.lane.b32.xlu0 %v613, 116
  %v618 = vpop.permute.xlu0 %617
  %619 = vrot.lane.b32.xlu0 %v614, 116
  %v620 = vpop.permute.xlu0 %619
  %v621 = vrot.slane %v42, 4
  %v622 = vsel %vm65, %v618, 0
  %v624 = vsel %vm65, %v620, 0
  %v626 = vsel %vm69, %v621, 0
  %628 = vmatpush.msra.mxu0 0.0
  %629 = vmatpush.msra.mxu0 0.0
  %630 = vmatpush.msra.mxu0 0.0
  %631 = vmatpush.msra.mxu0 0.0
  %632 = vmatpush.msra.mxu0 0.0
  %633 = vmatpush.msra.mxu0 0.0
  %634 = vmatpush.msra.mxu0 0.0
  %635 = vmatpush.msra.mxu0 0.0
  %636 = vmatpush.msra.mxu0 0.0
  %637 = vmatpush.msra.mxu0 0.0
  %638 = vmatpush.msra.mxu0 0.0
  %639 = vmatpush.msra.mxu0 0.0
  %640 = vmatpush.msra.mxu0 0.0
  %641 = vmatpush.msra.mxu0 0.0
  %642 = vmatpush.msra.mxu0 0.0
  %643 = vmatpush.msra.mxu0 %v626
  %644 = vmatmul.f32.gmra.mxu0 %v622
  %v645 = vpop.f32.mrf.mxu0
  %v646 = vadd.f32 0.0, %v645
  %647 = vmatmul.f32.gmra.mxu0 %v624
  %v648 = vpop.f32.mrf.mxu0
  %v649 = vadd.f32 0.0, %v648
  %650 = vdwg.mxu0
  %v651 = vadd.f32 %v502, %v646
  %v652 = vadd.f32 %v503, %v649
  %v653 = vld [vmem:[%s6] sm:$0xf]
  %v654 = vld [vmem:[%s9] sm:$0xff]
  %v655 = vld [vmem:[%s9 + $0x8] sm:$0xff]
  %v656 = vld [vmem:[%s5] sm:$0x1]
  %v658 = vperm.slane %v656, 0
  %v660 = vld [vmem:[%s7] sm:$0x1]
  %v662 = vperm.slane %v660, 0
  %v664 = vmul.f32 %v506, %v658
  %v665 = vmul.f32 %v510, %v658
  %v666 = vadd.f32 %v664, %v662
  %v667 = vadd.f32 %v665, %v662
  %v669 = vsel %vm69, %v653, 0
  %671 = vmatpush.msra.mxu0 0.0
  %672 = vmatpush.msra.mxu0 0.0
  %673 = vmatpush.msra.mxu0 0.0
  %674 = vmatpush.msra.mxu0 0.0
  %675 = vmatpush.msra.mxu0 0.0
  %676 = vmatpush.msra.mxu0 0.0
  %677 = vmatpush.msra.mxu0 0.0
  %678 = vmatpush.msra.mxu0 0.0
  %679 = vmatpush.msra.mxu0 0.0
  %680 = vmatpush.msra.mxu0 0.0
  %681 = vmatpush.msra.mxu0 0.0
  %682 = vmatpush.msra.mxu0 0.0
  %683 = vmatpush.msra.mxu0 0.0
  %684 = vmatpush.msra.mxu0 0.0
  %685 = vmatpush.msra.mxu0 0.0
  %686 = vmatpush.msra.mxu0 %v669
  %687 = vmatmul.f32.gmra.mxu0 %v67
  %v688 = vpop.f32.mrf.mxu0
  %v689 = vadd.f32 0.0, %v688
  %690 = vmatmul.f32.gmra.mxu0 %v67
  %v691 = vpop.f32.mrf.mxu0
  %v692 = vadd.f32 0.0, %v691
  %693 = vdwg.mxu0
  %v694 = vadd.f32 %v666, %v689
  %v695 = vadd.f32 %v667, %v692
  %v696 = vxor.u32 %v694, 2147483648
  %v697 = vxor.u32 %v695, 2147483648
  %v698 = vmul.f32 %v696, 1.442695
  %v699 = vpow.pop %v698
  %v700 = vmul.f32 %v697, 1.442695
  %v701 = vpow.pop %v700
  %v702 = vadd.f32 %v699, 1.0
  %v703 = vadd.f32 %v701, 1.0
  %v704 = vrcp.pop %v702
  %v705 = vmul.f32 %v702, %v704
  %v706 = vsub.f32 1.0, %v705
  %v707 = vmul.f32 %v704, %v706
  %v708 = vadd.f32 %v704, %v707
  %vm709 = vweird.f32 %v702
  %vm710 = vweird.f32 %v704
  %vm711 = vmor %vm709, %vm710
  %v712 = vsel %vm711, %v704, %v708
  %v713 = vand.u32 2147483647, %v702
  %vm714 = vcmp.eq.f32.partialorder %v713, 8.507059e+37
  %v715 = vand.u32 %v702, 2147483648
  %v716 = vor.u32 1.1754944e-38, %v715
  %v717 = vsel %vm714, %v716, %v712
  %v718 = vmul.f32 1.0, %v717
  %v719 = vrcp.pop %v703
  %v720 = vmul.f32 %v703, %v719
  %v721 = vsub.f32 1.0, %v720
  %v722 = vmul.f32 %v719, %v721
  %v723 = vadd.f32 %v719, %v722
  %vm724 = vweird.f32 %v703
  %vm725 = vweird.f32 %v719
  %vm726 = vmor %vm724, %vm725
  %v727 = vsel %vm726, %v719, %v723
  %v728 = vand.u32 2147483647, %v703
  %vm729 = vcmp.eq.f32.partialorder %v728, 8.507059e+37
  %v730 = vand.u32 %v703, 2147483648
  %v731 = vor.u32 1.1754944e-38, %v730
  %v732 = vsel %vm729, %v731, %v727
  %v733 = vmul.f32 1.0, %v732
  %v734 = vtanh.pop %v694
  %v735 = vtanh.pop %v695
  %v736 = vmul.f32 %v718, 0.0
  %v737 = vmul.f32 %v733, 0.0
  %740 = vrot.lane.b32.xlu0 %v734, 120
  %v741 = vpop.permute.xlu0 %740
  %742 = vrot.lane.b32.xlu0 %v735, 120
  %v743 = vpop.permute.xlu0 %742
  %v746 = vmul.f32 %v718, %v741
  %v747 = vmul.f32 %v733, %v743
  %750 = vrot.lane.b32.xlu0 %v746, 4
  %v751 = vpop.permute.xlu0 %750
  %752 = vrot.lane.b32.xlu0 %v747, 4
  %v753 = vpop.permute.xlu0 %752
  %v756 = vadd.f32 %v736, %v751
  %v757 = vadd.f32 %v737, %v753
  %v758 = vtanh.pop %v756
  %v759 = vtanh.pop %v757
  %762 = vrot.lane.b32.xlu0 %v758, 8
  %v763 = vpop.permute.xlu0 %762
  %764 = vrot.lane.b32.xlu0 %v759, 8
  %v765 = vpop.permute.xlu0 %764
  %v768 = vmul.f32 %v718, %v763
  %v769 = vmul.f32 %v733, %v765
  %v770 = vmul.f32 %v357, %v658
  %v771 = vmul.f32 %v361, %v658
  %v772 = vadd.f32 %v770, %v662
  %v773 = vadd.f32 %v771, %v662
  %776 = vrot.lane.b32.xlu0 %v768, 116
  %v777 = vpop.permute.xlu0 %776
  %778 = vrot.lane.b32.xlu0 %v769, 116
  %v779 = vpop.permute.xlu0 %778
  %v780 = vsel %vm65, %v777, 0
  %v782 = vsel %vm65, %v779, 0
  %784 = vmatpush.msra.mxu0 0.0
  %785 = vmatpush.msra.mxu0 0.0
  %786 = vmatpush.msra.mxu0 0.0
  %787 = vmatpush.msra.mxu0 0.0
  %788 = vmatpush.msra.mxu0 0.0
  %789 = vmatpush.msra.mxu0 0.0
  %790 = vmatpush.msra.mxu0 0.0
  %791 = vmatpush.msra.mxu0 0.0
  %792 = vmatpush.msra.mxu0 0.0
  %793 = vmatpush.msra.mxu0 0.0
  %794 = vmatpush.msra.mxu0 0.0
  %795 = vmatpush.msra.mxu0 0.0
  %796 = vmatpush.msra.mxu0 0.0
  %797 = vmatpush.msra.mxu0 0.0
  %798 = vmatpush.msra.mxu0 0.0
  %799 = vmatpush.msra.mxu0 %v669
  %800 = vmatmul.f32.gmra.mxu0 %v780
  %v801 = vpop.f32.mrf.mxu0
  %v802 = vadd.f32 0.0, %v801
  %803 = vmatmul.f32.gmra.mxu0 %v782
  %v804 = vpop.f32.mrf.mxu0
  %v805 = vadd.f32 0.0, %v804
  %806 = vdwg.mxu0
  %v807 = vadd.f32 %v772, %v802
  %v808 = vadd.f32 %v773, %v805
  %v809 = vxor.u32 %v807, 2147483648
  %v810 = vxor.u32 %v808, 2147483648
  %v811 = vmul.f32 %v809, 1.442695
  %v812 = vpow.pop %v811
  %v813 = vmul.f32 %v810, 1.442695
  %v814 = vpow.pop %v813
  %v815 = vadd.f32 %v812, 1.0
  %v816 = vadd.f32 %v814, 1.0
  %v817 = vrcp.pop %v815
  %v818 = vmul.f32 %v815, %v817
  %v819 = vsub.f32 1.0, %v818
  %v820 = vmul.f32 %v817, %v819
  %v821 = vadd.f32 %v817, %v820
  %vm822 = vweird.f32 %v815
  %vm823 = vweird.f32 %v817
  %vm824 = vmor %vm822, %vm823
  %v825 = vsel %vm824, %v817, %v821
  %v826 = vand.u32 2147483647, %v815
  %vm827 = vcmp.eq.f32.partialorder %v826, 8.507059e+37
  %v828 = vand.u32 %v815, 2147483648
  %v829 = vor.u32 1.1754944e-38, %v828
  %v830 = vsel %vm827, %v829, %v825
  %v831 = vmul.f32 1.0, %v830
  %v832 = vrcp.pop %v816
  %v833 = vmul.f32 %v816, %v832
  %v834 = vsub.f32 1.0, %v833
  %v835 = vmul.f32 %v832, %v834
  %v836 = vadd.f32 %v832, %v835
  %vm837 = vweird.f32 %v816
  %vm838 = vweird.f32 %v832
  %vm839 = vmor %vm837, %vm838
  %v840 = vsel %vm839, %v832, %v836
  %v841 = vand.u32 2147483647, %v816
  %vm842 = vcmp.eq.f32.partialorder %v841, 8.507059e+37
  %v843 = vand.u32 %v816, 2147483648
  %v844 = vor.u32 1.1754944e-38, %v843
  %v845 = vsel %vm842, %v844, %v840
  %v846 = vmul.f32 1.0, %v845
  %v847 = vtanh.pop %v807
  %v848 = vtanh.pop %v808
  %v849 = vmul.f32 %v831, %v756
  %v850 = vmul.f32 %v846, %v757
  %853 = vrot.lane.b32.xlu0 %v847, 120
  %v854 = vpop.permute.xlu0 %853
  %855 = vrot.lane.b32.xlu0 %v848, 120
  %v856 = vpop.permute.xlu0 %855
  %v859 = vmul.f32 %v831, %v854
  %v860 = vmul.f32 %v846, %v856
  %863 = vrot.lane.b32.xlu0 %v859, 4
  %v864 = vpop.permute.xlu0 %863
  %865 = vrot.lane.b32.xlu0 %v860, 4
  %v866 = vpop.permute.xlu0 %865
  %v869 = vadd.f32 %v849, %v864
  %v870 = vadd.f32 %v850, %v866
  %v871 = vtanh.pop %v869
  %v872 = vtanh.pop %v870
  %875 = vrot.lane.b32.xlu0 %v871, 8
  %v876 = vpop.permute.xlu0 %875
  %877 = vrot.lane.b32.xlu0 %v872, 8
  %v878 = vpop.permute.xlu0 %877
  %v881 = vmul.f32 %v831, %v876
  %v882 = vmul.f32 %v846, %v878
  %885 = vrot.lane.b32.xlu0 %v881, 116
  %v886 = vpop.permute.xlu0 %885
  %887 = vrot.lane.b32.xlu0 %v882, 116
  %v888 = vpop.permute.xlu0 %887
  %v889 = vsel %vm65, %v886, 0
  %v891 = vsel %vm65, %v888, 0
  %v894 = vsel %vm69, %v655, 0
  %896 = vmatpush.msra.mxu0 0.0
  %897 = vmatpush.msra.mxu0 0.0
  %898 = vmatpush.msra.mxu0 0.0
  %899 = vmatpush.msra.mxu0 0.0
  %900 = vmatpush.msra.mxu0 0.0
  %901 = vmatpush.msra.mxu0 0.0
  %902 = vmatpush.msra.mxu0 0.0
  %903 = vmatpush.msra.mxu0 0.0
  %904 = vmatpush.msra.mxu0 0.0
  %905 = vmatpush.msra.mxu0 0.0
  %906 = vmatpush.msra.mxu0 0.0
  %907 = vmatpush.msra.mxu0 0.0
  %908 = vmatpush.msra.mxu0 0.0
  %909 = vmatpush.msra.mxu0 0.0
  %910 = vmatpush.msra.mxu0 0.0
  %911 = vmatpush.msra.mxu0 %v894
  %912 = vmatmul.f32.gmra.mxu0 %v889
  %v913 = vpop.f32.mrf.mxu0
  %v914 = vadd.f32 0.0, %v913
  %915 = vmatmul.f32.gmra.mxu0 %v891
  %v916 = vpop.f32.mrf.mxu0
  %v917 = vadd.f32 0.0, %v916
  %918 = vdwg.mxu0
  %v919 = vrot.slane %v655, 4
  %v920 = vsel %vm69, %v919, 0
  %922 = vmatpush.msra.mxu0 0.0
  %923 = vmatpush.msra.mxu0 0.0
  %924 = vmatpush.msra.mxu0 0.0
  %925 = vmatpush.msra.mxu0 0.0
  %926 = vmatpush.msra.mxu0 0.0
  %927 = vmatpush.msra.mxu0 0.0
  %928 = vmatpush.msra.mxu0 0.0
  %929 = vmatpush.msra.mxu0 0.0
  %930 = vmatpush.msra.mxu0 0.0
  %931 = vmatpush.msra.mxu0 0.0
  %932 = vmatpush.msra.mxu0 0.0
  %933 = vmatpush.msra.mxu0 0.0
  %934 = vmatpush.msra.mxu0 0.0
  %935 = vmatpush.msra.mxu0 0.0
  %936 = vmatpush.msra.mxu0 0.0
  %937 = vmatpush.msra.mxu0 %v920
  %938 = vmatmul.f32.gmra.mxu0 %v780
  %v939 = vpop.f32.mrf.mxu0
  %v940 = vadd.f32 %v914, %v939
  %941 = vmatmul.f32.gmra.mxu0 %v782
  %v942 = vpop.f32.mrf.mxu0
  %v943 = vadd.f32 %v917, %v942
  %944 = vdwg.mxu0
  %v945 = vmul.f32 %v174, %v658
  %v946 = vmul.f32 %v178, %v658
  %v947 = vadd.f32 %v945, %v662
  %v948 = vadd.f32 %v946, %v662
  %949 = vmatpush.msra.mxu0 0.0
  %950 = vmatpush.msra.mxu0 0.0
  %951 = vmatpush.msra.mxu0 0.0
  %952 = vmatpush.msra.mxu0 0.0
  %953 = vmatpush.msra.mxu0 0.0
  %954 = vmatpush.msra.mxu0 0.0
  %955 = vmatpush.msra.mxu0 0.0
  %956 = vmatpush.msra.mxu0 0.0
  %957 = vmatpush.msra.mxu0 0.0
  %958 = vmatpush.msra.mxu0 0.0
  %959 = vmatpush.msra.mxu0 0.0
  %960 = vmatpush.msra.mxu0 0.0
  %961 = vmatpush.msra.mxu0 0.0
  %962 = vmatpush.msra.mxu0 0.0
  %963 = vmatpush.msra.mxu0 0.0
  %964 = vmatpush.msra.mxu0 %v669
  %965 = vmatmul.f32.gmra.mxu0 %v889
  %v966 = vpop.f32.mrf.mxu0
  %v967 = vadd.f32 0.0, %v966
  %968 = vmatmul.f32.gmra.mxu0 %v891
  %v969 = vpop.f32.mrf.mxu0
  %v970 = vadd.f32 0.0, %v969
  %971 = vdwg.mxu0
  %v972 = vadd.f32 %v947, %v967
  %v973 = vadd.f32 %v948, %v970
  %v974 = vxor.u32 %v972, 2147483648
  %v975 = vxor.u32 %v973, 2147483648
  %v976 = vmul.f32 %v974, 1.442695
  %v977 = vpow.pop %v976
  %v978 = vmul.f32 %v975, 1.442695
  %v979 = vpow.pop %v978
  %v980 = vadd.f32 %v977, 1.0
  %v981 = vadd.f32 %v979, 1.0
  %v982 = vrcp.pop %v980
  %v983 = vmul.f32 %v980, %v982
  %v984 = vsub.f32 1.0, %v983
  %v985 = vmul.f32 %v982, %v984
  %v986 = vadd.f32 %v982, %v985
  %vm987 = vweird.f32 %v980
  %vm988 = vweird.f32 %v982
  %vm989 = vmor %vm987, %vm988
  %v990 = vsel %vm989, %v982, %v986
  %v991 = vand.u32 2147483647, %v980
  %vm992 = vcmp.eq.f32.partialorder %v991, 8.507059e+37
  %v993 = vand.u32 %v980, 2147483648
  %v994 = vor.u32 1.1754944e-38, %v993
  %v995 = vsel %vm992, %v994, %v990
  %v996 = vmul.f32 1.0, %v995
  %v997 = vrcp.pop %v981
  %v998 = vmul.f32 %v981, %v997
  %v999 = vsub.f32 1.0, %v998
  %v1000 = vmul.f32 %v997, %v999
  %v1001 = vadd.f32 %v997, %v1000
  %vm1002 = vweird.f32 %v981
  %vm1003 = vweird.f32 %v997
  %vm1004 = vmor %vm1002, %vm1003
  %v1005 = vsel %vm1004, %v997, %v1001
  %v1006 = vand.u32 2147483647, %v981
  %vm1007 = vcmp.eq.f32.partialorder %v1006, 8.507059e+37
  %v1008 = vand.u32 %v981, 2147483648
  %v1009 = vor.u32 1.1754944e-38, %v1008
  %v1010 = vsel %vm1007, %v1009, %v1005
  %v1011 = vmul.f32 1.0, %v1010
  %v1012 = vtanh.pop %v972
  %v1013 = vtanh.pop %v973
  %v1014 = vmul.f32 %v996, %v869
  %v1015 = vmul.f32 %v1011, %v870
  %1018 = vrot.lane.b32.xlu0 %v1012, 120
  %v1019 = vpop.permute.xlu0 %1018
  %1020 = vrot.lane.b32.xlu0 %v1013, 120
  %v1021 = vpop.permute.xlu0 %1020
  %v1024 = vmul.f32 %v996, %v1019
  %v1025 = vmul.f32 %v1011, %v1021
  %1028 = vrot.lane.b32.xlu0 %v1024, 4
  %v1029 = vpop.permute.xlu0 %1028
  %1030 = vrot.lane.b32.xlu0 %v1025, 4
  %v1031 = vpop.permute.xlu0 %1030
  %v1034 = vadd.f32 %v1014, %v1029
  %v1035 = vadd.f32 %v1015, %v1031
  %v1036 = vtanh.pop %v1034
  %v1037 = vtanh.pop %v1035
  %1040 = vrot.lane.b32.xlu0 %v1036, 8
  %v1041 = vpop.permute.xlu0 %1040
  %1042 = vrot.lane.b32.xlu0 %v1037, 8
  %v1043 = vpop.permute.xlu0 %1042
  %v1046 = vmul.f32 %v996, %v1041
  %v1047 = vmul.f32 %v1011, %v1043
  %1050 = vrot.lane.b32.xlu0 %v1046, 116
  %v1051 = vpop.permute.xlu0 %1050
  %1052 = vrot.lane.b32.xlu0 %v1047, 116
  %v1053 = vpop.permute.xlu0 %1052
  %v1055 = vrot.slane %v654, 4
  %v1056 = vsel %vm65, %v1051, 0
  %v1058 = vsel %vm65, %v1053, 0
  %v1060 = vsel %vm69, %v1055, 0
  %1062 = vmatpush.msra.mxu0 0.0
  %1063 = vmatpush.msra.mxu0 0.0
  %1064 = vmatpush.msra.mxu0 0.0
  %1065 = vmatpush.msra.mxu0 0.0
  %1066 = vmatpush.msra.mxu0 0.0
  %1067 = vmatpush.msra.mxu0 0.0
  %1068 = vmatpush.msra.mxu0 0.0
  %1069 = vmatpush.msra.mxu0 0.0
  %1070 = vmatpush.msra.mxu0 0.0
  %1071 = vmatpush.msra.mxu0 0.0
  %1072 = vmatpush.msra.mxu0 0.0
  %1073 = vmatpush.msra.mxu0 0.0
  %1074 = vmatpush.msra.mxu0 0.0
  %1075 = vmatpush.msra.mxu0 0.0
  %1076 = vmatpush.msra.mxu0 0.0
  %1077 = vmatpush.msra.mxu0 %v1060
  %1078 = vmatmul.f32.gmra.mxu0 %v1056
  %v1079 = vpop.f32.mrf.mxu0
  %v1080 = vadd.f32 0.0, %v1079
  %1081 = vmatmul.f32.gmra.mxu0 %v1058
  %v1082 = vpop.f32.mrf.mxu0
  %v1083 = vadd.f32 0.0, %v1082
  %1084 = vdwg.mxu0
  %v1085 = vadd.f32 %v940, %v1080
  %v1086 = vadd.f32 %v943, %v1083
  %v1087 = vmul.f32 %v54, %v658
  %v1088 = vmul.f32 %v59, %v658
  %v1089 = vadd.f32 %v1087, %v662
  %v1090 = vadd.f32 %v1088, %v662
  %1091 = vmatpush.msra.mxu0 0.0
  %1092 = vmatpush.msra.mxu0 0.0
  %1093 = vmatpush.msra.mxu0 0.0
  %1094 = vmatpush.msra.mxu0 0.0
  %1095 = vmatpush.msra.mxu0 0.0
  %1096 = vmatpush.msra.mxu0 0.0
  %1097 = vmatpush.msra.mxu0 0.0
  %1098 = vmatpush.msra.mxu0 0.0
  %1099 = vmatpush.msra.mxu0 0.0
  %1100 = vmatpush.msra.mxu0 0.0
  %1101 = vmatpush.msra.mxu0 0.0
  %1102 = vmatpush.msra.mxu0 0.0
  %1103 = vmatpush.msra.mxu0 0.0
  %1104 = vmatpush.msra.mxu0 0.0
  %1105 = vmatpush.msra.mxu0 0.0
  %1106 = vmatpush.msra.mxu0 %v669
  %1107 = vmatmul.f32.gmra.mxu0 %v1056
  %v1108 = vpop.f32.mrf.mxu0
  %v1109 = vadd.f32 0.0, %v1108
  %1110 = vmatmul.f32.gmra.mxu0 %v1058
  %v1111 = vpop.f32.mrf.mxu0
  %v1112 = vadd.f32 0.0, %v1111
  %1113 = vdwg.mxu0
  %v1114 = vadd.f32 %v1089, %v1109
  %v1115 = vadd.f32 %v1090, %v1112
  %v1116 = vxor.u32 %v1114, 2147483648
  %v1117 = vxor.u32 %v1115, 2147483648
  %v1118 = vmul.f32 %v1116, 1.442695
  %v1119 = vpow.pop %v1118
  %v1120 = vmul.f32 %v1117, 1.442695
  %v1121 = vpow.pop %v1120
  %v1122 = vadd.f32 %v1119, 1.0
  %v1123 = vadd.f32 %v1121, 1.0
  %v1124 = vrcp.pop %v1122
  %v1125 = vmul.f32 %v1122, %v1124
  %v1126 = vsub.f32 1.0, %v1125
  %v1127 = vmul.f32 %v1124, %v1126
  %v1128 = vadd.f32 %v1124, %v1127
  %vm1129 = vweird.f32 %v1122
  %vm1130 = vweird.f32 %v1124
  %vm1131 = vmor %vm1129, %vm1130
  %v1132 = vsel %vm1131, %v1124, %v1128
  %v1133 = vand.u32 2147483647, %v1122
  %vm1134 = vcmp.eq.f32.partialorder %v1133, 8.507059e+37
  %v1135 = vand.u32 %v1122, 2147483648
  %v1136 = vor.u32 1.1754944e-38, %v1135
  %v1137 = vsel %vm1134, %v1136, %v1132
  %v1138 = vmul.f32 1.0, %v1137
  %v1139 = vrcp.pop %v1123
  %v1140 = vmul.f32 %v1123, %v1139
  %v1141 = vsub.f32 1.0, %v1140
  %v1142 = vmul.f32 %v1139, %v1141
  %v1143 = vadd.f32 %v1139, %v1142
  %vm1144 = vweird.f32 %v1123
  %vm1145 = vweird.f32 %v1139
  %vm1146 = vmor %vm1144, %vm1145
  %v1147 = vsel %vm1146, %v1139, %v1143
  %v1148 = vand.u32 2147483647, %v1123
  %vm1149 = vcmp.eq.f32.partialorder %v1148, 8.507059e+37
  %v1150 = vand.u32 %v1123, 2147483648
  %v1151 = vor.u32 1.1754944e-38, %v1150
  %v1152 = vsel %vm1149, %v1151, %v1147
  %v1153 = vmul.f32 1.0, %v1152
  %v1154 = vtanh.pop %v1114
  %v1155 = vtanh.pop %v1115
  %v1156 = vmul.f32 %v1138, %v1034
  %v1157 = vmul.f32 %v1153, %v1035
  %1160 = vrot.lane.b32.xlu0 %v1154, 120
  %v1161 = vpop.permute.xlu0 %1160
  %1162 = vrot.lane.b32.xlu0 %v1155, 120
  %v1163 = vpop.permute.xlu0 %1162
  %v1166 = vmul.f32 %v1138, %v1161
  %v1167 = vmul.f32 %v1153, %v1163
  %1170 = vrot.lane.b32.xlu0 %v1166, 4
  %v1171 = vpop.permute.xlu0 %1170
  %1172 = vrot.lane.b32.xlu0 %v1167, 4
  %v1173 = vpop.permute.xlu0 %1172
  %v1176 = vadd.f32 %v1156, %v1171
  %v1177 = vadd.f32 %v1157, %v1173
  %v1178 = vtanh.pop %v1176
  %v1179 = vtanh.pop %v1177
  %1182 = vrot.lane.b32.xlu0 %v1178, 8
  %v1183 = vpop.permute.xlu0 %1182
  %1184 = vrot.lane.b32.xlu0 %v1179, 8
  %v1185 = vpop.permute.xlu0 %1184
  %v1188 = vmul.f32 %v1138, %v1183
  %v1189 = vmul.f32 %v1153, %v1185
  %1192 = vrot.lane.b32.xlu0 %v1188, 116
  %v1193 = vpop.permute.xlu0 %1192
  %1194 = vrot.lane.b32.xlu0 %v1189, 116
  %v1195 = vpop.permute.xlu0 %1194
  %v1196 = vsel %vm65, %v1193, 0
  %v1198 = vsel %vm65, %v1195, 0
  %v1200 = vsel %vm69, %v654, 0
  %1202 = vmatpush.msra.mxu0 0.0
  %1203 = vmatpush.msra.mxu0 0.0
  %1204 = vmatpush.msra.mxu0 0.0
  %1205 = vmatpush.msra.mxu0 0.0
  %1206 = vmatpush.msra.mxu0 0.0
  %1207 = vmatpush.msra.mxu0 0.0
  %1208 = vmatpush.msra.mxu0 0.0
  %1209 = vmatpush.msra.mxu0 0.0
  %1210 = vmatpush.msra.mxu0 0.0
  %1211 = vmatpush.msra.mxu0 0.0
  %1212 = vmatpush.msra.mxu0 0.0
  %1213 = vmatpush.msra.mxu0 0.0
  %1214 = vmatpush.msra.mxu0 0.0
  %1215 = vmatpush.msra.mxu0 0.0
  %1216 = vmatpush.msra.mxu0 0.0
  %1217 = vmatpush.msra.mxu0 %v1200
  %1218 = vmatmul.f32.gmra.mxu0 %v1196
  %v1219 = vpop.f32.mrf.mxu0
  %v1220 = vadd.f32 0.0, %v1219
  %1221 = vmatmul.f32.gmra.mxu0 %v1198
  %v1222 = vpop.f32.mrf.mxu0
  %v1223 = vadd.f32 0.0, %v1222
  %1224 = vdwg.mxu0
  %v1225 = vadd.f32 %v1085, %v1220
  %v1226 = vadd.f32 %v1086, %v1223
  %v1227 = vadd.f32 %v651, %v1225
  %v1228 = vadd.f32 %v652, %v1226
  %v1229 = vld [vmem:[%s10] sm:$0x1]
  %v1231 = vperm.slane %v1229, 0
  %v1233 = vadd.f32 %v1227, %v1231
  %v1234 = vadd.f32 %v1228, %v1231
  %v1235 = vld [vmem:[%s1] sm:$0xff]
  %v1236 = vld [vmem:[%s1 + $0x8] sm:$0xff]
  %v1237 = vmul.f32 %v1235, 0.7
  %v1238 = vmul.f32 %v1236, 0.7
  %v1239 = vmul.f32 %v1233, 0.3
  %v1240 = vmul.f32 %v1234, 0.3
  %v1241 = vadd.f32 %v1237, %v1239
  %v1242 = vadd.f32 %v1238, %v1240
  %vm1243 = vcmask 64512
  %1244 = vst.msk [vmem:[%s11] sm:$0xff] %vm1243, %v1241
  %1245 = vst.msk [vmem:[%s11 + $0x8] sm:$0xff] %vm1243, %v1242
  // Predicated region
  $region46: #{forward.2} parent=0 // pred_check
    _
  $region47: #{forward.2} parent=0 // pred_check_branch
    %1247 = sbr.rel (0) target = $region49
  $region48: #{forward.2} parent=0 // pred_region
    _
  $region49: #{forward.2} parent=0 // pred_fallthru
    _
  // Predicated region
  $region50: #{forward.2} parent=0 // pred_check
    _
  $region51: #{forward.2} parent=0 // pred_check_branch
    %1249 = sbr.rel (0) target = $region53
  $region52: #{forward.2} parent=0 // pred_region
    _
  $region53: #{forward.2} parent=0 // pred_fallthru
    _

</llo_original>
